<compile_context>
chip_gen: v6e
topology: v6e:2x2x1
jax: 0.10.0
libtpu: 0.0.40
codegen_flags: <defaults>
</compile_context>

<pallas_src>
import functools

import jax
import jax.numpy as jnp
from jax.experimental import pallas as pl
from jax.experimental.pallas import tpu as pltpu


def _round_up(x, m):
    return (x + m - 1) // m * m


def _layernorm_padded(x, g, b, d_orig, eps=1e-5):
    """LayerNorm over the first d_orig features of a zero-padded last dim.

    x: (M, Dp) f32 with zeros in the padded columns; g, b: (1, Dp) with zeros
    in the padded columns (so padded columns stay exactly zero).
    """
    inv_d = 1.0 / d_orig
    mu = jnp.sum(x, axis=-1, keepdims=True) * inv_d
    msq = jnp.sum(x * x, axis=-1, keepdims=True) * inv_d
    var = jnp.maximum(msq - mu * mu, 0.0)
    return (x - mu) * jax.lax.rsqrt(var + eps) * g + b


# ----------------------------------------------------------------------------
# Fused kernel: all transformer layers + resLinear2 heads.
# Grid = (B // Bt, L);  axis 0 "parallel" (batch tiles), axis 1 "arbitrary"
# (layers, activation accumulated in the output VMEM block).
# ----------------------------------------------------------------------------
def fused_encoder_kernel(
    x0_ref, adjb_ref, mask_ref, tgt_ref,
    wqkv_ref, bqkv_ref, wo_ref, bo_ref,
    w1_ref, b1_ref, w2_ref, b2_ref,
    ln1g_ref, ln1b_ref, ln2g_ref, ln2b_ref,
    resw_ref, resb_ref,
    xout_ref, probs_ref, mloss_ref, sloss_ref,
    *, d_orig, nl_len,
):
    layer = pl.program_id(1)
    n_layers = pl.num_programs(1)

    # Layer 0: seed the VMEM-resident activation accumulator from the input.
    @pl.when(layer == 0)
    def _():
        xout_ref[...] = x0_ref[...]

    x = xout_ref[...]                                  # (Bt, S, Dp) f32
    bt, s, dp = x.shape
    x2 = x.reshape(bt * s, dp)
    xb = x2.astype(jnp.bfloat16)

    # Fused QKV projection: one (Bt*S, Dp) x (Dp, 3*Dp) MXU matmul.
    qkv = jnp.dot(xb, wqkv_ref[0], preferred_element_type=jnp.float32) + bqkv_ref[0]
    q = qkv[:, :dp].reshape(bt, s, dp).astype(jnp.bfloat16)
    k = qkv[:, dp:2 * dp].reshape(bt, s, dp).astype(jnp.bfloat16)
    v = qkv[:, 2 * dp:].reshape(bt, s, dp).astype(jnp.bfloat16)

    # Adjacency-masked attention; softmax in f32, matmuls in bf16.
    scale = 1.0 / jnp.sqrt(jnp.float32(d_orig))
    scores = jnp.einsum("bqd,bkd->bqk", q, k, preferred_element_type=jnp.float32)
    scores = scores * scale + adjb_ref[...].astype(jnp.float32)
    scores = scores - jnp.max(scores, axis=-1, keepdims=True)
    p = jnp.exp(scores)
    p = p * pl.reciprocal(jnp.sum(p, axis=-1, keepdims=True), approx=True)
    ctx = jnp.einsum("bqk,bkd->bqd", p.astype(jnp.bfloat16), v,
                     preferred_element_type=jnp.float32)
    attn = jnp.dot(ctx.reshape(bt * s, dp).astype(jnp.bfloat16), wo_ref[0],
                   preferred_element_type=jnp.float32) + bo_ref[0]

    h = _layernorm_padded(x2 + attn, ln1g_ref[0], ln1b_ref[0], d_orig)

    # Feed-forward.
    ff = jnp.dot(h.astype(jnp.bfloat16), w1_ref[0],
                 preferred_element_type=jnp.float32) + b1_ref[0]
    ff = jax.nn.gelu(ff, approximate=True)
    ff = jnp.dot(ff.astype(jnp.bfloat16), w2_ref[0],
                 preferred_element_type=jnp.float32) + b2_ref[0]

    y2 = _layernorm_padded(h + ff, ln2g_ref[0], ln2b_ref[0], d_orig)
    y3 = y2.reshape(bt, s, dp)
    xout_ref[...] = y3

    # Heads fused into the last layer step: resLinear2 + two group-masked
    # softmaxes (method columns [0, nl_len), statement columns [nl_len, S)).
    @pl.when(layer == n_layers - 1)
    def _():
        resw = resw_ref[...].reshape(1, 1, dp)          # zero in padded cols
        resb = resb_ref[0, 0]
        logits = jnp.sum(y3 * resw, axis=-1) + resb     # (Bt, S)
        logits = jnp.where(mask_ref[...] > 0.0, logits, jnp.float32(-1e9))

        col = jax.lax.broadcasted_iota(jnp.int32, (bt, s), 1)
        is_method = col < nl_len

        def group_softmax(sel):
            z = jnp.where(sel, logits, jnp.float32(-1e9))
            z = z - jnp.max(z, axis=-1, keepdims=True)
            e = jnp.where(sel, jnp.exp(z), 0.0)
            return e * pl.reciprocal(jnp.sum(e, axis=-1, keepdims=True),
                                     approx=True)

        m_p = group_softmax(is_method)
        s_p = group_softmax(jnp.logical_not(is_method))
        probs = m_p + s_p                               # groups are disjoint
        probs_ref[...] = probs

        nll = -jnp.log(jnp.clip(probs, 1e-10, 1.0)) * tgt_ref[...]
        mloss_ref[...] = jnp.sum(jnp.where(is_method, nll, 0.0),
                                 axis=-1, keepdims=True)
        sloss_ref[...] = jnp.sum(jnp.where(is_method, 0.0, nll),
                                 axis=-1, keepdims=True)


def run_fused_encoder(x0, adjb, mask_all, tgt_all, params, *, nl_len, d_orig,
                      batch_tile=None):
    """x0: (B,S,Dp) f32 (zero-padded features), adjb: (B,S,S) bf16 additive
    bias, mask_all/tgt_all: (B,S) f32, params: stacked per-layer weights."""
    B, S, Dp = x0.shape
    L = params["wqkv"].shape[0]
    Bt = B if batch_tile is None else batch_tile
    assert B % Bt == 0

    def layer_spec(arr):
        return pl.BlockSpec((1,) + arr.shape[1:], lambda b, l: (l, 0, 0))

    def const_spec(arr):
        n = arr.ndim
        return pl.BlockSpec(arr.shape, lambda b, l, _n=n: (0,) * _n)

    layer_keys = ("wqkv", "bqkv", "wo", "bo", "w1", "b1", "w2", "b2",
                  "ln1g", "ln1b", "ln2g", "ln2b")

    in_specs = [
        pl.BlockSpec((Bt, S, Dp), lambda b, l: (b, 0, 0)),   # x0
        pl.BlockSpec((Bt, S, S), lambda b, l: (b, 0, 0)),    # adj bias
        pl.BlockSpec((Bt, S), lambda b, l: (b, 0)),          # mask
        pl.BlockSpec((Bt, S), lambda b, l: (b, 0)),          # target
    ] + [layer_spec(params[kk]) for kk in layer_keys] + [
        const_spec(params["res_w"]),
        const_spec(params["res_b"]),
    ]

    out_shape = (
        jax.ShapeDtypeStruct((B, S, Dp), jnp.float32),   # activations
        jax.ShapeDtypeStruct((B, S), jnp.float32),       # head probabilities
        jax.ShapeDtypeStruct((B, 1), jnp.float32),       # method row loss
        jax.ShapeDtypeStruct((B, 1), jnp.float32),       # statement row loss
    )
    out_specs = [
        pl.BlockSpec((Bt, S, Dp), lambda b, l: (b, 0, 0)),
        pl.BlockSpec((Bt, S), lambda b, l: (b, 0)),
        pl.BlockSpec((Bt, 1), lambda b, l: (b, 0)),
        pl.BlockSpec((Bt, 1), lambda b, l: (b, 0)),
    ]

    kernel = functools.partial(fused_encoder_kernel, d_orig=d_orig,
                               nl_len=nl_len)

    return pl.pallas_call(
        kernel,
        out_shape=out_shape,
        grid_spec=pltpu.PrefetchScalarGridSpec(
            num_scalar_prefetch=0,
            grid=(B // Bt, L),
            in_specs=in_specs,
            out_specs=out_specs,
        ),
        compiler_params=pltpu.CompilerParams(
            dimension_semantics=("parallel", "arbitrary"),
            vmem_limit_bytes=64 * 1024 * 1024,
        ),
    )(x0, adjb, mask_all, tgt_all,
      *[params[kk] for kk in layer_keys],
      params["res_w"], params["res_b"])


# ----------------------------------------------------------------------------
# Parameter construction: per-layer weights stacked along a leading L axis,
# feature dims zero-padded to lane-dense multiples of 128, matmul weights bf16.
# ----------------------------------------------------------------------------
def init_params(key, *, vocab, emb, layers, sus_code=32, sus_sbfl=20):
    D = emb
    Dp = _round_up(D, 128)
    FF = 4 * D
    FFp = _round_up(FF, 128)
    L = layers

    kit = iter(jax.random.split(key, 20))

    def nrm(shape, scale=0.02):
        return jax.random.normal(next(kit), shape, jnp.float32) * scale

    def pad3(a, r, c):
        return jnp.pad(a, ((0, 0), (0, r - a.shape[1]), (0, c - a.shape[2])))

    wq, wk, wv = nrm((L, D, D)), nrm((L, D, D)), nrm((L, D, D))
    bq, bk, bv = nrm((L, 1, D)), nrm((L, 1, D)), nrm((L, 1, D))
    wqkv = jnp.concatenate([pad3(w, Dp, Dp) for w in (wq, wk, wv)], axis=-1)
    bqkv = jnp.concatenate([pad3(b, 1, Dp) for b in (bq, bk, bv)], axis=-1)

    wo = pad3(nrm((L, D, D)), Dp, Dp)
    bo = pad3(nrm((L, 1, D)), 1, Dp)
    w1 = pad3(nrm((L, D, FF)), Dp, FFp)
    b1 = pad3(nrm((L, 1, FF)), 1, FFp)
    w2 = pad3(nrm((L, FF, D)), FFp, Dp)
    b2 = pad3(nrm((L, 1, D)), 1, Dp)

    ln_g = pad3(jnp.ones((L, 1, D), jnp.float32), 1, Dp)
    ln_b = pad3(jnp.zeros((L, 1, D), jnp.float32), 1, Dp)

    res_w = jnp.pad(nrm((1, D)), ((0, 0), (0, Dp - D)))
    res_b = nrm((1, 1))

    return {
        "emb": D,
        "tok_emb": nrm((vocab, D - sus_code)),
        "tok_emb1": nrm((vocab, D - sus_sbfl)),
        "wqkv": wqkv.astype(jnp.bfloat16), "bqkv": bqkv,
        "wo": wo.astype(jnp.bfloat16), "bo": bo,
        "w1": w1.astype(jnp.bfloat16), "b1": b1,
        "w2": w2.astype(jnp.bfloat16), "b2": b2,
        "ln1g": ln_g, "ln1b": ln_b, "ln2g": ln_g, "ln2b": ln_b,
        "res_w": res_w, "res_b": res_b,
    }


# ----------------------------------------------------------------------------
# Full NlEncoderAll forward (losslevel='Average', NETname not 'GRACE').
# ----------------------------------------------------------------------------
def nl_encoder_all_forward(params, input_node, inputtype, inputad, res,
                           inputtext, linenode, linetype, linemus,
                           LineSMType, complexity, node_S, MRes):
    del linetype, linemus  # present in the torch signature but unused

    nl_len = input_node.shape[1]
    D = params["emb"]
    Dp = params["wqkv"].shape[1]

    # masks (float for kernel use)
    mres_mask = (input_node == 2).astype(jnp.float32)   # MResmask
    res_mask = (inputtype == 2).astype(jnp.float32)     # resmask

    # embeddings + feature concatenation (glue, plain JAX)
    nodeem = jnp.take(params["tok_emb"], input_node, axis=0)
    nodeem = jnp.concatenate(
        [nodeem, inputtext[..., None].astype(jnp.float32),
         complexity.astype(jnp.float32), node_S.astype(jnp.float32)], axis=-1)
    lineem = jnp.take(params["tok_emb1"], linenode, axis=0)
    lineem = jnp.concatenate([lineem, LineSMType.astype(jnp.float32)], axis=-1)
    x = jnp.concatenate([nodeem, lineem], axis=1).astype(jnp.float32)  # (B,S,D)
    x = jnp.pad(x, ((0, 0), (0, 0), (0, Dp - D)))                      # lane pad

    # adjacency as a bf16 additive attention bias (0 where edge, -1e9 else)
    adjb = jnp.where(inputad.astype(jnp.float32) > 0.0,
                     0.0, -1e9).astype(jnp.bfloat16)

    # combined head mask / target over the full sequence
    mask_all = jnp.concatenate([mres_mask, res_mask], axis=1)
    tgt_all = jnp.concatenate(
        [MRes.astype(jnp.float32), res.astype(jnp.float32)], axis=1)

    x_out, probs, m_row, s_row = run_fused_encoder(
        x, adjb, mask_all, tgt_all, params, nl_len=nl_len, d_orig=D)

    m_loss = jnp.mean(m_row[:, 0])
    s_loss = jnp.mean(s_row[:, 0])
    total_loss = (m_loss + s_loss) / 2.0          # losslevel == 'Average'

    res_softmax = probs[:, nl_len:]
    xs = x_out[:, nl_len:, :D]
    return total_loss, res_softmax, xs


# ----------------------------------------------------------------------------
if __name__ == "__main__":
    B = 2            # batch
    NL_LEN = 8       # method/node sequence length
    LINE_LEN = 8     # statement/line sequence length
    S = NL_LEN + LINE_LEN
    EMB = 64         # embedding_size == hidden_size (must exceed sus_len_code=32)
    VOCAB = 30
    LAYERS = 2

    key = jax.random.PRNGKey(0)
    kp, k1, k2, k3, k4, k5, k6, k7, k8, k9, k10 = jax.random.split(key, 11)

    params = init_params(kp, vocab=VOCAB, emb=EMB, layers=LAYERS)

    input_node = jax.random.randint(k1, (B, NL_LEN), 0, VOCAB, jnp.int32)
    input_node = input_node.at[:, 0].set(2)  # ensure some MResmask hits
    inputtype = jax.random.randint(k2, (B, LINE_LEN), 0, 3, jnp.int32)
    inputtype = inputtype.at[:, 0].set(2)    # ensure some resmask hits
    adj = (jax.random.uniform(k3, (B, S, S)) > 0.5).astype(jnp.float32)
    adj = jnp.maximum(adj, jnp.eye(S, dtype=jnp.float32)[None])  # self loops
    res = jax.random.uniform(k4, (B, LINE_LEN), jnp.float32)
    inputtext = jax.random.uniform(k5, (B, NL_LEN), jnp.float32)
    linenode = jax.random.randint(k6, (B, LINE_LEN), 0, VOCAB, jnp.int32)
    linetype = jnp.zeros((B, LINE_LEN), jnp.int32)   # unused by forward
    linemus = jnp.zeros((B, LINE_LEN), jnp.int32)    # unused by forward
    LineSMType = jax.random.uniform(k7, (B, LINE_LEN, 20), jnp.float32)
    complexity = jax.random.uniform(k8, (B, NL_LEN, 11), jnp.float32)
    node_S = jax.random.uniform(k9, (B, NL_LEN, 20), jnp.float32)
    MRes = jax.random.uniform(k10, (B, NL_LEN), jnp.float32)

    fwd = jax.jit(functools.partial(nl_encoder_all_forward, params))
    loss, res_softmax, x_out = fwd(
        input_node, inputtype, adj, res, inputtext, linenode, linetype,
        linemus, LineSMType, complexity, node_S, MRes)
    jax.block_until_ready((loss, res_softmax, x_out))

    assert loss.shape == ()
    assert res_softmax.shape == (B, LINE_LEN)
    assert x_out.shape == (B, LINE_LEN, EMB)
    assert bool(jnp.isfinite(loss))
    assert bool(jnp.all(jnp.isfinite(res_softmax)))
    assert bool(jnp.all(jnp.isfinite(x_out)))
    print("KERNEL_OK")
</pallas_src>

<mosaic_0001>
module attributes {stable_mosaic.version = 11 : i64} {
  func.func @fused_encoder_kernel(%arg0: i32, %arg1: i32, %arg2: memref<2x16x128xf32, #tpu.memory_space<vmem>>, %arg3: memref<2x16x16xbf16, #tpu.memory_space<vmem>>, %arg4: memref<2x16xf32, #tpu.memory_space<vmem>>, %arg5: memref<2x16xf32, #tpu.memory_space<vmem>>, %arg6: memref<1x128x384xbf16, #tpu.memory_space<vmem>>, %arg7: memref<1x1x384xf32, #tpu.memory_space<vmem>>, %arg8: memref<1x128x128xbf16, #tpu.memory_space<vmem>>, %arg9: memref<1x1x128xf32, #tpu.memory_space<vmem>>, %arg10: memref<1x128x256xbf16, #tpu.memory_space<vmem>>, %arg11: memref<1x1x256xf32, #tpu.memory_space<vmem>>, %arg12: memref<1x256x128xbf16, #tpu.memory_space<vmem>>, %arg13: memref<1x1x128xf32, #tpu.memory_space<vmem>>, %arg14: memref<1x1x128xf32, #tpu.memory_space<vmem>>, %arg15: memref<1x1x128xf32, #tpu.memory_space<vmem>>, %arg16: memref<1x1x128xf32, #tpu.memory_space<vmem>>, %arg17: memref<1x1x128xf32, #tpu.memory_space<vmem>>, %arg18: memref<1x128xf32, #tpu.memory_space<vmem>>, %arg19: memref<1x1xf32, #tpu.memory_space<vmem>>, %arg20: memref<2x16x128xf32, #tpu.memory_space<vmem>>, %arg21: memref<2x16xf32, #tpu.memory_space<vmem>>, %arg22: memref<2x1xf32, #tpu.memory_space<vmem>>, %arg23: memref<2x1xf32, #tpu.memory_space<vmem>>) attributes {dimension_semantics = [#tpu.dimension_semantics<parallel>, #tpu.dimension_semantics<arbitrary>], iteration_bounds = array<i64: 1, 2>, scalar_prefetch = 0 : i64, scratch_operands = 0 : i64, tpu.core_type = #tpu.core_type<tc>, window_params = [{transform_indices = @transform_0, window_bounds = array<i64: 2, 16, 128>}, {transform_indices = @transform_1, window_bounds = array<i64: 2, 16, 16>}, {transform_indices = @transform_2, window_bounds = array<i64: 2, 16>}, {transform_indices = @transform_3, window_bounds = array<i64: 2, 16>}, {transform_indices = @transform_4, window_bounds = array<i64: 1, 128, 384>}, {transform_indices = @transform_5, window_bounds = array<i64: 1, 1, 384>}, {transform_indices = @transform_6, window_bounds = array<i64: 1, 128, 128>}, {transform_indices = @transform_7, window_bounds = array<i64: 1, 1, 128>}, {transform_indices = @transform_8, window_bounds = array<i64: 1, 128, 256>}, {transform_indices = @transform_9, window_bounds = array<i64: 1, 1, 256>}, {transform_indices = @transform_10, window_bounds = array<i64: 1, 256, 128>}, {transform_indices = @transform_11, window_bounds = array<i64: 1, 1, 128>}, {transform_indices = @transform_12, window_bounds = array<i64: 1, 1, 128>}, {transform_indices = @transform_13, window_bounds = array<i64: 1, 1, 128>}, {transform_indices = @transform_14, window_bounds = array<i64: 1, 1, 128>}, {transform_indices = @transform_15, window_bounds = array<i64: 1, 1, 128>}, {pipeline_mode = #tpu.pipeline_mode<synchronous>, transform_indices = @transform_16, window_bounds = array<i64: 1, 128>}, {pipeline_mode = #tpu.pipeline_mode<synchronous>, transform_indices = @transform_17, window_bounds = array<i64: 1, 1>}, {transform_indices = @transform_18, window_bounds = array<i64: 2, 16, 128>}, {transform_indices = @transform_19, window_bounds = array<i64: 2, 16>}, {transform_indices = @transform_20, window_bounds = array<i64: 2, 1>}, {transform_indices = @transform_21, window_bounds = array<i64: 2, 1>}]} {
    %c0_i32 = arith.constant 0 : i32
    %0 = arith.cmpi eq, %arg1, %c0_i32 : i32
    %1 = arith.extui %0 : i1 to i32
    %c0_i32_0 = arith.constant 0 : i32
    %2 = arith.cmpi ne, %1, %c0_i32_0 : i32
    scf.if %2 {
      %c0_71 = arith.constant 0 : index
      %c0_72 = arith.constant 0 : index
      %c0_73 = arith.constant 0 : index
      %143 = vector.load %arg2[%c0_71, %c0_72, %c0_73] : memref<2x16x128xf32, #tpu.memory_space<vmem>>, vector<2x16x128xf32>
      %c0_74 = arith.constant 0 : index
      %c0_75 = arith.constant 0 : index
      %c0_76 = arith.constant 0 : index
      %144 = vector.load %arg20[%c0_74, %c0_75, %c0_76] : memref<2x16x128xf32, #tpu.memory_space<vmem>>, vector<2x16x128xf32>
      tpu.vector_store %arg20[%c0_74, %c0_75, %c0_76], %143 {strides = array<i32>} : memref<2x16x128xf32, #tpu.memory_space<vmem>>, vector<2x16x128xf32>,
    } else {
    }
    %c0 = arith.constant 0 : index
    %c0_1 = arith.constant 0 : index
    %c0_2 = arith.constant 0 : index
    %3 = vector.load %arg20[%c0, %c0_1, %c0_2] : memref<2x16x128xf32, #tpu.memory_space<vmem>>, vector<2x16x128xf32>
    %4 = vector.shape_cast %3 : vector<2x16x128xf32> to vector<32x128xf32>
    %5 = arith.truncf %4 : vector<32x128xf32> to vector<32x128xbf16>
    %c0_3 = arith.constant 0 : index
    %c0_4 = arith.constant 0 : index
    %c0_5 = arith.constant 0 : index
    %6 = vector.load %arg6[%c0_3, %c0_4, %c0_5] : memref<1x128x384xbf16, #tpu.memory_space<vmem>>, vector<1x128x384xbf16>
    %7 = vector.shape_cast %6 : vector<1x128x384xbf16> to vector<128x384xbf16>
    %cst = arith.constant dense<0.000000e+00> : vector<32x384xf32>
    %8 = tpu.matmul %5, %7, %cst {dimension_numbers = #tpu.dot_dimension_numbers<[1], [0], [0], [1], [0, 0, 1, 1], [], []>} : vector<32x128xbf16>, vector<128x384xbf16>, vector<32x384xf32> -> vector<32x384xf32>
    %c0_6 = arith.constant 0 : index
    %c0_7 = arith.constant 0 : index
    %c0_8 = arith.constant 0 : index
    %9 = vector.load %arg7[%c0_6, %c0_7, %c0_8] : memref<1x1x384xf32, #tpu.memory_space<vmem>>, vector<1x1x384xf32>
    %10 = vector.shape_cast %9 : vector<1x1x384xf32> to vector<1x384xf32>
    %11 = vector.broadcast %10 : vector<1x384xf32> to vector<32x384xf32>
    %12 = arith.addf %8, %11 : vector<32x384xf32>
    %13 = vector.extract_strided_slice %12 {offsets = [0, 0], sizes = [32, 128], strides = [1, 1]} : vector<32x384xf32> to vector<32x128xf32>
    %14 = vector.shape_cast %13 : vector<32x128xf32> to vector<2x16x128xf32>
    %15 = arith.truncf %14 : vector<2x16x128xf32> to vector<2x16x128xbf16>
    %16 = vector.extract_strided_slice %12 {offsets = [0, 128], sizes = [32, 128], strides = [1, 1]} : vector<32x384xf32> to vector<32x128xf32>
    %17 = vector.shape_cast %16 : vector<32x128xf32> to vector<2x16x128xf32>
    %18 = arith.truncf %17 : vector<2x16x128xf32> to vector<2x16x128xbf16>
    %19 = vector.extract_strided_slice %12 {offsets = [0, 256], sizes = [32, 128], strides = [1, 1]} : vector<32x384xf32> to vector<32x128xf32>
    %20 = vector.shape_cast %19 : vector<32x128xf32> to vector<2x16x128xf32>
    %21 = arith.truncf %20 : vector<2x16x128xf32> to vector<2x16x128xbf16>
    %cst_9 = arith.constant 6.400000e+01 : f32
    %22 = math.sqrt %cst_9 : f32
    %cst_10 = arith.constant 1.000000e+00 : f32
    %23 = arith.divf %cst_10, %22 : f32
    "tpu.trace_start"() <{level = 10 : i32, message = "bqd,bkd->bqk"}> : () -> ()
    %cst_11 = arith.constant dense<0.000000e+00> : vector<2x16x16xf32>
    %24 = tpu.matmul %15, %18, %cst_11 {dimension_numbers = #tpu.dot_dimension_numbers<[2], [2], [1], [1], [0, 0, 0, 1, 1, 1], [0], [0]>} : vector<2x16x128xbf16>, vector<2x16x128xbf16>, vector<2x16x16xf32> -> vector<2x16x16xf32>
    "tpu.trace_stop"() : () -> ()
    %25 = vector.broadcast %23 : f32 to vector<2x16x16xf32>
    %26 = arith.mulf %24, %25 : vector<2x16x16xf32>
    %c0_12 = arith.constant 0 : index
    %c0_13 = arith.constant 0 : index
    %c0_14 = arith.constant 0 : index
    %27 = vector.load %arg3[%c0_12, %c0_13, %c0_14] : memref<2x16x16xbf16, #tpu.memory_space<vmem>>, vector<2x16x16xbf16>
    %28 = arith.extf %27 : vector<2x16x16xbf16> to vector<2x16x16xf32>
    %29 = arith.addf %26, %28 : vector<2x16x16xf32>
    %cst_15 = arith.constant dense<0xFF800000> : vector<2x16xf32>
    %30 = vector.multi_reduction <maximumf>, %29, %cst_15 [2] : vector<2x16x16xf32> to vector<2x16xf32>
    %31 = vector.shape_cast %30 : vector<2x16xf32> to vector<2x16x1xf32>
    %32 = vector.broadcast %31 : vector<2x16x1xf32> to vector<2x16x16xf32>
    %33 = arith.subf %29, %32 : vector<2x16x16xf32>
    %34 = math.exp %33 : vector<2x16x16xf32>
    %cst_16 = arith.constant dense<0.000000e+00> : vector<2x16xf32>
    %35 = vector.multi_reduction <add>, %34, %cst_16 [2] : vector<2x16x16xf32> to vector<2x16xf32>
    %36 = vector.shape_cast %35 : vector<2x16xf32> to vector<2x16x1xf32>
    %37 = tpu.reciprocal %36 {approx = true} : vector<2x16x1xf32> -> vector<2x16x1xf32>
    %38 = vector.broadcast %37 : vector<2x16x1xf32> to vector<2x16x16xf32>
    %39 = arith.mulf %34, %38 : vector<2x16x16xf32>
    %40 = arith.truncf %39 : vector<2x16x16xf32> to vector<2x16x16xbf16>
    "tpu.trace_start"() <{level = 10 : i32, message = "bqk,bkd->bqd"}> : () -> ()
    %cst_17 = arith.constant dense<0.000000e+00> : vector<2x16x128xf32>
    %41 = tpu.matmul %40, %21, %cst_17 {dimension_numbers = #tpu.dot_dimension_numbers<[2], [1], [1], [2], [0, 0, 0, 1, 1, 2], [0], [0]>} : vector<2x16x16xbf16>, vector<2x16x128xbf16>, vector<2x16x128xf32> -> vector<2x16x128xf32>
    "tpu.trace_stop"() : () -> ()
    %42 = vector.shape_cast %41 : vector<2x16x128xf32> to vector<32x128xf32>
    %43 = arith.truncf %42 : vector<32x128xf32> to vector<32x128xbf16>
    %c0_18 = arith.constant 0 : index
    %c0_19 = arith.constant 0 : index
    %c0_20 = arith.constant 0 : index
    %44 = vector.load %arg8[%c0_18, %c0_19, %c0_20] : memref<1x128x128xbf16, #tpu.memory_space<vmem>>, vector<1x128x128xbf16>
    %45 = vector.shape_cast %44 : vector<1x128x128xbf16> to vector<128x128xbf16>
    %cst_21 = arith.constant dense<0.000000e+00> : vector<32x128xf32>
    %46 = tpu.matmul %43, %45, %cst_21 {dimension_numbers = #tpu.dot_dimension_numbers<[1], [0], [0], [1], [0, 0, 1, 1], [], []>} : vector<32x128xbf16>, vector<128x128xbf16>, vector<32x128xf32> -> vector<32x128xf32>
    %c0_22 = arith.constant 0 : index
    %c0_23 = arith.constant 0 : index
    %c0_24 = arith.constant 0 : index
    %47 = vector.load %arg9[%c0_22, %c0_23, %c0_24] : memref<1x1x128xf32, #tpu.memory_space<vmem>>, vector<1x1x128xf32>
    %48 = vector.shape_cast %47 : vector<1x1x128xf32> to vector<1x128xf32>
    %49 = vector.broadcast %48 : vector<1x128xf32> to vector<32x128xf32>
    %50 = arith.addf %46, %49 : vector<32x128xf32>
    %51 = arith.addf %4, %50 : vector<32x128xf32>
    %c0_25 = arith.constant 0 : index
    %c0_26 = arith.constant 0 : index
    %c0_27 = arith.constant 0 : index
    %52 = vector.load %arg14[%c0_25, %c0_26, %c0_27] : memref<1x1x128xf32, #tpu.memory_space<vmem>>, vector<1x1x128xf32>
    %53 = vector.shape_cast %52 : vector<1x1x128xf32> to vector<1x128xf32>
    %c0_28 = arith.constant 0 : index
    %c0_29 = arith.constant 0 : index
    %c0_30 = arith.constant 0 : index
    %54 = vector.load %arg15[%c0_28, %c0_29, %c0_30] : memref<1x1x128xf32, #tpu.memory_space<vmem>>, vector<1x1x128xf32>
    %55 = vector.shape_cast %54 : vector<1x1x128xf32> to vector<1x128xf32>
    %cst_31 = arith.constant dense<0.000000e+00> : vector<32xf32>
    %56 = vector.multi_reduction <add>, %51, %cst_31 [1] : vector<32x128xf32> to vector<32xf32>
    %57 = vector.shape_cast %56 : vector<32xf32> to vector<32x1xf32>
    %cst_32 = arith.constant 1.562500e-02 : f32
    %58 = vector.broadcast %cst_32 : f32 to vector<32x1xf32>
    %59 = arith.mulf %57, %58 : vector<32x1xf32>
    %60 = arith.mulf %51, %51 : vector<32x128xf32>
    %cst_33 = arith.constant dense<0.000000e+00> : vector<32xf32>
    %61 = vector.multi_reduction <add>, %60, %cst_33 [1] : vector<32x128xf32> to vector<32xf32>
    %62 = vector.shape_cast %61 : vector<32xf32> to vector<32x1xf32>
    %cst_34 = arith.constant 1.562500e-02 : f32
    %63 = vector.broadcast %cst_34 : f32 to vector<32x1xf32>
    %64 = arith.mulf %62, %63 : vector<32x1xf32>
    %65 = arith.mulf %59, %59 : vector<32x1xf32>
    %66 = arith.subf %64, %65 : vector<32x1xf32>
    %cst_35 = arith.constant 0.000000e+00 : f32
    %67 = vector.broadcast %cst_35 : f32 to vector<32x1xf32>
    %68 = arith.maximumf %66, %67 : vector<32x1xf32>
    %69 = vector.broadcast %59 : vector<32x1xf32> to vector<32x128xf32>
    %70 = arith.subf %51, %69 : vector<32x128xf32>
    %cst_36 = arith.constant 9.99999974E-6 : f32
    %71 = vector.broadcast %cst_36 : f32 to vector<32x1xf32>
    %72 = arith.addf %68, %71 : vector<32x1xf32>
    %73 = math.rsqrt %72 : vector<32x1xf32>
    %74 = vector.broadcast %73 : vector<32x1xf32> to vector<32x128xf32>
    %75 = arith.mulf %70, %74 : vector<32x128xf32>
    %76 = vector.broadcast %53 : vector<1x128xf32> to vector<32x128xf32>
    %77 = arith.mulf %75, %76 : vector<32x128xf32>
    %78 = vector.broadcast %55 : vector<1x128xf32> to vector<32x128xf32>
    %79 = arith.addf %77, %78 : vector<32x128xf32>
    %80 = arith.truncf %79 : vector<32x128xf32> to vector<32x128xbf16>
    %c0_37 = arith.constant 0 : index
    %c0_38 = arith.constant 0 : index
    %c0_39 = arith.constant 0 : index
    %81 = vector.load %arg10[%c0_37, %c0_38, %c0_39] : memref<1x128x256xbf16, #tpu.memory_space<vmem>>, vector<1x128x256xbf16>
    %82 = vector.shape_cast %81 : vector<1x128x256xbf16> to vector<128x256xbf16>
    %cst_40 = arith.constant dense<0.000000e+00> : vector<32x256xf32>
    %83 = tpu.matmul %80, %82, %cst_40 {dimension_numbers = #tpu.dot_dimension_numbers<[1], [0], [0], [1], [0, 0, 1, 1], [], []>} : vector<32x128xbf16>, vector<128x256xbf16>, vector<32x256xf32> -> vector<32x256xf32>
    %c0_41 = arith.constant 0 : index
    %c0_42 = arith.constant 0 : index
    %c0_43 = arith.constant 0 : index
    %84 = vector.load %arg11[%c0_41, %c0_42, %c0_43] : memref<1x1x256xf32, #tpu.memory_space<vmem>>, vector<1x1x256xf32>
    %85 = vector.shape_cast %84 : vector<1x1x256xf32> to vector<1x256xf32>
    %86 = vector.broadcast %85 : vector<1x256xf32> to vector<32x256xf32>
    %87 = arith.addf %83, %86 : vector<32x256xf32>
    %88 = arith.mulf %87, %87 : vector<32x256xf32>
    %89 = arith.mulf %87, %88 : vector<32x256xf32>
    %cst_44 = arith.constant 4.471500e-02 : f32
    %90 = vector.broadcast %cst_44 : f32 to vector<32x256xf32>
    %91 = arith.mulf %90, %89 : vector<32x256xf32>
    %92 = arith.addf %87, %91 : vector<32x256xf32>
    %cst_45 = arith.constant 0.797884583 : f32
    %93 = vector.broadcast %cst_45 : f32 to vector<32x256xf32>
    %94 = arith.mulf %93, %92 : vector<32x256xf32>
    %95 = math.tanh %94 : vector<32x256xf32>
    %cst_46 = arith.constant 1.000000e+00 : f32
    %96 = vector.broadcast %cst_46 : f32 to vector<32x256xf32>
    %97 = arith.addf %96, %95 : vector<32x256xf32>
    %cst_47 = arith.constant 5.000000e-01 : f32
    %98 = vector.broadcast %cst_47 : f32 to vector<32x256xf32>
    %99 = arith.mulf %98, %97 : vector<32x256xf32>
    %100 = arith.mulf %87, %99 : vector<32x256xf32>
    %101 = arith.truncf %100 : vector<32x256xf32> to vector<32x256xbf16>
    %c0_48 = arith.constant 0 : index
    %c0_49 = arith.constant 0 : index
    %c0_50 = arith.constant 0 : index
    %102 = vector.load %arg12[%c0_48, %c0_49, %c0_50] : memref<1x256x128xbf16, #tpu.memory_space<vmem>>, vector<1x256x128xbf16>
    %103 = vector.shape_cast %102 : vector<1x256x128xbf16> to vector<256x128xbf16>
    %cst_51 = arith.constant dense<0.000000e+00> : vector<32x128xf32>
    %104 = tpu.matmul %101, %103, %cst_51 {dimension_numbers = #tpu.dot_dimension_numbers<[1], [0], [0], [1], [0, 0, 1, 1], [], []>} : vector<32x256xbf16>, vector<256x128xbf16>, vector<32x128xf32> -> vector<32x128xf32>
    %c0_52 = arith.constant 0 : index
    %c0_53 = arith.constant 0 : index
    %c0_54 = arith.constant 0 : index
    %105 = vector.load %arg13[%c0_52, %c0_53, %c0_54] : memref<1x1x128xf32, #tpu.memory_space<vmem>>, vector<1x1x128xf32>
    %106 = vector.shape_cast %105 : vector<1x1x128xf32> to vector<1x128xf32>
    %107 = vector.broadcast %106 : vector<1x128xf32> to vector<32x128xf32>
    %108 = arith.addf %104, %107 : vector<32x128xf32>
    %109 = arith.addf %79, %108 : vector<32x128xf32>
    %c0_55 = arith.constant 0 : index
    %c0_56 = arith.constant 0 : index
    %c0_57 = arith.constant 0 : index
    %110 = vector.load %arg16[%c0_55, %c0_56, %c0_57] : memref<1x1x128xf32, #tpu.memory_space<vmem>>, vector<1x1x128xf32>
    %111 = vector.shape_cast %110 : vector<1x1x128xf32> to vector<1x128xf32>
    %c0_58 = arith.constant 0 : index
    %c0_59 = arith.constant 0 : index
    %c0_60 = arith.constant 0 : index
    %112 = vector.load %arg17[%c0_58, %c0_59, %c0_60] : memref<1x1x128xf32, #tpu.memory_space<vmem>>, vector<1x1x128xf32>
    %113 = vector.shape_cast %112 : vector<1x1x128xf32> to vector<1x128xf32>
    %cst_61 = arith.constant dense<0.000000e+00> : vector<32xf32>
    %114 = vector.multi_reduction <add>, %109, %cst_61 [1] : vector<32x128xf32> to vector<32xf32>
    %115 = vector.shape_cast %114 : vector<32xf32> to vector<32x1xf32>
    %cst_62 = arith.constant 1.562500e-02 : f32
    %116 = vector.broadcast %cst_62 : f32 to vector<32x1xf32>
    %117 = arith.mulf %115, %116 : vector<32x1xf32>
    %118 = arith.mulf %109, %109 : vector<32x128xf32>
    %cst_63 = arith.constant dense<0.000000e+00> : vector<32xf32>
    %119 = vector.multi_reduction <add>, %118, %cst_63 [1] : vector<32x128xf32> to vector<32xf32>
    %120 = vector.shape_cast %119 : vector<32xf32> to vector<32x1xf32>
    %cst_64 = arith.constant 1.562500e-02 : f32
    %121 = vector.broadcast %cst_64 : f32 to vector<32x1xf32>
    %122 = arith.mulf %120, %121 : vector<32x1xf32>
    %123 = arith.mulf %117, %117 : vector<32x1xf32>
    %124 = arith.subf %122, %123 : vector<32x1xf32>
    %cst_65 = arith.constant 0.000000e+00 : f32
    %125 = vector.broadcast %cst_65 : f32 to vector<32x1xf32>
    %126 = arith.maximumf %124, %125 : vector<32x1xf32>
    %127 = vector.broadcast %117 : vector<32x1xf32> to vector<32x128xf32>
    %128 = arith.subf %109, %127 : vector<32x128xf32>
    %cst_66 = arith.constant 9.99999974E-6 : f32
    %129 = vector.broadcast %cst_66 : f32 to vector<32x1xf32>
    %130 = arith.addf %126, %129 : vector<32x1xf32>
    %131 = math.rsqrt %130 : vector<32x1xf32>
    %132 = vector.broadcast %131 : vector<32x1xf32> to vector<32x128xf32>
    %133 = arith.mulf %128, %132 : vector<32x128xf32>
    %134 = vector.broadcast %111 : vector<1x128xf32> to vector<32x128xf32>
    %135 = arith.mulf %133, %134 : vector<32x128xf32>
    %136 = vector.broadcast %113 : vector<1x128xf32> to vector<32x128xf32>
    %137 = arith.addf %135, %136 : vector<32x128xf32>
    %138 = vector.shape_cast %137 : vector<32x128xf32> to vector<2x16x128xf32>
    %c0_67 = arith.constant 0 : index
    %c0_68 = arith.constant 0 : index
    %c0_69 = arith.constant 0 : index
    %139 = vector.load %arg20[%c0_67, %c0_68, %c0_69] : memref<2x16x128xf32, #tpu.memory_space<vmem>>, vector<2x16x128xf32>
    tpu.vector_store %arg20[%c0_67, %c0_68, %c0_69], %138 {strides = array<i32>} : memref<2x16x128xf32, #tpu.memory_space<vmem>>, vector<2x16x128xf32>,
    %c1_i32 = arith.constant 1 : i32
    %140 = arith.cmpi eq, %arg1, %c1_i32 : i32
    %141 = arith.extui %140 : i1 to i32
    %c0_i32_70 = arith.constant 0 : i32
    %142 = arith.cmpi ne, %141, %c0_i32_70 : i32
    scf.if %142 {
      %c0_71 = arith.constant 0 : index
      %c0_72 = arith.constant 0 : index
      %143 = vector.load %arg18[%c0_71, %c0_72] : memref<1x128xf32, #tpu.memory_space<vmem>>, vector<1x128xf32>
      %144 = vector.shape_cast %143 : vector<1x128xf32> to vector<1x1x128xf32>
      %c0_73 = arith.constant 0 : index
      %c0_74 = arith.constant 0 : index
      %145 = vector.load %arg19[%c0_73, %c0_74] : memref<1x1xf32, #tpu.memory_space<vmem>>, vector<1x1xf32>
      %146 = vector.extract %145[0, 0] : f32 from vector<1x1xf32>
      %147 = vector.broadcast %144 : vector<1x1x128xf32> to vector<2x16x128xf32>
      %148 = arith.mulf %138, %147 : vector<2x16x128xf32>
      %cst_75 = arith.constant dense<0.000000e+00> : vector<2x16xf32>
      %149 = vector.multi_reduction <add>, %148, %cst_75 [2] : vector<2x16x128xf32> to vector<2x16xf32>
      %150 = vector.broadcast %146 : f32 to vector<2x16xf32>
      %151 = arith.addf %149, %150 : vector<2x16xf32>
      %c0_76 = arith.constant 0 : index
      %c0_77 = arith.constant 0 : index
      %152 = vector.load %arg4[%c0_76, %c0_77] : memref<2x16xf32, #tpu.memory_space<vmem>>, vector<2x16xf32>
      %cst_78 = arith.constant 0.000000e+00 : f32
      %153 = vector.broadcast %cst_78 : f32 to vector<2x16xf32>
      %154 = arith.cmpf ogt, %152, %153 : vector<2x16xf32>
      %cst_79 = arith.constant -1.000000e+09 : f32
      %155 = vector.broadcast %cst_79 : f32 to vector<2x16xf32>
      %156 = arith.select %154, %151, %155 : vector<2x16xi1>, vector<2x16xf32>
      %157 = tpu.iota {dimensions = array<i32: 1>} : vector<2x16xi32>
      %c8_i32 = arith.constant 8 : i32
      %158 = vector.broadcast %c8_i32 : i32 to vector<2x16xi32>
      %159 = arith.cmpi slt, %157, %158 : vector<2x16xi32>
      %cst_80 = arith.constant -1.000000e+09 : f32
      %160 = vector.broadcast %cst_80 : f32 to vector<2x16xf32>
      %161 = arith.select %159, %156, %160 : vector<2x16xi1>, vector<2x16xf32>
      %cst_81 = arith.constant dense<0xFF800000> : vector<2xf32>
      %162 = vector.multi_reduction <maximumf>, %161, %cst_81 [1] : vector<2x16xf32> to vector<2xf32>
      %163 = vector.shape_cast %162 : vector<2xf32> to vector<2x1xf32>
      %164 = vector.broadcast %163 : vector<2x1xf32> to vector<2x16xf32>
      %165 = arith.subf %161, %164 : vector<2x16xf32>
      %166 = math.exp %165 : vector<2x16xf32>
      %cst_82 = arith.constant 0.000000e+00 : f32
      %167 = vector.broadcast %cst_82 : f32 to vector<2x16xf32>
      %168 = arith.select %159, %166, %167 : vector<2x16xi1>, vector<2x16xf32>
      %cst_83 = arith.constant dense<0.000000e+00> : vector<2xf32>
      %169 = vector.multi_reduction <add>, %168, %cst_83 [1] : vector<2x16xf32> to vector<2xf32>
      %170 = vector.shape_cast %169 : vector<2xf32> to vector<2x1xf32>
      %171 = tpu.reciprocal %170 {approx = true} : vector<2x1xf32> -> vector<2x1xf32>
      %172 = vector.broadcast %171 : vector<2x1xf32> to vector<2x16xf32>
      %173 = arith.mulf %168, %172 : vector<2x16xf32>
      %cst_84 = arith.constant dense<true> : vector<2x16xi1>
      %174 = arith.xori %159, %cst_84 : vector<2x16xi1>
      %cst_85 = arith.constant -1.000000e+09 : f32
      %175 = vector.broadcast %cst_85 : f32 to vector<2x16xf32>
      %176 = arith.select %174, %156, %175 : vector<2x16xi1>, vector<2x16xf32>
      %cst_86 = arith.constant dense<0xFF800000> : vector<2xf32>
      %177 = vector.multi_reduction <maximumf>, %176, %cst_86 [1] : vector<2x16xf32> to vector<2xf32>
      %178 = vector.shape_cast %177 : vector<2xf32> to vector<2x1xf32>
      %179 = vector.broadcast %178 : vector<2x1xf32> to vector<2x16xf32>
      %180 = arith.subf %176, %179 : vector<2x16xf32>
      %181 = math.exp %180 : vector<2x16xf32>
      %cst_87 = arith.constant 0.000000e+00 : f32
      %182 = vector.broadcast %cst_87 : f32 to vector<2x16xf32>
      %183 = arith.select %174, %181, %182 : vector<2x16xi1>, vector<2x16xf32>
      %cst_88 = arith.constant dense<0.000000e+00> : vector<2xf32>
      %184 = vector.multi_reduction <add>, %183, %cst_88 [1] : vector<2x16xf32> to vector<2xf32>
      %185 = vector.shape_cast %184 : vector<2xf32> to vector<2x1xf32>
      %186 = tpu.reciprocal %185 {approx = true} : vector<2x1xf32> -> vector<2x1xf32>
      %187 = vector.broadcast %186 : vector<2x1xf32> to vector<2x16xf32>
      %188 = arith.mulf %183, %187 : vector<2x16xf32>
      %189 = arith.addf %173, %188 : vector<2x16xf32>
      %c0_89 = arith.constant 0 : index
      %c0_90 = arith.constant 0 : index
      %190 = vector.load %arg21[%c0_89, %c0_90] : memref<2x16xf32, #tpu.memory_space<vmem>>, vector<2x16xf32>
      tpu.vector_store %arg21[%c0_89, %c0_90], %189 {strides = array<i32>} : memref<2x16xf32, #tpu.memory_space<vmem>>, vector<2x16xf32>,
      %cst_91 = arith.constant 1.000000e-10 : f32
      %cst_92 = arith.constant 1.000000e+00 : f32
      %191 = vector.broadcast %cst_91 : f32 to vector<2x16xf32>
      %192 = arith.maximumf %191, %189 : vector<2x16xf32>
      %193 = vector.broadcast %cst_92 : f32 to vector<2x16xf32>
      %194 = arith.minimumf %193, %192 : vector<2x16xf32>
      %195 = math.log %194 : vector<2x16xf32>
      %cst_93 = arith.constant 0.000000e+00 : f32
      %196 = vector.broadcast %cst_93 : f32 to vector<2x16xf32>
      %197 = arith.subf %196, %195 : vector<2x16xf32>
      %c0_94 = arith.constant 0 : index
      %c0_95 = arith.constant 0 : index
      %198 = vector.load %arg5[%c0_94, %c0_95] : memref<2x16xf32, #tpu.memory_space<vmem>>, vector<2x16xf32>
      %199 = arith.mulf %197, %198 : vector<2x16xf32>
      %cst_96 = arith.constant 0.000000e+00 : f32
      %200 = vector.broadcast %cst_96 : f32 to vector<2x16xf32>
      %201 = arith.select %159, %199, %200 : vector<2x16xi1>, vector<2x16xf32>
      %cst_97 = arith.constant dense<0.000000e+00> : vector<2xf32>
      %202 = vector.multi_reduction <add>, %201, %cst_97 [1] : vector<2x16xf32> to vector<2xf32>
      %203 = vector.shape_cast %202 : vector<2xf32> to vector<2x1xf32>
      %c0_98 = arith.constant 0 : index
      %c0_99 = arith.constant 0 : index
      %204 = vector.load %arg22[%c0_98, %c0_99] : memref<2x1xf32, #tpu.memory_space<vmem>>, vector<2x1xf32>
      tpu.vector_store %arg22[%c0_98, %c0_99], %203 {strides = array<i32>} : memref<2x1xf32, #tpu.memory_space<vmem>>, vector<2x1xf32>,
      %cst_100 = arith.constant 0.000000e+00 : f32
      %205 = vector.broadcast %cst_100 : f32 to vector<2x16xf32>
      %206 = arith.select %159, %205, %199 : vector<2x16xi1>, vector<2x16xf32>
      %cst_101 = arith.constant dense<0.000000e+00> : vector<2xf32>
      %207 = vector.multi_reduction <add>, %206, %cst_101 [1] : vector<2x16xf32> to vector<2xf32>
      %208 = vector.shape_cast %207 : vector<2xf32> to vector<2x1xf32>
      %c0_102 = arith.constant 0 : index
      %c0_103 = arith.constant 0 : index
      %209 = vector.load %arg23[%c0_102, %c0_103] : memref<2x1xf32, #tpu.memory_space<vmem>>, vector<2x1xf32>
      tpu.vector_store %arg23[%c0_102, %c0_103], %208 {strides = array<i32>} : memref<2x1xf32, #tpu.memory_space<vmem>>, vector<2x1xf32>,
    } else {
    }
    return
  }
  func.func @transform_0(%arg0: i32, %arg1: i32) -> (i32, i32, i32) {
    %c0_i32 = arith.constant 0 : i32
    %c0_i32_0 = arith.constant 0 : i32
    %c0_i32_1 = arith.constant 0 : i32
    return %arg0, %c0_i32, %c0_i32_0 : i32, i32, i32
  }
  func.func @transform_1(%arg0: i32, %arg1: i32) -> (i32, i32, i32) {
    %c0_i32 = arith.constant 0 : i32
    %c0_i32_0 = arith.constant 0 : i32
    %c0_i32_1 = arith.constant 0 : i32
    return %arg0, %c0_i32, %c0_i32_0 : i32, i32, i32
  }
  func.func @transform_2(%arg0: i32, %arg1: i32) -> (i32, i32) {
    %c0_i32 = arith.constant 0 : i32
    %c0_i32_0 = arith.constant 0 : i32
    return %arg0, %c0_i32 : i32, i32
  }
  func.func @transform_3(%arg0: i32, %arg1: i32) -> (i32, i32) {
    %c0_i32 = arith.constant 0 : i32
    %c0_i32_0 = arith.constant 0 : i32
    return %arg0, %c0_i32 : i32, i32
  }
  func.func @transform_4(%arg0: i32, %arg1: i32) -> (i32, i32, i32) {
    %c0_i32 = arith.constant 0 : i32
    %c0_i32_0 = arith.constant 0 : i32
    %c0_i32_1 = arith.constant 0 : i32
    return %arg1, %c0_i32, %c0_i32_0 : i32, i32, i32
  }
  func.func @transform_5(%arg0: i32, %arg1: i32) -> (i32, i32, i32) {
    %c0_i32 = arith.constant 0 : i32
    %c0_i32_0 = arith.constant 0 : i32
    %c0_i32_1 = arith.constant 0 : i32
    return %arg1, %c0_i32, %c0_i32_0 : i32, i32, i32
  }
  func.func @transform_6(%arg0: i32, %arg1: i32) -> (i32, i32, i32) {
    %c0_i32 = arith.constant 0 : i32
    %c0_i32_0 = arith.constant 0 : i32
    %c0_i32_1 = arith.constant 0 : i32
    return %arg1, %c0_i32, %c0_i32_0 : i32, i32, i32
  }
  func.func @transform_7(%arg0: i32, %arg1: i32) -> (i32, i32, i32) {
    %c0_i32 = arith.constant 0 : i32
    %c0_i32_0 = arith.constant 0 : i32
    %c0_i32_1 = arith.constant 0 : i32
    return %arg1, %c0_i32, %c0_i32_0 : i32, i32, i32
  }
  func.func @transform_8(%arg0: i32, %arg1: i32) -> (i32, i32, i32) {
    %c0_i32 = arith.constant 0 : i32
    %c0_i32_0 = arith.constant 0 : i32
    %c0_i32_1 = arith.constant 0 : i32
    return %arg1, %c0_i32, %c0_i32_0 : i32, i32, i32
  }
  func.func @transform_9(%arg0: i32, %arg1: i32) -> (i32, i32, i32) {
    %c0_i32 = arith.constant 0 : i32
    %c0_i32_0 = arith.constant 0 : i32
    %c0_i32_1 = arith.constant 0 : i32
    return %arg1, %c0_i32, %c0_i32_0 : i32, i32, i32
  }
  func.func @transform_10(%arg0: i32, %arg1: i32) -> (i32, i32, i32) {
    %c0_i32 = arith.constant 0 : i32
    %c0_i32_0 = arith.constant 0 : i32
    %c0_i32_1 = arith.constant 0 : i32
    return %arg1, %c0_i32, %c0_i32_0 : i32, i32, i32
  }
  func.func @transform_11(%arg0: i32, %arg1: i32) -> (i32, i32, i32) {
    %c0_i32 = arith.constant 0 : i32
    %c0_i32_0 = arith.constant 0 : i32
    %c0_i32_1 = arith.constant 0 : i32
    return %arg1, %c0_i32, %c0_i32_0 : i32, i32, i32
  }
  func.func @transform_12(%arg0: i32, %arg1: i32) -> (i32, i32, i32) {
    %c0_i32 = arith.constant 0 : i32
    %c0_i32_0 = arith.constant 0 : i32
    %c0_i32_1 = arith.constant 0 : i32
    return %arg1, %c0_i32, %c0_i32_0 : i32, i32, i32
  }
  func.func @transform_13(%arg0: i32, %arg1: i32) -> (i32, i32, i32) {
    %c0_i32 = arith.constant 0 : i32
    %c0_i32_0 = arith.constant 0 : i32
    %c0_i32_1 = arith.constant 0 : i32
    return %arg1, %c0_i32, %c0_i32_0 : i32, i32, i32
  }
  func.func @transform_14(%arg0: i32, %arg1: i32) -> (i32, i32, i32) {
    %c0_i32 = arith.constant 0 : i32
    %c0_i32_0 = arith.constant 0 : i32
    %c0_i32_1 = arith.constant 0 : i32
    return %arg1, %c0_i32, %c0_i32_0 : i32, i32, i32
  }
  func.func @transform_15(%arg0: i32, %arg1: i32) -> (i32, i32, i32) {
    %c0_i32 = arith.constant 0 : i32
    %c0_i32_0 = arith.constant 0 : i32
    %c0_i32_1 = arith.constant 0 : i32
    return %arg1, %c0_i32, %c0_i32_0 : i32, i32, i32
  }
  func.func @transform_16(%arg0: i32, %arg1: i32) -> (i32, i32) {
    %c0_i32 = arith.constant 0 : i32
    %c0_i32_0 = arith.constant 0 : i32
    %c0_i32_1 = arith.constant 0 : i32
    return %c0_i32, %c0_i32_0 : i32, i32
  }
  func.func @transform_17(%arg0: i32, %arg1: i32) -> (i32, i32) {
    %c0_i32 = arith.constant 0 : i32
    %c0_i32_0 = arith.constant 0 : i32
    %c0_i32_1 = arith.constant 0 : i32
    return %c0_i32, %c0_i32_0 : i32, i32
  }
  func.func @transform_18(%arg0: i32, %arg1: i32) -> (i32, i32, i32) {
    %c0_i32 = arith.constant 0 : i32
    %c0_i32_0 = arith.constant 0 : i32
    %c0_i32_1 = arith.constant 0 : i32
    return %arg0, %c0_i32, %c0_i32_0 : i32, i32, i32
  }
  func.func @transform_19(%arg0: i32, %arg1: i32) -> (i32, i32) {
    %c0_i32 = arith.constant 0 : i32
    %c0_i32_0 = arith.constant 0 : i32
    return %arg0, %c0_i32 : i32, i32
  }
  func.func @transform_20(%arg0: i32, %arg1: i32) -> (i32, i32) {
    %c0_i32 = arith.constant 0 : i32
    %c0_i32_0 = arith.constant 0 : i32
    return %arg0, %c0_i32 : i32, i32
  }
  func.func @transform_21(%arg0: i32, %arg1: i32) -> (i32, i32) {
    %c0_i32 = arith.constant 0 : i32
    %c0_i32_0 = arith.constant 0 : i32
    return %arg0, %c0_i32 : i32, i32
  }
}

</mosaic_0001>

<llo_original>
// kernel: nl_encoder_all_forward.1
$region0: #{nl_encoder_all_forward.1}
  #allocation0 [shape = 'u32[]', space=smem, size = 0x4, offset = 0x4, fixed_abs, tag = 'smem constant byte address 0x4 - core index']
  #allocation1 [shape = 'u32[144,128]{1,0:T(1,128)}', space=vmem, size = 0x12000, scoped, tag = 'internal scratch']
  #allocation2 [shape = 'f32[1,1]{1,0:T(1,128)S(1)}', space=vmem, size = 0x200, scoped, tag = 'scoped memory for nl_encoder_all_forward.1']
  %s0 = inlined_call_operand.vmem [shape: f32[2,16,128], index: 0, kind: input, shape index: {}]
  %s1 = inlined_call_operand.vmem [shape: bf16[2,16,16], index: 1, kind: input, shape index: {}]
  %s2 = inlined_call_operand.vmem [shape: f32[2,16], index: 2, kind: input, shape index: {}]
  %s3 = inlined_call_operand.vmem [shape: f32[2,16], index: 3, kind: input, shape index: {}]
  %s4 = inlined_call_operand.vmem [shape: bf16[2,128,384], index: 4, kind: input, shape index: {}]
  %s5 = inlined_call_operand.vmem [shape: f32[2,1,384], index: 5, kind: input, shape index: {}]
  %s6 = inlined_call_operand.vmem [shape: bf16[2,128,128], index: 6, kind: input, shape index: {}]
  %s7 = inlined_call_operand.hbm [shape: f32[2,1,128], index: 7, kind: input, shape index: {}]
  %s8 = inlined_call_operand.hbm [shape: bf16[2,128,256], index: 8, kind: input, shape index: {}]
  %s9 = inlined_call_operand.hbm [shape: f32[2,1,256], index: 9, kind: input, shape index: {}]
  %s10 = inlined_call_operand.hbm [shape: bf16[2,256,128], index: 10, kind: input, shape index: {}]
  %s11 = inlined_call_operand.hbm [shape: f32[2,1,128], index: 11, kind: input, shape index: {}]
  %s12 = inlined_call_operand.vmem [shape: f32[2,1,128], index: 12, kind: input, shape index: {}, may-alias: {12,14}]
  %s13 = inlined_call_operand.vmem [shape: f32[2,1,128], index: 13, kind: input, shape index: {}, may-alias: {13,15}]
  %s14 = inlined_call_operand.vmem [shape: f32[2,1,128], index: 14, kind: input, shape index: {}, may-alias: {12,14}]
  %s15 = inlined_call_operand.vmem [shape: f32[2,1,128], index: 15, kind: input, shape index: {}, may-alias: {13,15}]
  %s16 = inlined_call_operand.hbm [shape: f32[1,128], index: 16, kind: input, shape index: {}]
  %s17 = inlined_call_operand.<no memory space> [shape: f32[1,1], index: 17, kind: input, shape index: {}]
  %s18 = inlined_call_operand.vmem [shape: f32[2,16,128], index: 18, kind: output, shape index: {0}]
  %s19 = inlined_call_operand.vmem [shape: f32[2,16], index: 19, kind: output, shape index: {1}]
  %s20 = inlined_call_operand.vmem [shape: f32[2,1], index: 20, kind: output, shape index: {2}]
  %s21 = inlined_call_operand.vmem [shape: f32[2,1], index: 21, kind: output, shape index: {3}]
  %22 = xla_tuple %s18, %s19, %s20, %s21
  %s23 = sld [smem:[#allocation0]]
  $region161: #{nl_encoder_all_forward.1} parent=0
    _
  %s25 = ssub.s32 1, %s23
  %s26 = scalar_select 0, %s25, %s23
  %v27 = vstv %s17
  %28 = vst [vmem:[#allocation2] sm:$0x1] %v27
  $region1: #{nl_encoder_all_forward.1} parent=0
    #allocation3 [shape = 'u8[1024]{0}', space=vmem, size = 0x400, scoped, tag = 'input window, operand 7']
    #allocation4 [shape = 's32[2]{0}', space=sflag, size = 0x8, scoped, tag = 'scoped memory for nl_encoder_all_forward.1']
    #allocation5 [shape = 'u8[131072]{0}', space=vmem, size = 0x20000, scoped, tag = 'input window, operand 8']
    #allocation6 [shape = 's32[2]{0}', space=sflag, size = 0x8, scoped, tag = 'scoped memory for nl_encoder_all_forward.1']
    #allocation7 [shape = 'u8[2048]{0}', space=vmem, size = 0x800, scoped, tag = 'input window, operand 9']
    #allocation8 [shape = 'u8[131072]{0}', space=vmem, size = 0x20000, scoped, tag = 'input window, operand 10']
    #allocation9 [shape = 's32[2]{0}', space=sflag, size = 0x8, scoped, tag = 'scoped memory for nl_encoder_all_forward.1']
    #allocation10 [shape = 'u8[1024]{0}', space=vmem, size = 0x400, scoped, tag = 'input window, operand 11']
    #allocation11 [shape = 'u8[512]{0}', space=vmem, size = 0x400, scoped, tag = 'input window, operand 16, single buffered']
    #allocation12 [shape = 's32[1]{0}', space=sflag, size = 0x4, scoped, tag = 'scoped memory for nl_encoder_all_forward.1']
    %29 = vsyncpa [#allocation4], 0
    %s30 = scalar_lea.sflag [#allocation4], 1
    %31 = vsyncpa %s30, 0
    %32 = vsyncpa [#allocation6], 0
    %s33 = scalar_lea.sflag [#allocation6], 1
    %34 = vsyncpa %s33, 0
    %35 = vsyncpa [#allocation9], 0
    %s36 = scalar_lea.sflag [#allocation9], 1
    %37 = vsyncpa %s36, 0
    %38 = vsyncpa [#allocation12], 0
    loop: start=0, step=1, limit=4
    $region2: #{nl_encoder_all_forward.1} parent=1 // loop_pre_header
      _
    $region3: #{nl_encoder_all_forward.1} parent=1 // loop_header
      %s40 = sphi 0, %s44
      %p41 = scmp.ge.s32.totalorder %s40, 4
      %s47 = sphi 0, %s59
      %s48 = sphi 0, %s55
      %s49 = sphi 0, %s47
      %s50 = sphi 0, %s48
      %s51 = sphi 0, %s49
      %s52 = sphi 0, %s50
      %s62 = sphi 0, %s64
      %s65 = sphi 0, %s62
      %s66 = sphi 0, %s65
      %s82 = sphi 0, %s66
      %s88 = sphi 0, %s90
      %s91 = sphi 0, %s88
      %s92 = sphi 0, %s91
      %s108 = sphi 0, %s92
      %s114 = sphi 0, %s116
      %s117 = sphi 0, %s114
      %s118 = sphi 0, %s117
      %s134 = sphi 0, %s118
      %s140 = sphi 0, %s142
      %s143 = sphi 0, %s140
      %s144 = sphi 0, %s143
      %s160 = sphi 0, %s144
      %s166 = sphi 0, %s168
      %s169 = sphi 0, %s166
      %s170 = sphi 0, %s169
      %s186 = sphi 0, %s170
      %s192 = sphi 0, %s194
      %s195 = sphi 0, %s192
      %s196 = sphi 0, %s195
      %s212 = sphi 0, %s196
      %s218 = sphi 0, %s220
      %s221 = sphi 0, %s218
      %s222 = sphi 0, %s221
      %s238 = sphi 0, %s222
      %s244 = sphi 0, %s246
      %s247 = sphi 0, %s244
      %s248 = sphi 0, %s247
      %s264 = sphi 0, %s248
      %s270 = sphi 0, %s272
      %s273 = sphi 0, %s270
      %s274 = sphi 0, %s273
      %s290 = sphi 0, %s274
      %s296 = sphi 0, %s298
      %s299 = sphi 0, %s296
      %s300 = sphi 0, %s299
      %s316 = sphi 0, %s300
      %s322 = sphi 0, %s324
      %s325 = sphi 0, %s322
      %s326 = sphi 0, %s325
      %s342 = sphi 0, %s326
      %s348 = sphi 0, %s350
      %s351 = sphi 0, %s348
      %s352 = sphi 0, %s351
      %s368 = sphi 0, %s352
      %s374 = sphi 0, %s376
      %s377 = sphi 0, %s374
      %s378 = sphi 0, %s377
      %s394 = sphi 0, %s378
      %s400 = sphi 0, %s402
      %s403 = sphi 0, %s400
      %s404 = sphi 0, %s403
      %s420 = sphi 0, %s404
      %s426 = sphi 0, %s428
      %s429 = sphi 0, %s426
      %s430 = sphi 0, %s429
      %s446 = sphi 0, %s430
      %s452 = sphi 0, %s454
      %s455 = sphi 0, %s452
      %s456 = sphi 0, %s455
      %s472 = sphi 0, %s456
      %s476 = sphi 0, %s476
      %s478 = sphi 0, %s476
      %s479 = sphi 0, %s478
      %s493 = sphi 0, %s479
      %s497 = sphi 0, %s497
      %s499 = sphi 0, %s497
      %s500 = sphi 0, %s499
      %s514 = sphi 0, %s500
      %s520 = sphi 0, %s522
      %s523 = sphi 0, %s520
      %s524 = sphi 0, %s523
      %s540 = sphi 0, %s524
      %s546 = sphi 0, %s548
      %s549 = sphi 0, %s546
      %s550 = sphi 0, %s549
      %s566 = sphi 0, %s550
      %s572 = sphi 0, %s574
      %s575 = sphi 0, %s572
      %s576 = sphi 0, %s575
      %s592 = sphi 0, %s576
      %s598 = sphi 0, %s600
      %s601 = sphi 0, %s598
      %s602 = sphi 0, %s601
      %s618 = sphi 0, %s602
    $region4: #{nl_encoder_all_forward.1} parent=1 // loop_header_branch
      %43 = sbr.rel (%p41) target = $region8
    $region5: #{nl_encoder_all_forward.1} parent=1 // loop_body
      %s45 = ssub.s32 %s40, 1
      %s46 = ssub.s32 %s40, 2
      %s53 = sadd.s32 1, %s48
      %p54 = scmp.ge.s32.totalorder %s53, 2
      %s55 = scalar_select %p54, 0, %s53
      %s56 = sadd.s32 1, %s47
      %s57 = scalar_select %p54, %s56, %s47
      %p58 = scmp.ge.s32.totalorder %s57, 1
      %s59 = scalar_select %p58, 0, %s57
      %s60 = ssub.s32 %s47, %s59
      %p61 = scmp.eq.s32.totalorder %s60, 0
      %s63 = sadd.s32 %s62, 1
      %s64 = scalar_select %p61, %s62, %s63
      %p67 = pneg %p61
      %p68 = scmp.eq.s32.totalorder %s40, 1
      %p69 = por %p67, %p68
      %p70 = scmp.ne.s32.totalorder %s62, %s65
      %p71 = scmp.eq.s32.totalorder %s40, 0
      %p72 = por %p70, %p71
      %p73 = scmp.ne.s32.totalorder %s62, %s65
      %p74 = scmp.eq.s32.totalorder %s45, 1
      %p75 = por %p73, %p74
      %p76 = scmp.ne.s32.totalorder %s65, %s66
      %p77 = scmp.eq.s32.totalorder %s45, 0
      %p78 = por %p76, %p77
      %p79 = scmp.ne.s32.totalorder %s65, %s66
      %p80 = scmp.eq.s32.totalorder %s46, 1
      %p81 = por %p79, %p80
      %p83 = scmp.ne.s32.totalorder %s66, %s82
      %p84 = scmp.eq.s32.totalorder %s46, 0
      %p85 = por %p83, %p84
      %s86 = ssub.s32 %s47, %s59
      %p87 = scmp.eq.s32.totalorder %s86, 0
      %s89 = sadd.s32 %s88, 1
      %s90 = scalar_select %p87, %s88, %s89
      %p93 = pneg %p87
      %p94 = scmp.eq.s32.totalorder %s40, 1
      %p95 = por %p93, %p94
      %p96 = scmp.ne.s32.totalorder %s88, %s91
      %p97 = scmp.eq.s32.totalorder %s40, 0
      %p98 = por %p96, %p97
      %p99 = scmp.ne.s32.totalorder %s88, %s91
      %p100 = scmp.eq.s32.totalorder %s45, 1
      %p101 = por %p99, %p100
      %p102 = scmp.ne.s32.totalorder %s91, %s92
      %p103 = scmp.eq.s32.totalorder %s45, 0
      %p104 = por %p102, %p103
      %p105 = scmp.ne.s32.totalorder %s91, %s92
      %p106 = scmp.eq.s32.totalorder %s46, 1
      %p107 = por %p105, %p106
      %p109 = scmp.ne.s32.totalorder %s92, %s108
      %p110 = scmp.eq.s32.totalorder %s46, 0
      %p111 = por %p109, %p110
      %s112 = ssub.s32 %s47, %s59
      %p113 = scmp.eq.s32.totalorder %s112, 0
      %s115 = sadd.s32 %s114, 1
      %s116 = scalar_select %p113, %s114, %s115
      %p119 = pneg %p113
      %p120 = scmp.eq.s32.totalorder %s40, 1
      %p121 = por %p119, %p120
      %p122 = scmp.ne.s32.totalorder %s114, %s117
      %p123 = scmp.eq.s32.totalorder %s40, 0
      %p124 = por %p122, %p123
      %p125 = scmp.ne.s32.totalorder %s114, %s117
      %p126 = scmp.eq.s32.totalorder %s45, 1
      %p127 = por %p125, %p126
      %p128 = scmp.ne.s32.totalorder %s117, %s118
      %p129 = scmp.eq.s32.totalorder %s45, 0
      %p130 = por %p128, %p129
      %p131 = scmp.ne.s32.totalorder %s117, %s118
      %p132 = scmp.eq.s32.totalorder %s46, 1
      %p133 = por %p131, %p132
      %p135 = scmp.ne.s32.totalorder %s118, %s134
      %p136 = scmp.eq.s32.totalorder %s46, 0
      %p137 = por %p135, %p136
      %s138 = ssub.s32 %s47, %s59
      %p139 = scmp.eq.s32.totalorder %s138, 0
      %s141 = sadd.s32 %s140, 1
      %s142 = scalar_select %p139, %s140, %s141
      %p145 = pneg %p139
      %p146 = scmp.eq.s32.totalorder %s40, 1
      %p147 = por %p145, %p146
      %p148 = scmp.ne.s32.totalorder %s140, %s143
      %p149 = scmp.eq.s32.totalorder %s40, 0
      %p150 = por %p148, %p149
      %p151 = scmp.ne.s32.totalorder %s140, %s143
      %p152 = scmp.eq.s32.totalorder %s45, 1
      %p153 = por %p151, %p152
      %p154 = scmp.ne.s32.totalorder %s143, %s144
      %p155 = scmp.eq.s32.totalorder %s45, 0
      %p156 = por %p154, %p155
      %p157 = scmp.ne.s32.totalorder %s143, %s144
      %p158 = scmp.eq.s32.totalorder %s46, 1
      %p159 = por %p157, %p158
      %p161 = scmp.ne.s32.totalorder %s144, %s160
      %p162 = scmp.eq.s32.totalorder %s46, 0
      %p163 = por %p161, %p162
      %s164 = ssub.s32 %s48, %s55
      %p165 = scmp.eq.s32.totalorder %s164, 0
      %s167 = sadd.s32 %s166, 1
      %s168 = scalar_select %p165, %s166, %s167
      %p171 = pneg %p165
      %p172 = scmp.eq.s32.totalorder %s40, 1
      %p173 = por %p171, %p172
      %p174 = scmp.ne.s32.totalorder %s166, %s169
      %p175 = scmp.eq.s32.totalorder %s40, 0
      %p176 = por %p174, %p175
      %p177 = scmp.ne.s32.totalorder %s166, %s169
      %p178 = scmp.eq.s32.totalorder %s45, 1
      %p179 = por %p177, %p178
      %p180 = scmp.ne.s32.totalorder %s169, %s170
      %p181 = scmp.eq.s32.totalorder %s45, 0
      %p182 = por %p180, %p181
      %p183 = scmp.ne.s32.totalorder %s169, %s170
      %p184 = scmp.eq.s32.totalorder %s46, 1
      %p185 = por %p183, %p184
      %p187 = scmp.ne.s32.totalorder %s170, %s186
      %p188 = scmp.eq.s32.totalorder %s46, 0
      %p189 = por %p187, %p188
      %s190 = ssub.s32 %s48, %s55
      %p191 = scmp.eq.s32.totalorder %s190, 0
      %s193 = sadd.s32 %s192, 1
      %s194 = scalar_select %p191, %s192, %s193
      %p197 = pneg %p191
      %p198 = scmp.eq.s32.totalorder %s40, 1
      %p199 = por %p197, %p198
      %p200 = scmp.ne.s32.totalorder %s192, %s195
      %p201 = scmp.eq.s32.totalorder %s40, 0
      %p202 = por %p200, %p201
      %p203 = scmp.ne.s32.totalorder %s192, %s195
      %p204 = scmp.eq.s32.totalorder %s45, 1
      %p205 = por %p203, %p204
      %p206 = scmp.ne.s32.totalorder %s195, %s196
      %p207 = scmp.eq.s32.totalorder %s45, 0
      %p208 = por %p206, %p207
      %p209 = scmp.ne.s32.totalorder %s195, %s196
      %p210 = scmp.eq.s32.totalorder %s46, 1
      %p211 = por %p209, %p210
      %p213 = scmp.ne.s32.totalorder %s196, %s212
      %p214 = scmp.eq.s32.totalorder %s46, 0
      %p215 = por %p213, %p214
      %s216 = ssub.s32 %s48, %s55
      %p217 = scmp.eq.s32.totalorder %s216, 0
      %s219 = sadd.s32 %s218, 1
      %s220 = scalar_select %p217, %s218, %s219
      %p223 = pneg %p217
      %p224 = scmp.eq.s32.totalorder %s40, 1
      %p225 = por %p223, %p224
      %p226 = scmp.ne.s32.totalorder %s218, %s221
      %p227 = scmp.eq.s32.totalorder %s40, 0
      %p228 = por %p226, %p227
      %p229 = scmp.ne.s32.totalorder %s218, %s221
      %p230 = scmp.eq.s32.totalorder %s45, 1
      %p231 = por %p229, %p230
      %p232 = scmp.ne.s32.totalorder %s221, %s222
      %p233 = scmp.eq.s32.totalorder %s45, 0
      %p234 = por %p232, %p233
      %p235 = scmp.ne.s32.totalorder %s221, %s222
      %p236 = scmp.eq.s32.totalorder %s46, 1
      %p237 = por %p235, %p236
      %p239 = scmp.ne.s32.totalorder %s222, %s238
      %p240 = scmp.eq.s32.totalorder %s46, 0
      %p241 = por %p239, %p240
      %s242 = ssub.s32 %s48, %s55
      %p243 = scmp.eq.s32.totalorder %s242, 0
      %s245 = sadd.s32 %s244, 1
      %s246 = scalar_select %p243, %s244, %s245
      %p249 = pneg %p243
      %p250 = scmp.eq.s32.totalorder %s40, 1
      %p251 = por %p249, %p250
      %p252 = scmp.ne.s32.totalorder %s244, %s247
      %p253 = scmp.eq.s32.totalorder %s40, 0
      %p254 = por %p252, %p253
      %p255 = scmp.ne.s32.totalorder %s244, %s247
      %p256 = scmp.eq.s32.totalorder %s45, 1
      %p257 = por %p255, %p256
      %p258 = scmp.ne.s32.totalorder %s247, %s248
      %p259 = scmp.eq.s32.totalorder %s45, 0
      %p260 = por %p258, %p259
      %p261 = scmp.ne.s32.totalorder %s247, %s248
      %p262 = scmp.eq.s32.totalorder %s46, 1
      %p263 = por %p261, %p262
      %p265 = scmp.ne.s32.totalorder %s248, %s264
      %p266 = scmp.eq.s32.totalorder %s46, 0
      %p267 = por %p265, %p266
      %s268 = ssub.s32 %s48, %s55
      %p269 = scmp.eq.s32.totalorder %s268, 0
      %s271 = sadd.s32 %s270, 1
      %s272 = scalar_select %p269, %s270, %s271
      %p275 = pneg %p269
      %p276 = scmp.eq.s32.totalorder %s40, 1
      %p277 = por %p275, %p276
      %p278 = scmp.ne.s32.totalorder %s270, %s273
      %p279 = scmp.eq.s32.totalorder %s40, 0
      %p280 = por %p278, %p279
      %p281 = scmp.ne.s32.totalorder %s270, %s273
      %p282 = scmp.eq.s32.totalorder %s45, 1
      %p283 = por %p281, %p282
      %p284 = scmp.ne.s32.totalorder %s273, %s274
      %p285 = scmp.eq.s32.totalorder %s45, 0
      %p286 = por %p284, %p285
      %p287 = scmp.ne.s32.totalorder %s273, %s274
      %p288 = scmp.eq.s32.totalorder %s46, 1
      %p289 = por %p287, %p288
      %p291 = scmp.ne.s32.totalorder %s274, %s290
      %p292 = scmp.eq.s32.totalorder %s46, 0
      %p293 = por %p291, %p292
      %s294 = ssub.s32 %s48, %s55
      %p295 = scmp.eq.s32.totalorder %s294, 0
      %s297 = sadd.s32 %s296, 1
      %s298 = scalar_select %p295, %s296, %s297
      %p301 = pneg %p295
      %p302 = scmp.eq.s32.totalorder %s40, 1
      %p303 = por %p301, %p302
      %p304 = scmp.ne.s32.totalorder %s296, %s299
      %p305 = scmp.eq.s32.totalorder %s40, 0
      %p306 = por %p304, %p305
      %p307 = scmp.ne.s32.totalorder %s296, %s299
      %p308 = scmp.eq.s32.totalorder %s45, 1
      %p309 = por %p307, %p308
      %p310 = scmp.ne.s32.totalorder %s299, %s300
      %p311 = scmp.eq.s32.totalorder %s45, 0
      %p312 = por %p310, %p311
      %p313 = scmp.ne.s32.totalorder %s299, %s300
      %p314 = scmp.eq.s32.totalorder %s46, 1
      %p315 = por %p313, %p314
      %p317 = scmp.ne.s32.totalorder %s300, %s316
      %p318 = scmp.eq.s32.totalorder %s46, 0
      %p319 = por %p317, %p318
      %s320 = ssub.s32 %s48, %s55
      %p321 = scmp.eq.s32.totalorder %s320, 0
      %s323 = sadd.s32 %s322, 1
      %s324 = scalar_select %p321, %s322, %s323
      %p327 = pneg %p321
      %p328 = scmp.eq.s32.totalorder %s40, 1
      %p329 = por %p327, %p328
      %p330 = scmp.ne.s32.totalorder %s322, %s325
      %p331 = scmp.eq.s32.totalorder %s40, 0
      %p332 = por %p330, %p331
      %p333 = scmp.ne.s32.totalorder %s322, %s325
      %p334 = scmp.eq.s32.totalorder %s45, 1
      %p335 = por %p333, %p334
      %p336 = scmp.ne.s32.totalorder %s325, %s326
      %p337 = scmp.eq.s32.totalorder %s45, 0
      %p338 = por %p336, %p337
      %p339 = scmp.ne.s32.totalorder %s325, %s326
      %p340 = scmp.eq.s32.totalorder %s46, 1
      %p341 = por %p339, %p340
      %p343 = scmp.ne.s32.totalorder %s326, %s342
      %p344 = scmp.eq.s32.totalorder %s46, 0
      %p345 = por %p343, %p344
      %s346 = ssub.s32 %s48, %s55
      %p347 = scmp.eq.s32.totalorder %s346, 0
      %s349 = sadd.s32 %s348, 1
      %s350 = scalar_select %p347, %s348, %s349
      %p353 = pneg %p347
      %p354 = scmp.eq.s32.totalorder %s40, 1
      %p355 = por %p353, %p354
      %p356 = scmp.ne.s32.totalorder %s348, %s351
      %p357 = scmp.eq.s32.totalorder %s40, 0
      %p358 = por %p356, %p357
      %p359 = scmp.ne.s32.totalorder %s348, %s351
      %p360 = scmp.eq.s32.totalorder %s45, 1
      %p361 = por %p359, %p360
      %p362 = scmp.ne.s32.totalorder %s351, %s352
      %p363 = scmp.eq.s32.totalorder %s45, 0
      %p364 = por %p362, %p363
      %p365 = scmp.ne.s32.totalorder %s351, %s352
      %p366 = scmp.eq.s32.totalorder %s46, 1
      %p367 = por %p365, %p366
      %p369 = scmp.ne.s32.totalorder %s352, %s368
      %p370 = scmp.eq.s32.totalorder %s46, 0
      %p371 = por %p369, %p370
      %s372 = ssub.s32 %s48, %s55
      %p373 = scmp.eq.s32.totalorder %s372, 0
      %s375 = sadd.s32 %s374, 1
      %s376 = scalar_select %p373, %s374, %s375
      %p379 = pneg %p373
      %p380 = scmp.eq.s32.totalorder %s40, 1
      %p381 = por %p379, %p380
      %p382 = scmp.ne.s32.totalorder %s374, %s377
      %p383 = scmp.eq.s32.totalorder %s40, 0
      %p384 = por %p382, %p383
      %p385 = scmp.ne.s32.totalorder %s374, %s377
      %p386 = scmp.eq.s32.totalorder %s45, 1
      %p387 = por %p385, %p386
      %p388 = scmp.ne.s32.totalorder %s377, %s378
      %p389 = scmp.eq.s32.totalorder %s45, 0
      %p390 = por %p388, %p389
      %p391 = scmp.ne.s32.totalorder %s377, %s378
      %p392 = scmp.eq.s32.totalorder %s46, 1
      %p393 = por %p391, %p392
      %p395 = scmp.ne.s32.totalorder %s378, %s394
      %p396 = scmp.eq.s32.totalorder %s46, 0
      %p397 = por %p395, %p396
      %s398 = ssub.s32 %s48, %s55
      %p399 = scmp.eq.s32.totalorder %s398, 0
      %s401 = sadd.s32 %s400, 1
      %s402 = scalar_select %p399, %s400, %s401
      %p405 = pneg %p399
      %p406 = scmp.eq.s32.totalorder %s40, 1
      %p407 = por %p405, %p406
      %p408 = scmp.ne.s32.totalorder %s400, %s403
      %p409 = scmp.eq.s32.totalorder %s40, 0
      %p410 = por %p408, %p409
      %p411 = scmp.ne.s32.totalorder %s400, %s403
      %p412 = scmp.eq.s32.totalorder %s45, 1
      %p413 = por %p411, %p412
      %p414 = scmp.ne.s32.totalorder %s403, %s404
      %p415 = scmp.eq.s32.totalorder %s45, 0
      %p416 = por %p414, %p415
      %p417 = scmp.ne.s32.totalorder %s403, %s404
      %p418 = scmp.eq.s32.totalorder %s46, 1
      %p419 = por %p417, %p418
      %p421 = scmp.ne.s32.totalorder %s404, %s420
      %p422 = scmp.eq.s32.totalorder %s46, 0
      %p423 = por %p421, %p422
      %s424 = ssub.s32 %s48, %s55
      %p425 = scmp.eq.s32.totalorder %s424, 0
      %s427 = sadd.s32 %s426, 1
      %s428 = scalar_select %p425, %s426, %s427
      %p431 = pneg %p425
      %p432 = scmp.eq.s32.totalorder %s40, 1
      %p433 = por %p431, %p432
      %p434 = scmp.ne.s32.totalorder %s426, %s429
      %p435 = scmp.eq.s32.totalorder %s40, 0
      %p436 = por %p434, %p435
      %p437 = scmp.ne.s32.totalorder %s426, %s429
      %p438 = scmp.eq.s32.totalorder %s45, 1
      %p439 = por %p437, %p438
      %p440 = scmp.ne.s32.totalorder %s429, %s430
      %p441 = scmp.eq.s32.totalorder %s45, 0
      %p442 = por %p440, %p441
      %p443 = scmp.ne.s32.totalorder %s429, %s430
      %p444 = scmp.eq.s32.totalorder %s46, 1
      %p445 = por %p443, %p444
      %p447 = scmp.ne.s32.totalorder %s430, %s446
      %p448 = scmp.eq.s32.totalorder %s46, 0
      %p449 = por %p447, %p448
      %s450 = ssub.s32 %s48, %s55
      %p451 = scmp.eq.s32.totalorder %s450, 0
      %s453 = sadd.s32 %s452, 1
      %s454 = scalar_select %p451, %s452, %s453
      %p457 = pneg %p451
      %p458 = scmp.eq.s32.totalorder %s40, 1
      %p459 = por %p457, %p458
      %p460 = scmp.ne.s32.totalorder %s452, %s455
      %p461 = scmp.eq.s32.totalorder %s40, 0
      %p462 = por %p460, %p461
      %p463 = scmp.ne.s32.totalorder %s452, %s455
      %p464 = scmp.eq.s32.totalorder %s45, 1
      %p465 = por %p463, %p464
      %p466 = scmp.ne.s32.totalorder %s455, %s456
      %p467 = scmp.eq.s32.totalorder %s45, 0
      %p468 = por %p466, %p467
      %p469 = scmp.ne.s32.totalorder %s455, %s456
      %p470 = scmp.eq.s32.totalorder %s46, 1
      %p471 = por %p469, %p470
      %p473 = scmp.ne.s32.totalorder %s456, %s472
      %p474 = scmp.eq.s32.totalorder %s46, 0
      %p475 = por %p473, %p474
      %s477 = sadd.s32 %s476, 1
      %p480 = scmp.eq.s32.totalorder %s40, 1
      %p481 = scmp.ne.s32.totalorder %s476, %s478
      %p482 = scmp.eq.s32.totalorder %s40, 0
      %p483 = por %p481, %p482
      %p484 = scmp.ne.s32.totalorder %s476, %s478
      %p485 = scmp.eq.s32.totalorder %s45, 1
      %p486 = por %p484, %p485
      %p487 = scmp.ne.s32.totalorder %s478, %s479
      %p488 = scmp.eq.s32.totalorder %s45, 0
      %p489 = por %p487, %p488
      %p490 = scmp.ne.s32.totalorder %s478, %s479
      %p491 = scmp.eq.s32.totalorder %s46, 1
      %p492 = por %p490, %p491
      %p494 = scmp.ne.s32.totalorder %s479, %s493
      %p495 = scmp.eq.s32.totalorder %s46, 0
      %p496 = por %p494, %p495
      %s498 = sadd.s32 %s497, 1
      %p501 = scmp.eq.s32.totalorder %s40, 1
      %p502 = scmp.ne.s32.totalorder %s497, %s499
      %p503 = scmp.eq.s32.totalorder %s40, 0
      %p504 = por %p502, %p503
      %p505 = scmp.ne.s32.totalorder %s497, %s499
      %p506 = scmp.eq.s32.totalorder %s45, 1
      %p507 = por %p505, %p506
      %p508 = scmp.ne.s32.totalorder %s499, %s500
      %p509 = scmp.eq.s32.totalorder %s45, 0
      %p510 = por %p508, %p509
      %p511 = scmp.ne.s32.totalorder %s499, %s500
      %p512 = scmp.eq.s32.totalorder %s46, 1
      %p513 = por %p511, %p512
      %p515 = scmp.ne.s32.totalorder %s500, %s514
      %p516 = scmp.eq.s32.totalorder %s46, 0
      %p517 = por %p515, %p516
      %s518 = ssub.s32 %s47, %s59
      %p519 = scmp.eq.s32.totalorder %s518, 0
      %s521 = sadd.s32 %s520, 1
      %s522 = scalar_select %p519, %s520, %s521
      %p525 = pneg %p519
      %p526 = scmp.eq.s32.totalorder %s40, 1
      %p527 = por %p525, %p526
      %p528 = scmp.ne.s32.totalorder %s520, %s523
      %p529 = scmp.eq.s32.totalorder %s40, 0
      %p530 = por %p528, %p529
      %p531 = scmp.ne.s32.totalorder %s520, %s523
      %p532 = scmp.eq.s32.totalorder %s45, 1
      %p533 = por %p531, %p532
      %p534 = scmp.ne.s32.totalorder %s523, %s524
      %p535 = scmp.eq.s32.totalorder %s45, 0
      %p536 = por %p534, %p535
      %p537 = scmp.ne.s32.totalorder %s523, %s524
      %p538 = scmp.eq.s32.totalorder %s46, 1
      %p539 = por %p537, %p538
      %p541 = scmp.ne.s32.totalorder %s524, %s540
      %p542 = scmp.eq.s32.totalorder %s46, 0
      %p543 = por %p541, %p542
      %s544 = ssub.s32 %s47, %s59
      %p545 = scmp.eq.s32.totalorder %s544, 0
      %s547 = sadd.s32 %s546, 1
      %s548 = scalar_select %p545, %s546, %s547
      %p551 = pneg %p545
      %p552 = scmp.eq.s32.totalorder %s40, 1
      %p553 = por %p551, %p552
      %p554 = scmp.ne.s32.totalorder %s546, %s549
      %p555 = scmp.eq.s32.totalorder %s40, 0
      %p556 = por %p554, %p555
      %p557 = scmp.ne.s32.totalorder %s546, %s549
      %p558 = scmp.eq.s32.totalorder %s45, 1
      %p559 = por %p557, %p558
      %p560 = scmp.ne.s32.totalorder %s549, %s550
      %p561 = scmp.eq.s32.totalorder %s45, 0
      %p562 = por %p560, %p561
      %p563 = scmp.ne.s32.totalorder %s549, %s550
      %p564 = scmp.eq.s32.totalorder %s46, 1
      %p565 = por %p563, %p564
      %p567 = scmp.ne.s32.totalorder %s550, %s566
      %p568 = scmp.eq.s32.totalorder %s46, 0
      %p569 = por %p567, %p568
      %s570 = ssub.s32 %s47, %s59
      %p571 = scmp.eq.s32.totalorder %s570, 0
      %s573 = sadd.s32 %s572, 1
      %s574 = scalar_select %p571, %s572, %s573
      %p577 = pneg %p571
      %p578 = scmp.eq.s32.totalorder %s40, 1
      %p579 = por %p577, %p578
      %p580 = scmp.ne.s32.totalorder %s572, %s575
      %p581 = scmp.eq.s32.totalorder %s40, 0
      %p582 = por %p580, %p581
      %p583 = scmp.ne.s32.totalorder %s572, %s575
      %p584 = scmp.eq.s32.totalorder %s45, 1
      %p585 = por %p583, %p584
      %p586 = scmp.ne.s32.totalorder %s575, %s576
      %p587 = scmp.eq.s32.totalorder %s45, 0
      %p588 = por %p586, %p587
      %p589 = scmp.ne.s32.totalorder %s575, %s576
      %p590 = scmp.eq.s32.totalorder %s46, 1
      %p591 = por %p589, %p590
      %p593 = scmp.ne.s32.totalorder %s576, %s592
      %p594 = scmp.eq.s32.totalorder %s46, 0
      %p595 = por %p593, %p594
      %s596 = ssub.s32 %s47, %s59
      %p597 = scmp.eq.s32.totalorder %s596, 0
      %s599 = sadd.s32 %s598, 1
      %s600 = scalar_select %p597, %s598, %s599
      %p603 = pneg %p597
      %p604 = scmp.eq.s32.totalorder %s40, 1
      %p605 = por %p603, %p604
      %p606 = scmp.ne.s32.totalorder %s598, %s601
      %p607 = scmp.eq.s32.totalorder %s40, 0
      %p608 = por %p606, %p607
      %p609 = scmp.ne.s32.totalorder %s598, %s601
      %p610 = scmp.eq.s32.totalorder %s45, 1
      %p611 = por %p609, %p610
      %p612 = scmp.ne.s32.totalorder %s601, %s602
      %p613 = scmp.eq.s32.totalorder %s45, 0
      %p614 = por %p612, %p613
      %p615 = scmp.ne.s32.totalorder %s601, %s602
      %p616 = scmp.eq.s32.totalorder %s46, 1
      %p617 = por %p615, %p616
      %p619 = scmp.ne.s32.totalorder %s602, %s618
      %p620 = scmp.eq.s32.totalorder %s46, 0
      %p621 = por %p619, %p620
      %p622 = scmp.le.s32.totalorder 1, %s40
      %p623 = scmp.lt.s32.totalorder %s40, 3
      %p624 = pnand %p622, %p623
      %p625 = pneg %p624
      // Predicated region
      $region9: #{nl_encoder_all_forward.1} parent=5 // pred_check
        _
      $region10: #{nl_encoder_all_forward.1} parent=5 // pred_check_branch
        %627 = sbr.rel (%p624) target = $region12
      $region11: #{nl_encoder_all_forward.1} parent=5 // pred_region
        %s628 = ssub.s32 %s40, 1
        // Predicated region
        $region13: #{nl_encoder_all_forward.1} parent=11 // pred_check
          %p629 = pneg %p78
        $region14: #{nl_encoder_all_forward.1} parent=11 // pred_check_branch
          %631 = sbr.rel (%p629) target = $region16
        $region15: #{nl_encoder_all_forward.1} parent=11 // pred_region
          %s632 = smul.u32 2, %s49
          %p633 = scmp.lt.s32.totalorder %s632, 1
          %s634 = scalar_select %p633, %s632, 1
          %s635 = smul.addr %s634, 2
          %s636 = smul.addr %s635, 8
          %s637 = scalar_lea.vmem %s0, %s636
          %s638 = smul.u32 2, %s49
        $region16: #{nl_encoder_all_forward.1} parent=11 // pred_fallthru
          _
        // Predicated region
        $region17: #{nl_encoder_all_forward.1} parent=11 // pred_check
          %p639 = pneg %p104
        $region18: #{nl_encoder_all_forward.1} parent=11 // pred_check_branch
          %641 = sbr.rel (%p639) target = $region20
        $region19: #{nl_encoder_all_forward.1} parent=11 // pred_region
          %s642 = smul.u32 2, %s49
          %p643 = scmp.lt.s32.totalorder %s642, 1
          %s644 = scalar_select %p643, %s642, 1
          %s645 = smul.addr %s644, 2
          %s646 = smul.addr %s645, 4
          %s647 = scalar_lea.vmem %s1, %s646
          %s648 = smul.u32 2, %s49
        $region20: #{nl_encoder_all_forward.1} parent=11 // pred_fallthru
          _
        // Predicated region
        $region21: #{nl_encoder_all_forward.1} parent=11 // pred_check
          %p649 = pneg %p130
        $region22: #{nl_encoder_all_forward.1} parent=11 // pred_check_branch
          %651 = sbr.rel (%p649) target = $region24
        $region23: #{nl_encoder_all_forward.1} parent=11 // pred_region
          %p652 = scmp.lt.s32.totalorder %s49, 0
          %s653 = scalar_select %p652, %s49, 0
          %s654 = smul.addr %s653, 2
          %s655 = scalar_lea.vmem %s2, %s654
        $region24: #{nl_encoder_all_forward.1} parent=11 // pred_fallthru
          _
        // Predicated region
        $region25: #{nl_encoder_all_forward.1} parent=11 // pred_check
          %p656 = pneg %p156
        $region26: #{nl_encoder_all_forward.1} parent=11 // pred_check_branch
          %658 = sbr.rel (%p656) target = $region28
        $region27: #{nl_encoder_all_forward.1} parent=11 // pred_region
          %p659 = scmp.lt.s32.totalorder %s49, 0
          %s660 = scalar_select %p659, %s49, 0
          %s661 = smul.addr %s660, 2
          %s662 = scalar_lea.vmem %s3, %s661
        $region28: #{nl_encoder_all_forward.1} parent=11 // pred_fallthru
          _
        // Predicated region
        $region29: #{nl_encoder_all_forward.1} parent=11 // pred_check
          %p663 = pneg %p489
        $region30: #{nl_encoder_all_forward.1} parent=11 // pred_check_branch
          %665 = sbr.rel (%p663) target = $region32
        $region31: #{nl_encoder_all_forward.1} parent=11 // pred_region
          %s667 = ssub.s32 16, 16
          %668 = vsyncadd [#allocation12], %s667
          %s670 = sshll.u32 [#allocation11], 4
          %s671 = int_to_ptr.vmem [resolvable:$true] %s670
          %673 = dma.hbm_to_vmem [thread:$0]  %s16, 16, %s671, [#allocation12]
        $region32: #{nl_encoder_all_forward.1} parent=11 // pred_fallthru
          _
        // Predicated region
        $region33: #{nl_encoder_all_forward.1} parent=11 // pred_check
          %p674 = pneg %p510
        $region34: #{nl_encoder_all_forward.1} parent=11 // pred_check_branch
          %676 = sbr.rel (%p674) target = $region36
        $region35: #{nl_encoder_all_forward.1} parent=11 // pred_region
          _
        $region36: #{nl_encoder_all_forward.1} parent=11 // pred_fallthru
          _
      $region12: #{nl_encoder_all_forward.1} parent=5 // pred_fallthru
        _
      %p677 = scmp.lt.s32.totalorder %s40, 2
      // Predicated region
      $region37: #{nl_encoder_all_forward.1} parent=5 // pred_check
        %p678 = pneg %p677
      $region38: #{nl_encoder_all_forward.1} parent=5 // pred_check_branch
        %680 = sbr.rel (%p678) target = $region40
      $region39: #{nl_encoder_all_forward.1} parent=5 // pred_region
        // Predicated region
        $region41: #{nl_encoder_all_forward.1} parent=39 // pred_check
          %p681 = pneg %p176
        $region42: #{nl_encoder_all_forward.1} parent=39 // pred_check_branch
          %683 = sbr.rel (%p681) target = $region44
        $region43: #{nl_encoder_all_forward.1} parent=39 // pred_region
          %p684 = scmp.lt.s32.totalorder %s48, 1
          %s685 = scalar_select %p684, %s48, 1
          %s686 = smul.addr %s685, 48
          %s687 = smul.addr %s686, 4
          %s688 = scalar_lea.vmem %s4, %s687
        $region44: #{nl_encoder_all_forward.1} parent=39 // pred_fallthru
          _
        // Predicated region
        $region45: #{nl_encoder_all_forward.1} parent=39 // pred_check
          %p689 = pneg %p202
        $region46: #{nl_encoder_all_forward.1} parent=39 // pred_check_branch
          %691 = sbr.rel (%p689) target = $region48
        $region47: #{nl_encoder_all_forward.1} parent=39 // pred_region
          %p692 = scmp.lt.s32.totalorder %s48, 1
          %s693 = scalar_select %p692, %s48, 1
          %s694 = smul.addr %s693, 3
          %s695 = scalar_lea.vmem %s5, %s694
        $region48: #{nl_encoder_all_forward.1} parent=39 // pred_fallthru
          _
        // Predicated region
        $region49: #{nl_encoder_all_forward.1} parent=39 // pred_check
          %p696 = pneg %p228
        $region50: #{nl_encoder_all_forward.1} parent=39 // pred_check_branch
          %698 = sbr.rel (%p696) target = $region52
        $region51: #{nl_encoder_all_forward.1} parent=39 // pred_region
          %p699 = scmp.lt.s32.totalorder %s48, 1
          %s700 = scalar_select %p699, %s48, 1
          %s701 = smul.addr %s700, 16
          %s702 = smul.addr %s701, 4
          %s703 = scalar_lea.vmem %s6, %s702
        $region52: #{nl_encoder_all_forward.1} parent=39 // pred_fallthru
          _
        // Predicated region
        $region53: #{nl_encoder_all_forward.1} parent=39 // pred_check
          %p704 = pneg %p254
        $region54: #{nl_encoder_all_forward.1} parent=39 // pred_check_branch
          %706 = sbr.rel (%p704) target = $region56
        $region55: #{nl_encoder_all_forward.1} parent=39 // pred_region
          %s707 = sand.u32 %s244, 1
          %s708 = scalar_lea.sflag [#allocation4], %s707
          %s709 = sand.u32 %s244, 1
          %s710 = scalar_lea.vmem [#allocation3], %s709
          %s712 = ssub.s32 16, 16
          %713 = vsyncadd %s708, %s712
          %s714 = smul.addr %s48, 16
          %s715 = scalar_lea.hbm %s7, %s714
          %s717 = sshll.u32 %s710, 4
          %s718 = int_to_ptr.vmem [resolvable:$true] %s717
          %720 = dma.hbm_to_vmem [thread:$0]  %s715, 16, %s718, %s708
        $region56: #{nl_encoder_all_forward.1} parent=39 // pred_fallthru
          _
        // Predicated region
        $region57: #{nl_encoder_all_forward.1} parent=39 // pred_check
          %p721 = pneg %p280
        $region58: #{nl_encoder_all_forward.1} parent=39 // pred_check_branch
          %723 = sbr.rel (%p721) target = $region60
        $region59: #{nl_encoder_all_forward.1} parent=39 // pred_region
          %s724 = sand.u32 %s40, 1
          %s725 = scalar_lea.sflag [#allocation6], %s724
          %s726 = sand.u32 %s270, 1
          %s727 = smul.addr %s726, 128
          %s728 = scalar_lea.vmem [#allocation5], %s727
          %s730 = ssub.s32 2048, 2048
          %731 = vsyncadd %s725, %s730
          %s732 = smul.addr %s48, 32
          %s733 = smul.addr %s732, 64
          %s734 = scalar_lea.hbm %s8, %s733
          %s735 = sshll.u32 %s728, 4
          %s736 = int_to_ptr.vmem [resolvable:$true] %s735
          %741 = dma.hbm_to_vmem [thread:$0]  %s734, 2048, %s736, %s725, 128, 128, 8
        $region60: #{nl_encoder_all_forward.1} parent=39 // pred_fallthru
          _
        // Predicated region
        $region61: #{nl_encoder_all_forward.1} parent=39 // pred_check
          %p742 = pneg %p306
        $region62: #{nl_encoder_all_forward.1} parent=39 // pred_check_branch
          %744 = sbr.rel (%p742) target = $region64
        $region63: #{nl_encoder_all_forward.1} parent=39 // pred_region
          %s745 = sand.u32 %s40, 1
          %s746 = scalar_lea.sflag [#allocation6], %s745
          %s747 = sand.u32 %s296, 1
          %s748 = smul.addr %s747, 2
          %s749 = scalar_lea.vmem [#allocation7], %s748
          %s751 = ssub.s32 32, 32
          %752 = vsyncadd %s746, %s751
          %s753 = smul.addr %s48, 2
          %s754 = smul.addr %s753, 16
          %s755 = scalar_lea.hbm %s9, %s754
          %s757 = sshll.u32 %s749, 4
          %s758 = int_to_ptr.vmem [resolvable:$true] %s757
          %760 = dma.hbm_to_vmem [thread:$0]  %s755, 32, %s758, %s746
        $region64: #{nl_encoder_all_forward.1} parent=39 // pred_fallthru
          _
        // Predicated region
        $region65: #{nl_encoder_all_forward.1} parent=39 // pred_check
          %p761 = pneg %p332
        $region66: #{nl_encoder_all_forward.1} parent=39 // pred_check_branch
          %763 = sbr.rel (%p761) target = $region68
        $region67: #{nl_encoder_all_forward.1} parent=39 // pred_region
          %s764 = sand.u32 %s40, 1
          %s765 = scalar_lea.sflag [#allocation9], %s764
          %s766 = sand.u32 %s322, 1
          %s767 = smul.addr %s766, 128
          %s768 = scalar_lea.vmem [#allocation8], %s767
          %s770 = ssub.s32 2048, 2048
          %771 = vsyncadd %s765, %s770
          %s772 = smul.addr %s48, 32
          %s773 = smul.addr %s772, 64
          %s774 = scalar_lea.hbm %s10, %s773
          %s775 = sshll.u32 %s768, 4
          %s776 = int_to_ptr.vmem [resolvable:$true] %s775
          %781 = dma.hbm_to_vmem [thread:$0]  %s774, 2048, %s776, %s765, 64, 64, 4
        $region68: #{nl_encoder_all_forward.1} parent=39 // pred_fallthru
          _
        // Predicated region
        $region69: #{nl_encoder_all_forward.1} parent=39 // pred_check
          %p782 = pneg %p358
        $region70: #{nl_encoder_all_forward.1} parent=39 // pred_check_branch
          %784 = sbr.rel (%p782) target = $region72
        $region71: #{nl_encoder_all_forward.1} parent=39 // pred_region
          %s785 = sand.u32 %s40, 1
          %s786 = scalar_lea.sflag [#allocation9], %s785
          %s787 = sand.u32 %s348, 1
          %s788 = scalar_lea.vmem [#allocation10], %s787
          %s790 = ssub.s32 16, 16
          %791 = vsyncadd %s786, %s790
          %s792 = smul.addr %s48, 16
          %s793 = scalar_lea.hbm %s11, %s792
          %s795 = sshll.u32 %s788, 4
          %s796 = int_to_ptr.vmem [resolvable:$true] %s795
          %798 = dma.hbm_to_vmem [thread:$0]  %s793, 16, %s796, %s786
        $region72: #{nl_encoder_all_forward.1} parent=39 // pred_fallthru
          _
        // Predicated region
        $region73: #{nl_encoder_all_forward.1} parent=39 // pred_check
          %p799 = pneg %p384
        $region74: #{nl_encoder_all_forward.1} parent=39 // pred_check_branch
          %801 = sbr.rel (%p799) target = $region76
        $region75: #{nl_encoder_all_forward.1} parent=39 // pred_region
          %p802 = scmp.lt.s32.totalorder %s48, 1
          %s803 = scalar_select %p802, %s48, 1
          %s804 = scalar_lea.vmem %s12, %s803
        $region76: #{nl_encoder_all_forward.1} parent=39 // pred_fallthru
          _
        // Predicated region
        $region77: #{nl_encoder_all_forward.1} parent=39 // pred_check
          %p805 = pneg %p410
        $region78: #{nl_encoder_all_forward.1} parent=39 // pred_check_branch
          %807 = sbr.rel (%p805) target = $region80
        $region79: #{nl_encoder_all_forward.1} parent=39 // pred_region
          %p808 = scmp.lt.s32.totalorder %s48, 1
          %s809 = scalar_select %p808, %s48, 1
          %s810 = scalar_lea.vmem %s13, %s809
        $region80: #{nl_encoder_all_forward.1} parent=39 // pred_fallthru
          _
        // Predicated region
        $region81: #{nl_encoder_all_forward.1} parent=39 // pred_check
          %p811 = pneg %p436
        $region82: #{nl_encoder_all_forward.1} parent=39 // pred_check_branch
          %813 = sbr.rel (%p811) target = $region84
        $region83: #{nl_encoder_all_forward.1} parent=39 // pred_region
          %p814 = scmp.lt.s32.totalorder %s48, 1
          %s815 = scalar_select %p814, %s48, 1
          %s816 = scalar_lea.vmem %s14, %s815
        $region84: #{nl_encoder_all_forward.1} parent=39 // pred_fallthru
          _
        // Predicated region
        $region85: #{nl_encoder_all_forward.1} parent=39 // pred_check
          %p817 = pneg %p462
        $region86: #{nl_encoder_all_forward.1} parent=39 // pred_check_branch
          %819 = sbr.rel (%p817) target = $region88
        $region87: #{nl_encoder_all_forward.1} parent=39 // pred_region
          %p820 = scmp.lt.s32.totalorder %s48, 1
          %s821 = scalar_select %p820, %s48, 1
          %s822 = scalar_lea.vmem %s15, %s821
        $region88: #{nl_encoder_all_forward.1} parent=39 // pred_fallthru
          _
      $region40: #{nl_encoder_all_forward.1} parent=5 // pred_fallthru
        _
      %p823 = scmp.le.s32.totalorder 1, %s40
      %p824 = scmp.lt.s32.totalorder %s40, 3
      %p825 = pnand %p823, %p824
      %p826 = pneg %p825
      // Predicated region
      $region89: #{nl_encoder_all_forward.1} parent=5 // pred_check
        _
      $region90: #{nl_encoder_all_forward.1} parent=5 // pred_check_branch
        %828 = sbr.rel (%p825) target = $region92
      $region91: #{nl_encoder_all_forward.1} parent=5 // pred_region
        %s829 = ssub.s32 %s40, 1
        %s830 = sand.u32 %s247, 1
        %s831 = scalar_lea.sflag [#allocation4], %s830
        %s832 = sand.u32 %s247, 1
        %s833 = scalar_lea.vmem [#allocation3], %s832
        // Predicated region
        $region93: #{nl_encoder_all_forward.1} parent=91 // pred_check
          %p834 = pneg %p260
        $region94: #{nl_encoder_all_forward.1} parent=91 // pred_check_branch
          %836 = sbr.rel (%p834) target = $region96
        $region95: #{nl_encoder_all_forward.1} parent=91 // pred_region
          %837 = dma.done %s831, 16
        $region96: #{nl_encoder_all_forward.1} parent=91 // pred_fallthru
          _
        %s838 = sand.u32 %s45, 1
        %s839 = scalar_lea.sflag [#allocation6], %s838
        %s840 = sand.u32 %s273, 1
        %s841 = smul.addr %s840, 128
        %s842 = scalar_lea.vmem [#allocation5], %s841
        // Predicated region
        $region97: #{nl_encoder_all_forward.1} parent=91 // pred_check
          %p843 = pneg %p286
        $region98: #{nl_encoder_all_forward.1} parent=91 // pred_check_branch
          %845 = sbr.rel (%p843) target = $region100
        $region99: #{nl_encoder_all_forward.1} parent=91 // pred_region
          %846 = dma.done %s839, 2048
        $region100: #{nl_encoder_all_forward.1} parent=91 // pred_fallthru
          _
        %s847 = sand.u32 %s45, 1
        %s848 = scalar_lea.sflag [#allocation6], %s847
        %s849 = sand.u32 %s299, 1
        %s850 = smul.addr %s849, 2
        %s851 = scalar_lea.vmem [#allocation7], %s850
        // Predicated region
        $region101: #{nl_encoder_all_forward.1} parent=91 // pred_check
          %p852 = pneg %p312
        $region102: #{nl_encoder_all_forward.1} parent=91 // pred_check_branch
          %854 = sbr.rel (%p852) target = $region104
        $region103: #{nl_encoder_all_forward.1} parent=91 // pred_region
          %855 = dma.done %s848, 32
        $region104: #{nl_encoder_all_forward.1} parent=91 // pred_fallthru
          _
        %s856 = sand.u32 %s45, 1
        %s857 = scalar_lea.sflag [#allocation9], %s856
        %s858 = sand.u32 %s325, 1
        %s859 = smul.addr %s858, 128
        %s860 = scalar_lea.vmem [#allocation8], %s859
        // Predicated region
        $region105: #{nl_encoder_all_forward.1} parent=91 // pred_check
          %p861 = pneg %p338
        $region106: #{nl_encoder_all_forward.1} parent=91 // pred_check_branch
          %863 = sbr.rel (%p861) target = $region108
        $region107: #{nl_encoder_all_forward.1} parent=91 // pred_region
          %864 = dma.done %s857, 2048
        $region108: #{nl_encoder_all_forward.1} parent=91 // pred_fallthru
          _
        %s865 = sand.u32 %s45, 1
        %s866 = scalar_lea.sflag [#allocation9], %s865
        %s867 = sand.u32 %s351, 1
        %s868 = scalar_lea.vmem [#allocation10], %s867
        // Predicated region
        $region109: #{nl_encoder_all_forward.1} parent=91 // pred_check
          %p869 = pneg %p364
        $region110: #{nl_encoder_all_forward.1} parent=91 // pred_check_branch
          %871 = sbr.rel (%p869) target = $region112
        $region111: #{nl_encoder_all_forward.1} parent=91 // pred_region
          %872 = dma.done %s866, 16
        $region112: #{nl_encoder_all_forward.1} parent=91 // pred_fallthru
          _
        // Predicated region
        $region113: #{nl_encoder_all_forward.1} parent=91 // pred_check
          %p873 = pneg %p489
        $region114: #{nl_encoder_all_forward.1} parent=91 // pred_check_branch
          %875 = sbr.rel (%p873) target = $region116
        $region115: #{nl_encoder_all_forward.1} parent=91 // pred_region
          %876 = dma.done [#allocation12], 16
        $region116: #{nl_encoder_all_forward.1} parent=91 // pred_fallthru
          _
        %s877 = smul.u32 2, %s49
        %p878 = scmp.lt.s32.totalorder %s877, 1
        %s879 = scalar_select %p878, %s877, 1
        %s880 = smul.addr %s879, 2
        %s881 = smul.addr %s880, 8
        %s882 = scalar_lea.vmem %s0, %s881
        %p883 = pneg %p78
        %p884 = pneg %p75
        %s885 = smul.u32 2, %s49
        %p886 = scmp.lt.s32.totalorder %s885, 1
        %s887 = scalar_select %p886, %s885, 1
        %s888 = smul.addr %s887, 2
        %s889 = smul.addr %s888, 4
        %s890 = scalar_lea.vmem %s1, %s889
        %p891 = pneg %p104
        %p892 = pneg %p101
        %p893 = scmp.lt.s32.totalorder %s49, 0
        %s894 = scalar_select %p893, %s49, 0
        %s895 = smul.addr %s894, 2
        %s896 = scalar_lea.vmem %s2, %s895
        %p897 = pneg %p130
        %p898 = pneg %p127
        %p899 = scmp.lt.s32.totalorder %s49, 0
        %s900 = scalar_select %p899, %s49, 0
        %s901 = smul.addr %s900, 2
        %s902 = scalar_lea.vmem %s3, %s901
        %p903 = pneg %p156
        %p904 = pneg %p153
        %p905 = scmp.lt.s32.totalorder %s50, 1
        %s906 = scalar_select %p905, %s50, 1
        %s907 = smul.addr %s906, 48
        %s908 = smul.addr %s907, 4
        %s909 = scalar_lea.vmem %s4, %s908
        %p910 = pneg %p182
        %p911 = pneg %p179
        %p912 = scmp.lt.s32.totalorder %s50, 1
        %s913 = scalar_select %p912, %s50, 1
        %s914 = smul.addr %s913, 3
        %s915 = scalar_lea.vmem %s5, %s914
        %p916 = pneg %p208
        %p917 = pneg %p205
        %p918 = scmp.lt.s32.totalorder %s50, 1
        %s919 = scalar_select %p918, %s50, 1
        %s920 = smul.addr %s919, 16
        %s921 = smul.addr %s920, 4
        %s922 = scalar_lea.vmem %s6, %s921
        %p923 = pneg %p234
        %p924 = pneg %p231
        %s925 = sand.u32 %s247, 1
        %s926 = scalar_lea.sflag [#allocation4], %s925
        %s927 = sand.u32 %s247, 1
        %s928 = scalar_lea.vmem [#allocation3], %s927
        %p929 = pneg %p260
        %p930 = pneg %p257
        %s931 = sand.u32 %s45, 1
        %s932 = scalar_lea.sflag [#allocation6], %s931
        %s933 = sand.u32 %s273, 1
        %s934 = smul.addr %s933, 128
        %s935 = scalar_lea.vmem [#allocation5], %s934
        %p936 = pneg %p286
        %p937 = pneg %p283
        %s938 = sand.u32 %s45, 1
        %s939 = scalar_lea.sflag [#allocation6], %s938
        %s940 = sand.u32 %s299, 1
        %s941 = smul.addr %s940, 2
        %s942 = scalar_lea.vmem [#allocation7], %s941
        %p943 = pneg %p312
        %p944 = pneg %p309
        %s945 = sand.u32 %s45, 1
        %s946 = scalar_lea.sflag [#allocation9], %s945
        %s947 = sand.u32 %s325, 1
        %s948 = smul.addr %s947, 128
        %s949 = scalar_lea.vmem [#allocation8], %s948
        %p950 = pneg %p338
        %p951 = pneg %p335
        %s952 = sand.u32 %s45, 1
        %s953 = scalar_lea.sflag [#allocation9], %s952
        %s954 = sand.u32 %s351, 1
        %s955 = scalar_lea.vmem [#allocation10], %s954
        %p956 = pneg %p364
        %p957 = pneg %p361
        %p958 = scmp.lt.s32.totalorder %s50, 1
        %s959 = scalar_select %p958, %s50, 1
        %s960 = scalar_lea.vmem %s12, %s959
        %p961 = pneg %p390
        %p962 = pneg %p387
        %p963 = scmp.lt.s32.totalorder %s50, 1
        %s964 = scalar_select %p963, %s50, 1
        %s965 = scalar_lea.vmem %s13, %s964
        %p966 = pneg %p416
        %p967 = pneg %p413
        %p968 = scmp.lt.s32.totalorder %s50, 1
        %s969 = scalar_select %p968, %s50, 1
        %s970 = scalar_lea.vmem %s14, %s969
        %p971 = pneg %p442
        %p972 = pneg %p439
        %p973 = scmp.lt.s32.totalorder %s50, 1
        %s974 = scalar_select %p973, %s50, 1
        %s975 = scalar_lea.vmem %s15, %s974
        %p976 = pneg %p468
        %p977 = pneg %p465
        %p978 = pneg %p489
        %p979 = pneg %p486
        %p980 = pneg %p510
        %p981 = pneg %p507
        %p982 = pneg %p536
        %p983 = pneg %p533
        %s984 = smul.u32 2, %s49
        %p985 = scmp.lt.s32.totalorder %s984, 1
        %s986 = scalar_select %p985, %s984, 1
        %s987 = smul.addr %s986, 2
        %s988 = smul.addr %s987, 8
        %s989 = scalar_lea.vmem %s18, %s988
        %p990 = pneg %p562
        %p991 = pneg %p559
        %p992 = scmp.lt.s32.totalorder %s49, 0
        %s993 = scalar_select %p992, %s49, 0
        %s994 = smul.addr %s993, 2
        %s995 = scalar_lea.vmem %s19, %s994
        %p996 = pneg %p588
        %p997 = pneg %p585
        %p998 = scmp.lt.s32.totalorder %s49, 0
        %s999 = scalar_select %p998, %s49, 0
        %s1000 = smul.addr %s999, 2
        %s1001 = scalar_lea.vmem %s20, %s1000
        %p1002 = pneg %p614
        %p1003 = pneg %p611
        %p1004 = scmp.lt.s32.totalorder %s49, 0
        %s1005 = scalar_select %p1004, %s49, 0
        %s1006 = smul.addr %s1005, 2
        %s1007 = scalar_lea.vmem %s21, %s1006
        %s1008 = smul.u32 2, %s49
        %p1009 = scmp.lt.s32.totalorder %s1008, 1
        %s1010 = scalar_select %p1009, %s1008, 1
        %s1011 = smul.addr %s1010, 2
        %s1012 = smul.addr %s1011, 8
        %s1013 = scalar_lea.vmem %s0, %s1012
        %s1014 = smul.u32 2, %s49
        %s1015 = smul.u32 2, %s49
        %p1016 = scmp.lt.s32.totalorder %s1015, 1
        %s1017 = scalar_select %p1016, %s1015, 1
        %s1018 = smul.addr %s1017, 2
        %s1019 = smul.addr %s1018, 4
        %s1020 = scalar_lea.vmem %s1, %s1019
        %s1021 = smul.u32 2, %s49
        %p1022 = scmp.lt.s32.totalorder %s49, 0
        %s1023 = scalar_select %p1022, %s49, 0
        %s1024 = smul.addr %s1023, 2
        %s1025 = scalar_lea.vmem %s2, %s1024
        %p1026 = scmp.lt.s32.totalorder %s49, 0
        %s1027 = scalar_select %p1026, %s49, 0
        %s1028 = smul.addr %s1027, 2
        %s1029 = scalar_lea.vmem %s3, %s1028
        %p1030 = scmp.lt.s32.totalorder %s50, 1
        %s1031 = scalar_select %p1030, %s50, 1
        %s1032 = smul.addr %s1031, 48
        %s1033 = smul.addr %s1032, 4
        %s1034 = scalar_lea.vmem %s4, %s1033
        %p1035 = scmp.lt.s32.totalorder %s50, 1
        %s1036 = scalar_select %p1035, %s50, 1
        %s1037 = smul.addr %s1036, 3
        %s1038 = scalar_lea.vmem %s5, %s1037
        %p1039 = scmp.lt.s32.totalorder %s50, 1
        %s1040 = scalar_select %p1039, %s50, 1
        %s1041 = smul.addr %s1040, 16
        %s1042 = smul.addr %s1041, 4
        %s1043 = scalar_lea.vmem %s6, %s1042
        %p1044 = scmp.lt.s32.totalorder %s50, 1
        %s1045 = scalar_select %p1044, %s50, 1
        %s1046 = scalar_lea.vmem %s12, %s1045
        %p1047 = scmp.lt.s32.totalorder %s50, 1
        %s1048 = scalar_select %p1047, %s50, 1
        %s1049 = scalar_lea.vmem %s13, %s1048
        %p1050 = scmp.lt.s32.totalorder %s50, 1
        %s1051 = scalar_select %p1050, %s50, 1
        %s1052 = scalar_lea.vmem %s14, %s1051
        %p1053 = scmp.lt.s32.totalorder %s50, 1
        %s1054 = scalar_select %p1053, %s50, 1
        %s1055 = scalar_lea.vmem %s15, %s1054
        %s1056 = smul.u32 2, %s49
        %p1057 = scmp.lt.s32.totalorder %s1056, 1
        %s1058 = scalar_select %p1057, %s1056, 1
        %s1059 = smul.addr %s1058, 2
        %s1060 = smul.addr %s1059, 8
        %s1061 = scalar_lea.vmem %s18, %s1060
        %s1062 = smul.u32 2, %s49
        %p1063 = scmp.lt.s32.totalorder %s49, 0
        %s1064 = scalar_select %p1063, %s49, 0
        %s1065 = smul.addr %s1064, 2
        %s1066 = scalar_lea.vmem %s19, %s1065
        %p1067 = scmp.lt.s32.totalorder %s49, 0
        %s1068 = scalar_select %p1067, %s49, 0
        %s1069 = smul.addr %s1068, 2
        %s1070 = scalar_lea.vmem %s20, %s1069
        %p1071 = scmp.lt.s32.totalorder %s49, 0
        %s1072 = scalar_select %p1071, %s49, 0
        %s1073 = smul.addr %s1072, 2
        %s1074 = scalar_lea.vmem %s21, %s1073
        %p1076 = scmp.eq.s32.totalorder %s50, 0
        // Predicated region
        $region117: #{nl_encoder_all_forward.1} parent=91 // pred_check
          %p1077 = pneg %p1076
        $region118: #{nl_encoder_all_forward.1} parent=91 // pred_check_branch
          %1079 = sbr.rel (%p1077) target = $region120
        $region119: #{nl_encoder_all_forward.1} parent=91 // pred_region
          %v1080 = vld [vmem:[%s1013] sm:$0xff]
          %v1081 = vld [vmem:[%s1013 + $0x8] sm:$0xff]
          %v1082 = vld [vmem:[%s1013 + $0x10] sm:$0xff]
          %v1083 = vld [vmem:[%s1013 + $0x18] sm:$0xff]
          %1084 = vst [vmem:[%s1061] sm:$0xff] %v1080
          %1085 = vst [vmem:[%s1061 + $0x8] sm:$0xff] %v1081
          %1086 = vst [vmem:[%s1061 + $0x10] sm:$0xff] %v1082
          %1087 = vst [vmem:[%s1061 + $0x18] sm:$0xff] %v1083
        $region120: #{nl_encoder_all_forward.1} parent=91 // pred_fallthru
          _
        %v1088 = vld [vmem:[%s1061] sm:$0xff]
        %v1089 = vld [vmem:[%s1061 + $0x8] sm:$0xff]
        %v1090 = vld [vmem:[%s1061 + $0x10] sm:$0xff]
        %v1091 = vld [vmem:[%s1061 + $0x18] sm:$0xff]
        %v1092 = vpack.c.bf16 %v1089, %v1088
        %v1093 = vpack.c.bf16 %v1091, %v1090
        %v1094 = vld [vmem:[%s1034] sm:$0xff]
        %v1095 = vld [vmem:[%s1034 + $0x8] sm:$0xf]
        %v1096 = vld [vmem:[%s1034 + $0xc] sm:$0xff]
        %v1097 = vld [vmem:[%s1034 + $0x14] sm:$0xf]
        %v1098 = vld [vmem:[%s1034 + $0x18] sm:$0xff]
        %v1099 = vld [vmem:[%s1034 + $0x20] sm:$0xf]
        %v1100 = vld [vmem:[%s1034 + $0x24] sm:$0xff]
        %v1101 = vld [vmem:[%s1034 + $0x2c] sm:$0xf]
        %v1102 = vld [vmem:[%s1034 + $0x30] sm:$0xff]
        %v1103 = vld [vmem:[%s1034 + $0x38] sm:$0xf]
        %v1104 = vld [vmem:[%s1034 + $0x3c] sm:$0xff]
        %v1105 = vld [vmem:[%s1034 + $0x44] sm:$0xf]
        %v1106 = vld [vmem:[%s1034 + $0x48] sm:$0xff]
        %v1107 = vld [vmem:[%s1034 + $0x50] sm:$0xf]
        %v1108 = vld [vmem:[%s1034 + $0x54] sm:$0xff]
        %v1109 = vld [vmem:[%s1034 + $0x5c] sm:$0xf]
        %v1110 = vld [vmem:[%s1034 + $0x60] sm:$0xff]
        %v1111 = vld [vmem:[%s1034 + $0x68] sm:$0xf]
        %v1112 = vld [vmem:[%s1034 + $0x6c] sm:$0xff]
        %v1113 = vld [vmem:[%s1034 + $0x74] sm:$0xf]
        %v1114 = vld [vmem:[%s1034 + $0x78] sm:$0xff]
        %v1115 = vld [vmem:[%s1034 + $0x80] sm:$0xf]
        %v1116 = vld [vmem:[%s1034 + $0x84] sm:$0xff]
        %v1117 = vld [vmem:[%s1034 + $0x8c] sm:$0xf]
        %v1118 = vld [vmem:[%s1034 + $0x90] sm:$0xff]
        %v1119 = vld [vmem:[%s1034 + $0x98] sm:$0xf]
        %v1120 = vld [vmem:[%s1034 + $0x9c] sm:$0xff]
        %v1121 = vld [vmem:[%s1034 + $0xa4] sm:$0xf]
        %v1122 = vld [vmem:[%s1034 + $0xa8] sm:$0xff]
        %v1123 = vld [vmem:[%s1034 + $0xb0] sm:$0xf]
        %v1124 = vld [vmem:[%s1034 + $0xb4] sm:$0xff]
        %v1125 = vld [vmem:[%s1034 + $0xbc] sm:$0xf]
        %v1126 = vld [vmem:[%s1038] sm:$0x7]
        %v1128 = vlaneseq
        %v1129 = vshrl.u32 %v1128, 7
        %v1130 = vsub.s32 0, %v1129
        %v1131 = vrot.slane %v1126, %v1130
        %v1132 = vlaneseq
        %v1133 = vshrl.u32 %v1132, 7
        %v1134 = vsub.s32 1, %v1133
        %v1135 = vrot.slane %v1126, %v1134
        %v1136 = vlaneseq
        %v1137 = vshrl.u32 %v1136, 7
        %v1138 = vsub.s32 2, %v1137
        %v1139 = vrot.slane %v1126, %v1138
        %v1175 = vunpack.c.l.b16 %v1094
        %v1176 = vunpack.c.h.b16 %v1094
        %v1177 = vunpack.c.l.b16 %v1095
        %v1178 = vunpack.c.l.b16 %v1096
        %v1179 = vunpack.c.h.b16 %v1096
        %v1180 = vunpack.c.l.b16 %v1097
        %v1181 = vunpack.c.l.b16 %v1098
        %v1182 = vunpack.c.h.b16 %v1098
        %v1183 = vunpack.c.l.b16 %v1099
        %v1184 = vunpack.c.l.b16 %v1100
        %v1185 = vunpack.c.h.b16 %v1100
        %v1186 = vunpack.c.l.b16 %v1101
        %v1187 = vunpack.c.l.b16 %v1102
        %v1188 = vunpack.c.h.b16 %v1102
        %v1189 = vunpack.c.l.b16 %v1103
        %v1190 = vunpack.c.l.b16 %v1104
        %v1191 = vunpack.c.h.b16 %v1104
        %v1192 = vunpack.c.l.b16 %v1105
        %v1193 = vunpack.c.l.b16 %v1106
        %v1194 = vunpack.c.h.b16 %v1106
        %v1195 = vunpack.c.l.b16 %v1107
        %v1196 = vunpack.c.l.b16 %v1108
        %v1197 = vunpack.c.h.b16 %v1108
        %v1198 = vunpack.c.l.b16 %v1109
        %v1199 = vunpack.c.l.b16 %v1110
        %v1200 = vunpack.c.h.b16 %v1110
        %v1201 = vunpack.c.l.b16 %v1111
        %v1202 = vunpack.c.l.b16 %v1112
        %v1203 = vunpack.c.h.b16 %v1112
        %v1204 = vunpack.c.l.b16 %v1113
        %v1205 = vunpack.c.l.b16 %v1114
        %v1206 = vunpack.c.h.b16 %v1114
        %v1207 = vunpack.c.l.b16 %v1115
        %v1208 = vunpack.c.l.b16 %v1116
        %v1209 = vunpack.c.h.b16 %v1116
        %v1210 = vunpack.c.l.b16 %v1117
        %v1211 = vunpack.c.l.b16 %v1118
        %v1212 = vunpack.c.h.b16 %v1118
        %v1213 = vunpack.c.l.b16 %v1119
        %v1214 = vunpack.c.l.b16 %v1120
        %v1215 = vunpack.c.h.b16 %v1120
        %v1216 = vunpack.c.l.b16 %v1121
        %v1217 = vunpack.c.l.b16 %v1122
        %v1218 = vunpack.c.h.b16 %v1122
        %v1219 = vunpack.c.l.b16 %v1123
        %v1220 = vunpack.c.l.b16 %v1124
        %v1221 = vunpack.c.h.b16 %v1124
        %v1222 = vunpack.c.l.b16 %v1125
        %v1223 = vpack.c.b16 %v1178, %v1175
        %v1224 = vpack.c.b16 %v1179, %v1176
        %v1225 = vpack.c.b16 %v1180, %v1177
        %v1226 = vpack.c.b16 %v1184, %v1181
        %v1227 = vpack.c.b16 %v1185, %v1182
        %v1228 = vpack.c.b16 %v1186, %v1183
        %v1229 = vpack.c.b16 %v1190, %v1187
        %v1230 = vpack.c.b16 %v1191, %v1188
        %v1231 = vpack.c.b16 %v1192, %v1189
        %v1232 = vpack.c.b16 %v1196, %v1193
        %v1233 = vpack.c.b16 %v1197, %v1194
        %v1234 = vpack.c.b16 %v1198, %v1195
        %v1235 = vpack.c.b16 %v1202, %v1199
        %v1236 = vpack.c.b16 %v1203, %v1200
        %v1237 = vpack.c.b16 %v1204, %v1201
        %v1238 = vpack.c.b16 %v1208, %v1205
        %v1239 = vpack.c.b16 %v1209, %v1206
        %v1240 = vpack.c.b16 %v1210, %v1207
        %v1241 = vpack.c.b16 %v1214, %v1211
        %v1242 = vpack.c.b16 %v1215, %v1212
        %v1243 = vpack.c.b16 %v1216, %v1213
        %v1244 = vpack.c.b16 %v1220, %v1217
        %v1245 = vpack.c.b16 %v1221, %v1218
        %v1246 = vpack.c.b16 %v1222, %v1219
        %1271 = vmatprep.subr.bf16.mxu0 %v1245
        %1272 = vmatpush1.bf16.msra.mxu0 %v1244
        %1273 = vmatprep.subr.bf16.mxu0 %v1242
        %1274 = vmatpush1.bf16.msra.mxu0 %v1241
        %1275 = vmatprep.subr.bf16.mxu0 %v1239
        %1276 = vmatpush1.bf16.msra.mxu0 %v1238
        %1277 = vmatprep.subr.bf16.mxu0 %v1236
        %1278 = vmatpush1.bf16.msra.mxu0 %v1235
        %1279 = vmatprep.subr.bf16.mxu0 %v1233
        %1280 = vmatpush1.bf16.msra.mxu0 %v1232
        %1281 = vmatprep.subr.bf16.mxu0 %v1230
        %1282 = vmatpush1.bf16.msra.mxu0 %v1229
        %1283 = vmatprep.subr.bf16.mxu0 %v1227
        %1284 = vmatpush1.bf16.msra.mxu0 %v1226
        %1285 = vmatprep.subr.bf16.mxu0 %v1224
        %1286 = vmatpush1.bf16.msra.mxu0 %v1223
        %1287 = vmatprep.subr.bf16.mxu0 0
        %1288 = vmatpush2.bf16.msra.mxu0 0
        %1289 = vmatprep.subr.bf16.mxu0 0
        %1290 = vmatpush2.bf16.msra.mxu0 0
        %1291 = vmatprep.subr.bf16.mxu0 0
        %1292 = vmatpush2.bf16.msra.mxu0 0
        %1293 = vmatprep.subr.bf16.mxu0 0
        %1294 = vmatpush2.bf16.msra.mxu0 0
        %1295 = vmatprep.subr.bf16.mxu0 0
        %1296 = vmatpush2.bf16.msra.mxu0 0
        %1297 = vmatprep.subr.bf16.mxu0 0
        %1298 = vmatpush2.bf16.msra.mxu0 0
        %1299 = vmatprep.subr.bf16.mxu0 0
        %1300 = vmatpush2.bf16.msra.mxu0 0
        %1301 = vmatprep.subr.bf16.mxu0 0
        %1302 = vmatpush2.bf16.msra.mxu0 0
        %1303 = vmatprep.mubr.bf16.mxu0 0
        %1304 = vmatmul.mubr.bf16.gmra.mxu0 %v1092
        %v1305 = vpop.f32.mrf.mxu0
        %v1306 = vadd.f32 %v1131, %v1305
        %v1307 = vpop.f32.mrf.mxu0
        %v1308 = vadd.f32 %v1135, %v1307
        %v1309 = vpop.f32.mrf.mxu0
        %v1310 = vadd.f32 %v1131, %v1309
        %v1311 = vpop.f32.mrf.mxu0
        %v1312 = vadd.f32 %v1135, %v1311
        %1313 = vmatprep.mubr.bf16.mxu0 0
        %1314 = vmatmul.mubr.bf16.gmra.mxu0 %v1093
        %v1315 = vpop.f32.mrf.mxu0
        %v1316 = vadd.f32 %v1131, %v1315
        %v1317 = vpop.f32.mrf.mxu0
        %v1318 = vadd.f32 %v1135, %v1317
        %v1319 = vpop.f32.mrf.mxu0
        %v1320 = vadd.f32 %v1131, %v1319
        %v1321 = vpop.f32.mrf.mxu0
        %v1322 = vadd.f32 %v1135, %v1321
        %1323 = vdwg.mxu0
        %1324 = vmatprep.subr.bf16.mxu0 0
        %1325 = vmatpush1.bf16.msra.mxu0 %v1246
        %1326 = vmatprep.subr.bf16.mxu0 0
        %1327 = vmatpush1.bf16.msra.mxu0 %v1243
        %1328 = vmatprep.subr.bf16.mxu0 0
        %1329 = vmatpush1.bf16.msra.mxu0 %v1240
        %1330 = vmatprep.subr.bf16.mxu0 0
        %1331 = vmatpush1.bf16.msra.mxu0 %v1237
        %1332 = vmatprep.subr.bf16.mxu0 0
        %1333 = vmatpush1.bf16.msra.mxu0 %v1234
        %1334 = vmatprep.subr.bf16.mxu0 0
        %1335 = vmatpush1.bf16.msra.mxu0 %v1231
        %1336 = vmatprep.subr.bf16.mxu0 0
        %1337 = vmatpush1.bf16.msra.mxu0 %v1228
        %1338 = vmatprep.subr.bf16.mxu0 0
        %1339 = vmatpush1.bf16.msra.mxu0 %v1225
        %1340 = vmatprep.subr.bf16.mxu0 0
        %1341 = vmatpush2.bf16.msra.mxu0 0
        %1342 = vmatprep.subr.bf16.mxu0 0
        %1343 = vmatpush2.bf16.msra.mxu0 0
        %1344 = vmatprep.subr.bf16.mxu0 0
        %1345 = vmatpush2.bf16.msra.mxu0 0
        %1346 = vmatprep.subr.bf16.mxu0 0
        %1347 = vmatpush2.bf16.msra.mxu0 0
        %1348 = vmatprep.subr.bf16.mxu0 0
        %1349 = vmatpush2.bf16.msra.mxu0 0
        %1350 = vmatprep.subr.bf16.mxu0 0
        %1351 = vmatpush2.bf16.msra.mxu0 0
        %1352 = vmatprep.subr.bf16.mxu0 0
        %1353 = vmatpush2.bf16.msra.mxu0 0
        %1354 = vmatprep.subr.bf16.mxu0 0
        %1355 = vmatpush2.bf16.msra.mxu0 0
        %1356 = vmatprep.mubr.bf16.mxu0 0
        %1357 = vmatmul.mubr.bf16.gmra.mxu0 %v1092
        %v1358 = vpop.f32.mrf.mxu0
        %v1359 = vadd.f32 %v1139, %v1358
        %v1360 = vpop.f32.mrf.mxu0
        %v1361 = vpop.f32.mrf.mxu0
        %v1362 = vadd.f32 %v1139, %v1361
        %v1363 = vpop.f32.mrf.mxu0
        %1364 = vmatprep.mubr.bf16.mxu0 0
        %1365 = vmatmul.mubr.bf16.gmra.mxu0 %v1093
        %v1366 = vpop.f32.mrf.mxu0
        %v1367 = vadd.f32 %v1139, %v1366
        %v1368 = vpop.f32.mrf.mxu0
        %v1369 = vpop.f32.mrf.mxu0
        %v1370 = vadd.f32 %v1139, %v1369
        %v1371 = vpop.f32.mrf.mxu0
        %1372 = vdwg.mxu0
        %v1373 = vpack.c.bf16 %v1310, %v1306
        %v1374 = vpack.c.bf16 %v1320, %v1316
        %v1375 = vpack.c.bf16 %v1312, %v1308
        %v1376 = vpack.c.bf16 %v1322, %v1318
        %v1377 = vpack.c.bf16 %v1362, %v1359
        %v1378 = vpack.c.bf16 %v1370, %v1367
        %1379 = vmatprep.subr.bf16.mxu0 0
        %1380 = vmatpush1.bf16.xpose.msra.mxu0 0
        %1381 = vmatprep.subr.bf16.mxu0 0
        %1382 = vmatpush1.bf16.xpose.msra.mxu0 0
        %1383 = vmatprep.subr.bf16.mxu0 0
        %1384 = vmatpush1.bf16.xpose.msra.mxu0 0
        %1385 = vmatprep.subr.bf16.mxu0 0
        %1386 = vmatpush1.bf16.xpose.msra.mxu0 0
        %1387 = vmatprep.subr.bf16.mxu0 0
        %1388 = vmatpush1.bf16.xpose.msra.mxu0 0
        %1389 = vmatprep.subr.bf16.mxu0 0
        %1390 = vmatpush1.bf16.xpose.msra.mxu0 0
        %1391 = vmatprep.subr.bf16.mxu0 0
        %1392 = vmatpush1.bf16.xpose.msra.mxu0 0
        %1393 = vmatprep.subr.bf16.mxu0 0
        %1394 = vmatpush1.bf16.xpose.msra.mxu0 %v1375
        %1395 = vmatprep.subr.bf16.mxu0 0
        %1396 = vmatpush2.bf16.xpose.msra.mxu0 0
        %1397 = vmatprep.subr.bf16.mxu0 0
        %1398 = vmatpush2.bf16.xpose.msra.mxu0 0
        %1399 = vmatprep.subr.bf16.mxu0 0
        %1400 = vmatpush2.bf16.xpose.msra.mxu0 0
        %1401 = vmatprep.subr.bf16.mxu0 0
        %1402 = vmatpush2.bf16.xpose.msra.mxu0 0
        %1403 = vmatprep.subr.bf16.mxu0 0
        %1404 = vmatpush2.bf16.xpose.msra.mxu0 0
        %1405 = vmatprep.subr.bf16.mxu0 0
        %1406 = vmatpush2.bf16.xpose.msra.mxu0 0
        %1407 = vmatprep.subr.bf16.mxu0 0
        %1408 = vmatpush2.bf16.xpose.msra.mxu0 0
        %1409 = vmatprep.subr.bf16.mxu0 0
        %1410 = vmatpush2.bf16.xpose.msra.mxu0 0
        %1411 = vmatprep.mubr.bf16.mxu0 0
        %1412 = vmatmul.mubr.bf16.gmra.mxu0 %v1373
        %v1413 = vpop.f32.mrf.mxu0
        %v1414 = vadd.f32 0.0, %v1413
        %v1415 = vpop.f32.mrf.mxu0
        %v1416 = vpop.f32.mrf.mxu0
        %v1417 = vadd.f32 0.0, %v1416
        %v1418 = vpop.f32.mrf.mxu0
        %1419 = vdwg.mxu0
        %1420 = vmatprep.subr.bf16.mxu0 0
        %1421 = vmatpush1.bf16.xpose.msra.mxu0 0
        %1422 = vmatprep.subr.bf16.mxu0 0
        %1423 = vmatpush1.bf16.xpose.msra.mxu0 0
        %1424 = vmatprep.subr.bf16.mxu0 0
        %1425 = vmatpush1.bf16.xpose.msra.mxu0 0
        %1426 = vmatprep.subr.bf16.mxu0 0
        %1427 = vmatpush1.bf16.xpose.msra.mxu0 0
        %1428 = vmatprep.subr.bf16.mxu0 0
        %1429 = vmatpush1.bf16.xpose.msra.mxu0 0
        %1430 = vmatprep.subr.bf16.mxu0 0
        %1431 = vmatpush1.bf16.xpose.msra.mxu0 0
        %1432 = vmatprep.subr.bf16.mxu0 0
        %1433 = vmatpush1.bf16.xpose.msra.mxu0 0
        %1434 = vmatprep.subr.bf16.mxu0 0
        %1435 = vmatpush1.bf16.xpose.msra.mxu0 %v1376
        %1436 = vmatprep.subr.bf16.mxu0 0
        %1437 = vmatpush2.bf16.xpose.msra.mxu0 0
        %1438 = vmatprep.subr.bf16.mxu0 0
        %1439 = vmatpush2.bf16.xpose.msra.mxu0 0
        %1440 = vmatprep.subr.bf16.mxu0 0
        %1441 = vmatpush2.bf16.xpose.msra.mxu0 0
        %1442 = vmatprep.subr.bf16.mxu0 0
        %1443 = vmatpush2.bf16.xpose.msra.mxu0 0
        %1444 = vmatprep.subr.bf16.mxu0 0
        %1445 = vmatpush2.bf16.xpose.msra.mxu0 0
        %1446 = vmatprep.subr.bf16.mxu0 0
        %1447 = vmatpush2.bf16.xpose.msra.mxu0 0
        %1448 = vmatprep.subr.bf16.mxu0 0
        %1449 = vmatpush2.bf16.xpose.msra.mxu0 0
        %1450 = vmatprep.subr.bf16.mxu0 0
        %1451 = vmatpush2.bf16.xpose.msra.mxu0 0
        %1452 = vmatprep.mubr.bf16.mxu0 0
        %1453 = vmatmul.mubr.bf16.gmra.mxu0 %v1374
        %v1454 = vpop.f32.mrf.mxu0
        %v1455 = vadd.f32 0.0, %v1454
        %v1456 = vpop.f32.mrf.mxu0
        %v1457 = vpop.f32.mrf.mxu0
        %v1458 = vadd.f32 0.0, %v1457
        %v1459 = vpop.f32.mrf.mxu0
        %1460 = vdwg.mxu0
        %v1461 = vmul.f32 %v1414, 0.125
        %v1462 = vmul.f32 %v1417, 0.125
        %v1463 = vmul.f32 %v1455, 0.125
        %v1464 = vmul.f32 %v1458, 0.125
        %v1465 = vld [vmem:[%s1020] sm:$0xf]
        %v1466 = vld [vmem:[%s1020 + $0x4] sm:$0xf]
        %v1467 = vld [vmem:[%s1020 + $0x8] sm:$0xf]
        %v1468 = vld [vmem:[%s1020 + $0xc] sm:$0xf]
        %v1469 = vunpack.c.l.bf16 %v1465
        %v1470 = vunpack.c.l.bf16 %v1466
        %v1471 = vunpack.c.l.bf16 %v1467
        %v1472 = vunpack.c.l.bf16 %v1468
        %v1473 = vadd.f32 %v1461, %v1469
        %v1474 = vadd.f32 %v1462, %v1470
        %v1475 = vadd.f32 %v1463, %v1471
        %v1476 = vadd.f32 %v1464, %v1472
        %vm1477 = vcmask 130048
        %v1478 = vsel %vm1477, %v1473, -inf
        %1479 = vmax.xlane.f32.xlu0 %v1478
        %v1480 = vpop.xlane.xlu0 %1479
        %v1481 = vsel %vm1477, %v1474, -inf
        %1482 = vmax.xlane.f32.xlu0 %v1481
        %v1483 = vpop.xlane.xlu0 %1482
        %v1484 = vsel %vm1477, %v1475, -inf
        %1485 = vmax.xlane.f32.xlu0 %v1484
        %v1486 = vpop.xlane.xlu0 %1485
        %v1487 = vsel %vm1477, %v1476, -inf
        %1488 = vmax.xlane.f32.xlu0 %v1487
        %v1489 = vpop.xlane.xlu0 %1488
        %v1490 = vsub.f32 %v1473, %v1480
        %v1491 = vsub.f32 %v1474, %v1483
        %v1492 = vsub.f32 %v1475, %v1486
        %v1493 = vsub.f32 %v1476, %v1489
        %v1494 = vmul.f32 %v1490, 1.442695
        %v1495 = vpow.pop %v1494
        %v1496 = vmul.f32 %v1491, 1.442695
        %v1497 = vpow.pop %v1496
        %v1498 = vmul.f32 %v1492, 1.442695
        %v1499 = vpow.pop %v1498
        %v1500 = vmul.f32 %v1493, 1.442695
        %v1501 = vpow.pop %v1500
        %v1502 = vsel %vm1477, %v1495, 0.0
        %1503 = vadd.xlane.f32.xlu0 %v1502
        %v1504 = vpop.xlane.xlu0 %1503
        %v1505 = vsel %vm1477, %v1497, 0.0
        %1506 = vadd.xlane.f32.xlu0 %v1505
        %v1507 = vpop.xlane.xlu0 %1506
        %v1508 = vsel %vm1477, %v1499, 0.0
        %1509 = vadd.xlane.f32.xlu0 %v1508
        %v1510 = vpop.xlane.xlu0 %1509
        %v1511 = vsel %vm1477, %v1501, 0.0
        %1512 = vadd.xlane.f32.xlu0 %v1511
        %v1513 = vpop.xlane.xlu0 %1512
        %v1514 = vrcp.pop %v1504
        %v1515 = vrcp.pop %v1507
        %v1516 = vrcp.pop %v1510
        %v1517 = vrcp.pop %v1513
        %v1518 = vmul.f32 %v1495, %v1514
        %v1519 = vmul.f32 %v1497, %v1515
        %v1520 = vmul.f32 %v1499, %v1516
        %v1521 = vmul.f32 %v1501, %v1517
        %v1522 = vpack.c.bf16 %v1519, %v1518
        %v1523 = vpack.c.bf16 %v1521, %v1520
        %v1525 = vsel %vm1477, %v1522, 0
        %1527 = vmatprep.subr.bf16.mxu0 0
        %1528 = vmatpush1.bf16.msra.mxu0 0
        %1529 = vmatprep.subr.bf16.mxu0 0
        %1530 = vmatpush1.bf16.msra.mxu0 0
        %1531 = vmatprep.subr.bf16.mxu0 0
        %1532 = vmatpush1.bf16.msra.mxu0 0
        %1533 = vmatprep.subr.bf16.mxu0 0
        %1534 = vmatpush1.bf16.msra.mxu0 0
        %1535 = vmatprep.subr.bf16.mxu0 0
        %1536 = vmatpush1.bf16.msra.mxu0 0
        %1537 = vmatprep.subr.bf16.mxu0 0
        %1538 = vmatpush1.bf16.msra.mxu0 0
        %1539 = vmatprep.subr.bf16.mxu0 0
        %1540 = vmatpush1.bf16.msra.mxu0 0
        %1541 = vmatprep.subr.bf16.mxu0 0
        %1542 = vmatpush1.bf16.msra.mxu0 %v1377
        %1543 = vmatprep.subr.bf16.mxu0 0
        %1544 = vmatpush2.bf16.msra.mxu0 0
        %1545 = vmatprep.subr.bf16.mxu0 0
        %1546 = vmatpush2.bf16.msra.mxu0 0
        %1547 = vmatprep.subr.bf16.mxu0 0
        %1548 = vmatpush2.bf16.msra.mxu0 0
        %1549 = vmatprep.subr.bf16.mxu0 0
        %1550 = vmatpush2.bf16.msra.mxu0 0
        %1551 = vmatprep.subr.bf16.mxu0 0
        %1552 = vmatpush2.bf16.msra.mxu0 0
        %1553 = vmatprep.subr.bf16.mxu0 0
        %1554 = vmatpush2.bf16.msra.mxu0 0
        %1555 = vmatprep.subr.bf16.mxu0 0
        %1556 = vmatpush2.bf16.msra.mxu0 0
        %1557 = vmatprep.subr.bf16.mxu0 0
        %1558 = vmatpush2.bf16.msra.mxu0 0
        %1559 = vmatprep.mubr.bf16.mxu0 0
        %1560 = vmatmul.mubr.bf16.gmra.mxu0 %v1525
        %v1561 = vpop.f32.mrf.mxu0
        %v1562 = vadd.f32 0.0, %v1561
        %v1563 = vpop.f32.mrf.mxu0
        %v1564 = vpop.f32.mrf.mxu0
        %v1565 = vadd.f32 0.0, %v1564
        %v1566 = vpop.f32.mrf.mxu0
        %1567 = vdwg.mxu0
        %v1569 = vsel %vm1477, %v1523, 0
        %1571 = vmatprep.subr.bf16.mxu0 0
        %1572 = vmatpush1.bf16.msra.mxu0 0
        %1573 = vmatprep.subr.bf16.mxu0 0
        %1574 = vmatpush1.bf16.msra.mxu0 0
        %1575 = vmatprep.subr.bf16.mxu0 0
        %1576 = vmatpush1.bf16.msra.mxu0 0
        %1577 = vmatprep.subr.bf16.mxu0 0
        %1578 = vmatpush1.bf16.msra.mxu0 0
        %1579 = vmatprep.subr.bf16.mxu0 0
        %1580 = vmatpush1.bf16.msra.mxu0 0
        %1581 = vmatprep.subr.bf16.mxu0 0
        %1582 = vmatpush1.bf16.msra.mxu0 0
        %1583 = vmatprep.subr.bf16.mxu0 0
        %1584 = vmatpush1.bf16.msra.mxu0 0
        %1585 = vmatprep.subr.bf16.mxu0 0
        %1586 = vmatpush1.bf16.msra.mxu0 %v1378
        %1587 = vmatprep.subr.bf16.mxu0 0
        %1588 = vmatpush2.bf16.msra.mxu0 0
        %1589 = vmatprep.subr.bf16.mxu0 0
        %1590 = vmatpush2.bf16.msra.mxu0 0
        %1591 = vmatprep.subr.bf16.mxu0 0
        %1592 = vmatpush2.bf16.msra.mxu0 0
        %1593 = vmatprep.subr.bf16.mxu0 0
        %1594 = vmatpush2.bf16.msra.mxu0 0
        %1595 = vmatprep.subr.bf16.mxu0 0
        %1596 = vmatpush2.bf16.msra.mxu0 0
        %1597 = vmatprep.subr.bf16.mxu0 0
        %1598 = vmatpush2.bf16.msra.mxu0 0
        %1599 = vmatprep.subr.bf16.mxu0 0
        %1600 = vmatpush2.bf16.msra.mxu0 0
        %1601 = vmatprep.subr.bf16.mxu0 0
        %1602 = vmatpush2.bf16.msra.mxu0 0
        %1603 = vmatprep.mubr.bf16.mxu0 0
        %1604 = vmatmul.mubr.bf16.gmra.mxu0 %v1569
        %v1605 = vpop.f32.mrf.mxu0
        %v1606 = vadd.f32 0.0, %v1605
        %v1607 = vpop.f32.mrf.mxu0
        %v1608 = vpop.f32.mrf.mxu0
        %v1609 = vadd.f32 0.0, %v1608
        %v1610 = vpop.f32.mrf.mxu0
        %1611 = vdwg.mxu0
        %v1612 = vpack.c.bf16 %v1565, %v1562
        %v1613 = vpack.c.bf16 %v1609, %v1606
        %v1614 = vld [vmem:[%s1043] sm:$0xf]
        %v1615 = vld [vmem:[%s1043 + $0x4] sm:$0xf]
        %v1616 = vld [vmem:[%s1043 + $0x8] sm:$0xf]
        %v1617 = vld [vmem:[%s1043 + $0xc] sm:$0xf]
        %v1618 = vld [vmem:[%s1043 + $0x10] sm:$0xf]
        %v1619 = vld [vmem:[%s1043 + $0x14] sm:$0xf]
        %v1620 = vld [vmem:[%s1043 + $0x18] sm:$0xf]
        %v1621 = vld [vmem:[%s1043 + $0x1c] sm:$0xf]
        %v1622 = vld [vmem:[%s1043 + $0x20] sm:$0xf]
        %v1623 = vld [vmem:[%s1043 + $0x24] sm:$0xf]
        %v1624 = vld [vmem:[%s1043 + $0x28] sm:$0xf]
        %v1625 = vld [vmem:[%s1043 + $0x2c] sm:$0xf]
        %v1626 = vld [vmem:[%s1043 + $0x30] sm:$0xf]
        %v1627 = vld [vmem:[%s1043 + $0x34] sm:$0xf]
        %v1628 = vld [vmem:[%s1043 + $0x38] sm:$0xf]
        %v1629 = vld [vmem:[%s1043 + $0x3c] sm:$0xf]
        %v1630 = vld [vmem:[%s833] sm:$0x1]
        %v1632 = vlaneseq
        %v1633 = vshrl.u32 %v1632, 7
        %v1634 = vsub.s32 0, %v1633
        %v1635 = vrot.slane %v1630, %v1634
        %v1653 = vunpack.c.l.b16 %v1614
        %v1654 = vunpack.c.l.b16 %v1615
        %v1655 = vunpack.c.l.b16 %v1616
        %v1656 = vunpack.c.l.b16 %v1617
        %v1657 = vunpack.c.l.b16 %v1618
        %v1658 = vunpack.c.l.b16 %v1619
        %v1659 = vunpack.c.l.b16 %v1620
        %v1660 = vunpack.c.l.b16 %v1621
        %v1661 = vunpack.c.l.b16 %v1622
        %v1662 = vunpack.c.l.b16 %v1623
        %v1663 = vunpack.c.l.b16 %v1624
        %v1664 = vunpack.c.l.b16 %v1625
        %v1665 = vunpack.c.l.b16 %v1626
        %v1666 = vunpack.c.l.b16 %v1627
        %v1667 = vunpack.c.l.b16 %v1628
        %v1668 = vunpack.c.l.b16 %v1629
        %v1669 = vpack.c.b16 %v1654, %v1653
        %v1670 = vpack.c.b16 %v1656, %v1655
        %v1671 = vpack.c.b16 %v1658, %v1657
        %v1672 = vpack.c.b16 %v1660, %v1659
        %v1673 = vpack.c.b16 %v1662, %v1661
        %v1674 = vpack.c.b16 %v1664, %v1663
        %v1675 = vpack.c.b16 %v1666, %v1665
        %v1676 = vpack.c.b16 %v1668, %v1667
        %1685 = vmatprep.subr.bf16.mxu0 0
        %1686 = vmatpush1.bf16.msra.mxu0 %v1676
        %1687 = vmatprep.subr.bf16.mxu0 0
        %1688 = vmatpush1.bf16.msra.mxu0 %v1675
        %1689 = vmatprep.subr.bf16.mxu0 0
        %1690 = vmatpush1.bf16.msra.mxu0 %v1674
        %1691 = vmatprep.subr.bf16.mxu0 0
        %1692 = vmatpush1.bf16.msra.mxu0 %v1673
        %1693 = vmatprep.subr.bf16.mxu0 0
        %1694 = vmatpush1.bf16.msra.mxu0 %v1672
        %1695 = vmatprep.subr.bf16.mxu0 0
        %1696 = vmatpush1.bf16.msra.mxu0 %v1671
        %1697 = vmatprep.subr.bf16.mxu0 0
        %1698 = vmatpush1.bf16.msra.mxu0 %v1670
        %1699 = vmatprep.subr.bf16.mxu0 0
        %1700 = vmatpush1.bf16.msra.mxu0 %v1669
        %1701 = vmatprep.subr.bf16.mxu0 0
        %1702 = vmatpush2.bf16.msra.mxu0 0
        %1703 = vmatprep.subr.bf16.mxu0 0
        %1704 = vmatpush2.bf16.msra.mxu0 0
        %1705 = vmatprep.subr.bf16.mxu0 0
        %1706 = vmatpush2.bf16.msra.mxu0 0
        %1707 = vmatprep.subr.bf16.mxu0 0
        %1708 = vmatpush2.bf16.msra.mxu0 0
        %1709 = vmatprep.subr.bf16.mxu0 0
        %1710 = vmatpush2.bf16.msra.mxu0 0
        %1711 = vmatprep.subr.bf16.mxu0 0
        %1712 = vmatpush2.bf16.msra.mxu0 0
        %1713 = vmatprep.subr.bf16.mxu0 0
        %1714 = vmatpush2.bf16.msra.mxu0 0
        %1715 = vmatprep.subr.bf16.mxu0 0
        %1716 = vmatpush2.bf16.msra.mxu0 0
        %1717 = vmatprep.mubr.bf16.mxu0 0
        %1718 = vmatmul.mubr.bf16.gmra.mxu0 %v1612
        %v1719 = vpop.f32.mrf.mxu0
        %v1720 = vadd.f32 %v1635, %v1719
        %v1721 = vpop.f32.mrf.mxu0
        %v1722 = vpop.f32.mrf.mxu0
        %v1723 = vadd.f32 %v1635, %v1722
        %v1724 = vpop.f32.mrf.mxu0
        %1725 = vmatprep.mubr.bf16.mxu0 0
        %1726 = vmatmul.mubr.bf16.gmra.mxu0 %v1613
        %v1727 = vpop.f32.mrf.mxu0
        %v1728 = vadd.f32 %v1635, %v1727
        %v1729 = vpop.f32.mrf.mxu0
        %v1730 = vpop.f32.mrf.mxu0
        %v1731 = vadd.f32 %v1635, %v1730
        %v1732 = vpop.f32.mrf.mxu0
        %1733 = vdwg.mxu0
        %v1734 = vadd.f32 %v1088, %v1720
        %v1735 = vadd.f32 %v1089, %v1723
        %v1736 = vadd.f32 %v1090, %v1728
        %v1737 = vadd.f32 %v1091, %v1731
        %v1738 = vld [vmem:[%s1046] sm:$0x1]
        %v1739 = vld [vmem:[%s1049] sm:$0x1]
        %1740 = vadd.xlane.f32.xlu0 %v1734
        %v1741 = vpop.xlane.xlu0 %1740
        %1742 = vadd.xlane.f32.xlu0 %v1735
        %v1743 = vpop.xlane.xlu0 %1742
        %1744 = vadd.xlane.f32.xlu0 %v1736
        %v1745 = vpop.xlane.xlu0 %1744
        %1746 = vadd.xlane.f32.xlu0 %v1737
        %v1747 = vpop.xlane.xlu0 %1746
        %v1748 = vmul.f32 %v1741, 0.015625
        %v1749 = vmul.f32 %v1743, 0.015625
        %v1750 = vmul.f32 %v1745, 0.015625
        %v1751 = vmul.f32 %v1747, 0.015625
        %v1752 = vmul.f32 %v1734, %v1734
        %v1753 = vmul.f32 %v1735, %v1735
        %v1754 = vmul.f32 %v1736, %v1736
        %v1755 = vmul.f32 %v1737, %v1737
        %1756 = vadd.xlane.f32.xlu0 %v1752
        %v1757 = vpop.xlane.xlu0 %1756
        %1758 = vadd.xlane.f32.xlu0 %v1753
        %v1759 = vpop.xlane.xlu0 %1758
        %1760 = vadd.xlane.f32.xlu0 %v1754
        %v1761 = vpop.xlane.xlu0 %1760
        %1762 = vadd.xlane.f32.xlu0 %v1755
        %v1763 = vpop.xlane.xlu0 %1762
        %v1764 = vmul.f32 %v1757, 0.015625
        %v1765 = vmul.f32 %v1759, 0.015625
        %v1766 = vmul.f32 %v1761, 0.015625
        %v1767 = vmul.f32 %v1763, 0.015625
        %v1768 = vmul.f32 %v1748, %v1748
        %v1769 = vmul.f32 %v1749, %v1749
        %v1770 = vmul.f32 %v1750, %v1750
        %v1771 = vmul.f32 %v1751, %v1751
        %v1772 = vsub.f32 %v1764, %v1768
        %v1773 = vsub.f32 %v1765, %v1769
        %v1774 = vsub.f32 %v1766, %v1770
        %v1775 = vsub.f32 %v1767, %v1771
        %v1776 = vmax.f32 %v1772, 0.0
        %v1777 = vmax.f32 %v1773, 0.0
        %v1778 = vmax.f32 %v1774, 0.0
        %v1779 = vmax.f32 %v1775, 0.0
        %v1780 = vsub.f32 %v1734, %v1748
        %v1781 = vsub.f32 %v1735, %v1749
        %v1782 = vsub.f32 %v1736, %v1750
        %v1783 = vsub.f32 %v1737, %v1751
        %v1784 = vadd.f32 %v1776, 1e-05
        %v1785 = vadd.f32 %v1777, 1e-05
        %v1786 = vadd.f32 %v1778, 1e-05
        %v1787 = vadd.f32 %v1779, 1e-05
        %v1788 = vrsqrt.pop %v1784
        %v1789 = vrsqrt.pop %v1785
        %v1790 = vrsqrt.pop %v1786
        %v1791 = vrsqrt.pop %v1787
        %v1792 = vmul.f32 %v1780, %v1788
        %v1793 = vmul.f32 %v1781, %v1789
        %v1794 = vmul.f32 %v1782, %v1790
        %v1795 = vmul.f32 %v1783, %v1791
        %v1797 = vlaneseq
        %v1798 = vshrl.u32 %v1797, 7
        %v1799 = vsub.s32 0, %v1798
        %v1800 = vrot.slane %v1738, %v1799
        %v1802 = vmul.f32 %v1792, %v1800
        %v1803 = vmul.f32 %v1793, %v1800
        %v1804 = vmul.f32 %v1794, %v1800
        %v1805 = vmul.f32 %v1795, %v1800
        %v1807 = vlaneseq
        %v1808 = vshrl.u32 %v1807, 7
        %v1809 = vsub.s32 0, %v1808
        %v1810 = vrot.slane %v1739, %v1809
        %v1812 = vadd.f32 %v1802, %v1810
        %v1813 = vadd.f32 %v1803, %v1810
        %v1814 = vadd.f32 %v1804, %v1810
        %v1815 = vadd.f32 %v1805, %v1810
        %v1816 = vpack.c.bf16 %v1813, %v1812
        %v1817 = vpack.c.bf16 %v1815, %v1814
        %v1818 = vld [vmem:[%s842] sm:$0xff]
        %v1819 = vld [vmem:[%s842 + $0x8] sm:$0xff]
        %v1820 = vld [vmem:[%s842 + $0x10] sm:$0xff]
        %v1821 = vld [vmem:[%s842 + $0x18] sm:$0xff]
        %v1822 = vld [vmem:[%s842 + $0x20] sm:$0xff]
        %v1823 = vld [vmem:[%s842 + $0x28] sm:$0xff]
        %v1824 = vld [vmem:[%s842 + $0x30] sm:$0xff]
        %v1825 = vld [vmem:[%s842 + $0x38] sm:$0xff]
        %v1826 = vld [vmem:[%s842 + $0x40] sm:$0xff]
        %v1827 = vld [vmem:[%s842 + $0x48] sm:$0xff]
        %v1828 = vld [vmem:[%s842 + $0x50] sm:$0xff]
        %v1829 = vld [vmem:[%s842 + $0x58] sm:$0xff]
        %v1830 = vld [vmem:[%s842 + $0x60] sm:$0xff]
        %v1831 = vld [vmem:[%s842 + $0x68] sm:$0xff]
        %v1832 = vld [vmem:[%s842 + $0x70] sm:$0xff]
        %v1833 = vld [vmem:[%s842 + $0x78] sm:$0xff]
        %v1834 = vld [vmem:[%s851] sm:$0x3]
        %v1836 = vlaneseq
        %v1837 = vshrl.u32 %v1836, 7
        %v1838 = vsub.s32 0, %v1837
        %v1839 = vrot.slane %v1834, %v1838
        %v1840 = vlaneseq
        %v1841 = vshrl.u32 %v1840, 7
        %v1842 = vsub.s32 1, %v1841
        %v1843 = vrot.slane %v1834, %v1842
        %v1862 = vunpack.c.l.b16 %v1818
        %v1863 = vunpack.c.h.b16 %v1818
        %v1864 = vunpack.c.l.b16 %v1819
        %v1865 = vunpack.c.h.b16 %v1819
        %v1866 = vunpack.c.l.b16 %v1820
        %v1867 = vunpack.c.h.b16 %v1820
        %v1868 = vunpack.c.l.b16 %v1821
        %v1869 = vunpack.c.h.b16 %v1821
        %v1870 = vunpack.c.l.b16 %v1822
        %v1871 = vunpack.c.h.b16 %v1822
        %v1872 = vunpack.c.l.b16 %v1823
        %v1873 = vunpack.c.h.b16 %v1823
        %v1874 = vunpack.c.l.b16 %v1824
        %v1875 = vunpack.c.h.b16 %v1824
        %v1876 = vunpack.c.l.b16 %v1825
        %v1877 = vunpack.c.h.b16 %v1825
        %v1878 = vunpack.c.l.b16 %v1826
        %v1879 = vunpack.c.h.b16 %v1826
        %v1880 = vunpack.c.l.b16 %v1827
        %v1881 = vunpack.c.h.b16 %v1827
        %v1882 = vunpack.c.l.b16 %v1828
        %v1883 = vunpack.c.h.b16 %v1828
        %v1884 = vunpack.c.l.b16 %v1829
        %v1885 = vunpack.c.h.b16 %v1829
        %v1886 = vunpack.c.l.b16 %v1830
        %v1887 = vunpack.c.h.b16 %v1830
        %v1888 = vunpack.c.l.b16 %v1831
        %v1889 = vunpack.c.h.b16 %v1831
        %v1890 = vunpack.c.l.b16 %v1832
        %v1891 = vunpack.c.h.b16 %v1832
        %v1892 = vunpack.c.l.b16 %v1833
        %v1893 = vunpack.c.h.b16 %v1833
        %v1894 = vpack.c.b16 %v1864, %v1862
        %v1895 = vpack.c.b16 %v1865, %v1863
        %v1896 = vpack.c.b16 %v1868, %v1866
        %v1897 = vpack.c.b16 %v1869, %v1867
        %v1898 = vpack.c.b16 %v1872, %v1870
        %v1899 = vpack.c.b16 %v1873, %v1871
        %v1900 = vpack.c.b16 %v1876, %v1874
        %v1901 = vpack.c.b16 %v1877, %v1875
        %v1902 = vpack.c.b16 %v1880, %v1878
        %v1903 = vpack.c.b16 %v1881, %v1879
        %v1904 = vpack.c.b16 %v1884, %v1882
        %v1905 = vpack.c.b16 %v1885, %v1883
        %v1906 = vpack.c.b16 %v1888, %v1886
        %v1907 = vpack.c.b16 %v1889, %v1887
        %v1908 = vpack.c.b16 %v1892, %v1890
        %v1909 = vpack.c.b16 %v1893, %v1891
        %1926 = vmatprep.subr.bf16.mxu0 %v1909
        %1927 = vmatpush1.bf16.msra.mxu0 %v1908
        %1928 = vmatprep.subr.bf16.mxu0 %v1907
        %1929 = vmatpush1.bf16.msra.mxu0 %v1906
        %1930 = vmatprep.subr.bf16.mxu0 %v1905
        %1931 = vmatpush1.bf16.msra.mxu0 %v1904
        %1932 = vmatprep.subr.bf16.mxu0 %v1903
        %1933 = vmatpush1.bf16.msra.mxu0 %v1902
        %1934 = vmatprep.subr.bf16.mxu0 %v1901
        %1935 = vmatpush1.bf16.msra.mxu0 %v1900
        %1936 = vmatprep.subr.bf16.mxu0 %v1899
        %1937 = vmatpush1.bf16.msra.mxu0 %v1898
        %1938 = vmatprep.subr.bf16.mxu0 %v1897
        %1939 = vmatpush1.bf16.msra.mxu0 %v1896
        %1940 = vmatprep.subr.bf16.mxu0 %v1895
        %1941 = vmatpush1.bf16.msra.mxu0 %v1894
        %1942 = vmatprep.subr.bf16.mxu0 0
        %1943 = vmatpush2.bf16.msra.mxu0 0
        %1944 = vmatprep.subr.bf16.mxu0 0
        %1945 = vmatpush2.bf16.msra.mxu0 0
        %1946 = vmatprep.subr.bf16.mxu0 0
        %1947 = vmatpush2.bf16.msra.mxu0 0
        %1948 = vmatprep.subr.bf16.mxu0 0
        %1949 = vmatpush2.bf16.msra.mxu0 0
        %1950 = vmatprep.subr.bf16.mxu0 0
        %1951 = vmatpush2.bf16.msra.mxu0 0
        %1952 = vmatprep.subr.bf16.mxu0 0
        %1953 = vmatpush2.bf16.msra.mxu0 0
        %1954 = vmatprep.subr.bf16.mxu0 0
        %1955 = vmatpush2.bf16.msra.mxu0 0
        %1956 = vmatprep.subr.bf16.mxu0 0
        %1957 = vmatpush2.bf16.msra.mxu0 0
        %1958 = vmatprep.mubr.bf16.mxu0 0
        %1959 = vmatmul.mubr.bf16.gmra.mxu0 %v1816
        %v1960 = vpop.f32.mrf.mxu0
        %v1961 = vadd.f32 %v1839, %v1960
        %v1962 = vpop.f32.mrf.mxu0
        %v1963 = vadd.f32 %v1843, %v1962
        %v1964 = vpop.f32.mrf.mxu0
        %v1965 = vadd.f32 %v1839, %v1964
        %v1966 = vpop.f32.mrf.mxu0
        %v1967 = vadd.f32 %v1843, %v1966
        %1968 = vmatprep.mubr.bf16.mxu0 0
        %1969 = vmatmul.mubr.bf16.gmra.mxu0 %v1817
        %v1970 = vpop.f32.mrf.mxu0
        %v1971 = vadd.f32 %v1839, %v1970
        %v1972 = vpop.f32.mrf.mxu0
        %v1973 = vadd.f32 %v1843, %v1972
        %v1974 = vpop.f32.mrf.mxu0
        %v1975 = vadd.f32 %v1839, %v1974
        %v1976 = vpop.f32.mrf.mxu0
        %v1977 = vadd.f32 %v1843, %v1976
        %1978 = vdwg.mxu0
        %v1979 = vmul.f32 %v1961, %v1961
        %v1980 = vmul.f32 %v1963, %v1963
        %v1981 = vmul.f32 %v1965, %v1965
        %v1982 = vmul.f32 %v1967, %v1967
        %v1983 = vmul.f32 %v1971, %v1971
        %v1984 = vmul.f32 %v1973, %v1973
        %v1985 = vmul.f32 %v1975, %v1975
        %v1986 = vmul.f32 %v1977, %v1977
        %v1987 = vmul.f32 %v1961, %v1979
        %v1988 = vmul.f32 %v1963, %v1980
        %v1989 = vmul.f32 %v1965, %v1981
        %v1990 = vmul.f32 %v1967, %v1982
        %v1991 = vmul.f32 %v1971, %v1983
        %v1992 = vmul.f32 %v1973, %v1984
        %v1993 = vmul.f32 %v1975, %v1985
        %v1994 = vmul.f32 %v1977, %v1986
        %v1995 = vmul.f32 %v1987, 0.044715
        %v1996 = vmul.f32 %v1988, 0.044715
        %v1997 = vmul.f32 %v1989, 0.044715
        %v1998 = vmul.f32 %v1990, 0.044715
        %v1999 = vmul.f32 %v1991, 0.044715
        %v2000 = vmul.f32 %v1992, 0.044715
        %v2001 = vmul.f32 %v1993, 0.044715
        %v2002 = vmul.f32 %v1994, 0.044715
        %v2003 = vadd.f32 %v1961, %v1995
        %v2004 = vadd.f32 %v1963, %v1996
        %v2005 = vadd.f32 %v1965, %v1997
        %v2006 = vadd.f32 %v1967, %v1998
        %v2007 = vadd.f32 %v1971, %v1999
        %v2008 = vadd.f32 %v1973, %v2000
        %v2009 = vadd.f32 %v1975, %v2001
        %v2010 = vadd.f32 %v1977, %v2002
        %v2011 = vmul.f32 %v2003, 0.7978846
        %v2012 = vmul.f32 %v2004, 0.7978846
        %v2013 = vmul.f32 %v2005, 0.7978846
        %v2014 = vmul.f32 %v2006, 0.7978846
        %v2015 = vmul.f32 %v2007, 0.7978846
        %v2016 = vmul.f32 %v2008, 0.7978846
        %v2017 = vmul.f32 %v2009, 0.7978846
        %v2018 = vmul.f32 %v2010, 0.7978846
        %v2019 = vtanh.pop %v2011
        %v2020 = vtanh.pop %v2012
        %v2021 = vtanh.pop %v2013
        %v2022 = vtanh.pop %v2014
        %v2023 = vtanh.pop %v2015
        %v2024 = vtanh.pop %v2016
        %v2025 = vtanh.pop %v2017
        %v2026 = vtanh.pop %v2018
        %v2027 = vadd.f32 %v2019, 1.0
        %v2028 = vadd.f32 %v2020, 1.0
        %v2029 = vadd.f32 %v2021, 1.0
        %v2030 = vadd.f32 %v2022, 1.0
        %v2031 = vadd.f32 %v2023, 1.0
        %v2032 = vadd.f32 %v2024, 1.0
        %v2033 = vadd.f32 %v2025, 1.0
        %v2034 = vadd.f32 %v2026, 1.0
        %v2035 = vmul.f32 %v2027, 0.5
        %v2036 = vmul.f32 %v2028, 0.5
        %v2037 = vmul.f32 %v2029, 0.5
        %v2038 = vmul.f32 %v2030, 0.5
        %v2039 = vmul.f32 %v2031, 0.5
        %v2040 = vmul.f32 %v2032, 0.5
        %v2041 = vmul.f32 %v2033, 0.5
        %v2042 = vmul.f32 %v2034, 0.5
        %v2043 = vmul.f32 %v1961, %v2035
        %v2044 = vmul.f32 %v1963, %v2036
        %v2045 = vmul.f32 %v1965, %v2037
        %v2046 = vmul.f32 %v1967, %v2038
        %v2047 = vmul.f32 %v1971, %v2039
        %v2048 = vmul.f32 %v1973, %v2040
        %v2049 = vmul.f32 %v1975, %v2041
        %v2050 = vmul.f32 %v1977, %v2042
        %v2051 = vpack.c.bf16 %v2045, %v2043
        %v2052 = vpack.c.bf16 %v2046, %v2044
        %v2053 = vpack.c.bf16 %v2049, %v2047
        %v2054 = vpack.c.bf16 %v2050, %v2048
        %v2055 = vld [vmem:[%s860] sm:$0xf]
        %v2056 = vld [vmem:[%s860 + $0x4] sm:$0xf]
        %v2057 = vld [vmem:[%s860 + $0x8] sm:$0xf]
        %v2058 = vld [vmem:[%s860 + $0xc] sm:$0xf]
        %v2059 = vld [vmem:[%s860 + $0x10] sm:$0xf]
        %v2060 = vld [vmem:[%s860 + $0x14] sm:$0xf]
        %v2061 = vld [vmem:[%s860 + $0x18] sm:$0xf]
        %v2062 = vld [vmem:[%s860 + $0x1c] sm:$0xf]
        %v2063 = vld [vmem:[%s860 + $0x20] sm:$0xf]
        %v2064 = vld [vmem:[%s860 + $0x24] sm:$0xf]
        %v2065 = vld [vmem:[%s860 + $0x28] sm:$0xf]
        %v2066 = vld [vmem:[%s860 + $0x2c] sm:$0xf]
        %v2067 = vld [vmem:[%s860 + $0x30] sm:$0xf]
        %v2068 = vld [vmem:[%s860 + $0x34] sm:$0xf]
        %v2069 = vld [vmem:[%s860 + $0x38] sm:$0xf]
        %v2070 = vld [vmem:[%s860 + $0x3c] sm:$0xf]
        %v2071 = vld [vmem:[%s860 + $0x40] sm:$0xf]
        %v2072 = vld [vmem:[%s860 + $0x44] sm:$0xf]
        %v2073 = vld [vmem:[%s860 + $0x48] sm:$0xf]
        %v2074 = vld [vmem:[%s860 + $0x4c] sm:$0xf]
        %v2075 = vld [vmem:[%s860 + $0x50] sm:$0xf]
        %v2076 = vld [vmem:[%s860 + $0x54] sm:$0xf]
        %v2077 = vld [vmem:[%s860 + $0x58] sm:$0xf]
        %v2078 = vld [vmem:[%s860 + $0x5c] sm:$0xf]
        %v2079 = vld [vmem:[%s860 + $0x60] sm:$0xf]
        %v2080 = vld [vmem:[%s860 + $0x64] sm:$0xf]
        %v2081 = vld [vmem:[%s860 + $0x68] sm:$0xf]
        %v2082 = vld [vmem:[%s860 + $0x6c] sm:$0xf]
        %v2083 = vld [vmem:[%s860 + $0x70] sm:$0xf]
        %v2084 = vld [vmem:[%s860 + $0x74] sm:$0xf]
        %v2085 = vld [vmem:[%s860 + $0x78] sm:$0xf]
        %v2086 = vld [vmem:[%s860 + $0x7c] sm:$0xf]
        %v2087 = vld [vmem:[%s868] sm:$0x1]
        %v2089 = vlaneseq
        %v2090 = vshrl.u32 %v2089, 7
        %v2091 = vsub.s32 0, %v2090
        %v2092 = vrot.slane %v2087, %v2091
        %v2126 = vunpack.c.l.b16 %v2055
        %v2127 = vunpack.c.l.b16 %v2056
        %v2128 = vunpack.c.l.b16 %v2057
        %v2129 = vunpack.c.l.b16 %v2058
        %v2130 = vunpack.c.l.b16 %v2059
        %v2131 = vunpack.c.l.b16 %v2060
        %v2132 = vunpack.c.l.b16 %v2061
        %v2133 = vunpack.c.l.b16 %v2062
        %v2134 = vunpack.c.l.b16 %v2063
        %v2135 = vunpack.c.l.b16 %v2064
        %v2136 = vunpack.c.l.b16 %v2065
        %v2137 = vunpack.c.l.b16 %v2066
        %v2138 = vunpack.c.l.b16 %v2067
        %v2139 = vunpack.c.l.b16 %v2068
        %v2140 = vunpack.c.l.b16 %v2069
        %v2141 = vunpack.c.l.b16 %v2070
        %v2142 = vunpack.c.l.b16 %v2071
        %v2143 = vunpack.c.l.b16 %v2072
        %v2144 = vunpack.c.l.b16 %v2073
        %v2145 = vunpack.c.l.b16 %v2074
        %v2146 = vunpack.c.l.b16 %v2075
        %v2147 = vunpack.c.l.b16 %v2076
        %v2148 = vunpack.c.l.b16 %v2077
        %v2149 = vunpack.c.l.b16 %v2078
        %v2150 = vunpack.c.l.b16 %v2079
        %v2151 = vunpack.c.l.b16 %v2080
        %v2152 = vunpack.c.l.b16 %v2081
        %v2153 = vunpack.c.l.b16 %v2082
        %v2154 = vunpack.c.l.b16 %v2083
        %v2155 = vunpack.c.l.b16 %v2084
        %v2156 = vunpack.c.l.b16 %v2085
        %v2157 = vunpack.c.l.b16 %v2086
        %v2158 = vpack.c.b16 %v2127, %v2126
        %v2159 = vpack.c.b16 %v2129, %v2128
        %v2160 = vpack.c.b16 %v2131, %v2130
        %v2161 = vpack.c.b16 %v2133, %v2132
        %v2162 = vpack.c.b16 %v2135, %v2134
        %v2163 = vpack.c.b16 %v2137, %v2136
        %v2164 = vpack.c.b16 %v2139, %v2138
        %v2165 = vpack.c.b16 %v2141, %v2140
        %v2166 = vpack.c.b16 %v2143, %v2142
        %v2167 = vpack.c.b16 %v2145, %v2144
        %v2168 = vpack.c.b16 %v2147, %v2146
        %v2169 = vpack.c.b16 %v2149, %v2148
        %v2170 = vpack.c.b16 %v2151, %v2150
        %v2171 = vpack.c.b16 %v2153, %v2152
        %v2172 = vpack.c.b16 %v2155, %v2154
        %v2173 = vpack.c.b16 %v2157, %v2156
        %2190 = vmatprep.subr.bf16.mxu0 0
        %2191 = vmatpush1.bf16.msra.mxu0 %v2165
        %2192 = vmatprep.subr.bf16.mxu0 0
        %2193 = vmatpush1.bf16.msra.mxu0 %v2164
        %2194 = vmatprep.subr.bf16.mxu0 0
        %2195 = vmatpush1.bf16.msra.mxu0 %v2163
        %2196 = vmatprep.subr.bf16.mxu0 0
        %2197 = vmatpush1.bf16.msra.mxu0 %v2162
        %2198 = vmatprep.subr.bf16.mxu0 0
        %2199 = vmatpush1.bf16.msra.mxu0 %v2161
        %2200 = vmatprep.subr.bf16.mxu0 0
        %2201 = vmatpush1.bf16.msra.mxu0 %v2160
        %2202 = vmatprep.subr.bf16.mxu0 0
        %2203 = vmatpush1.bf16.msra.mxu0 %v2159
        %2204 = vmatprep.subr.bf16.mxu0 0
        %2205 = vmatpush1.bf16.msra.mxu0 %v2158
        %2206 = vmatprep.subr.bf16.mxu0 0
        %2207 = vmatpush2.bf16.msra.mxu0 %v2173
        %2208 = vmatprep.subr.bf16.mxu0 0
        %2209 = vmatpush2.bf16.msra.mxu0 %v2172
        %2210 = vmatprep.subr.bf16.mxu0 0
        %2211 = vmatpush2.bf16.msra.mxu0 %v2171
        %2212 = vmatprep.subr.bf16.mxu0 0
        %2213 = vmatpush2.bf16.msra.mxu0 %v2170
        %2214 = vmatprep.subr.bf16.mxu0 0
        %2215 = vmatpush2.bf16.msra.mxu0 %v2169
        %2216 = vmatprep.subr.bf16.mxu0 0
        %2217 = vmatpush2.bf16.msra.mxu0 %v2168
        %2218 = vmatprep.subr.bf16.mxu0 0
        %2219 = vmatpush2.bf16.msra.mxu0 %v2167
        %2220 = vmatprep.subr.bf16.mxu0 0
        %2221 = vmatpush2.bf16.msra.mxu0 %v2166
        %2222 = vmatprep.mubr.bf16.mxu0 %v2052
        %2223 = vmatmul.mubr.bf16.gmra.mxu0 %v2051
        %v2224 = vpop.f32.mrf.mxu0
        %v2225 = vadd.f32 %v2092, %v2224
        %v2226 = vpop.f32.mrf.mxu0
        %v2227 = vpop.f32.mrf.mxu0
        %v2228 = vadd.f32 %v2092, %v2227
        %v2229 = vpop.f32.mrf.mxu0
        %2230 = vmatprep.mubr.bf16.mxu0 %v2054
        %2231 = vmatmul.mubr.bf16.gmra.mxu0 %v2053
        %v2232 = vpop.f32.mrf.mxu0
        %v2233 = vadd.f32 %v2092, %v2232
        %v2234 = vpop.f32.mrf.mxu0
        %v2235 = vpop.f32.mrf.mxu0
        %v2236 = vadd.f32 %v2092, %v2235
        %v2237 = vpop.f32.mrf.mxu0
        %2238 = vdwg.mxu0
        %v2239 = vadd.f32 %v1812, %v2225
        %v2240 = vadd.f32 %v1813, %v2228
        %v2241 = vadd.f32 %v1814, %v2233
        %v2242 = vadd.f32 %v1815, %v2236
        %v2243 = vld [vmem:[%s1052] sm:$0x1]
        %v2244 = vld [vmem:[%s1055] sm:$0x1]
        %2245 = vadd.xlane.f32.xlu0 %v2239
        %v2246 = vpop.xlane.xlu0 %2245
        %2247 = vadd.xlane.f32.xlu0 %v2240
        %v2248 = vpop.xlane.xlu0 %2247
        %2249 = vadd.xlane.f32.xlu0 %v2241
        %v2250 = vpop.xlane.xlu0 %2249
        %2251 = vadd.xlane.f32.xlu0 %v2242
        %v2252 = vpop.xlane.xlu0 %2251
        %v2253 = vmul.f32 %v2246, 0.015625
        %v2254 = vmul.f32 %v2248, 0.015625
        %v2255 = vmul.f32 %v2250, 0.015625
        %v2256 = vmul.f32 %v2252, 0.015625
        %v2257 = vmul.f32 %v2239, %v2239
        %v2258 = vmul.f32 %v2240, %v2240
        %v2259 = vmul.f32 %v2241, %v2241
        %v2260 = vmul.f32 %v2242, %v2242
        %2261 = vadd.xlane.f32.xlu0 %v2257
        %v2262 = vpop.xlane.xlu0 %2261
        %2263 = vadd.xlane.f32.xlu0 %v2258
        %v2264 = vpop.xlane.xlu0 %2263
        %2265 = vadd.xlane.f32.xlu0 %v2259
        %v2266 = vpop.xlane.xlu0 %2265
        %2267 = vadd.xlane.f32.xlu0 %v2260
        %v2268 = vpop.xlane.xlu0 %2267
        %v2269 = vmul.f32 %v2262, 0.015625
        %v2270 = vmul.f32 %v2264, 0.015625
        %v2271 = vmul.f32 %v2266, 0.015625
        %v2272 = vmul.f32 %v2268, 0.015625
        %v2273 = vmul.f32 %v2253, %v2253
        %v2274 = vmul.f32 %v2254, %v2254
        %v2275 = vmul.f32 %v2255, %v2255
        %v2276 = vmul.f32 %v2256, %v2256
        %v2277 = vsub.f32 %v2269, %v2273
        %v2278 = vsub.f32 %v2270, %v2274
        %v2279 = vsub.f32 %v2271, %v2275
        %v2280 = vsub.f32 %v2272, %v2276
        %v2281 = vmax.f32 %v2277, 0.0
        %v2282 = vmax.f32 %v2278, 0.0
        %v2283 = vmax.f32 %v2279, 0.0
        %v2284 = vmax.f32 %v2280, 0.0
        %v2285 = vsub.f32 %v2239, %v2253
        %v2286 = vsub.f32 %v2240, %v2254
        %v2287 = vsub.f32 %v2241, %v2255
        %v2288 = vsub.f32 %v2242, %v2256
        %v2289 = vadd.f32 %v2281, 1e-05
        %v2290 = vadd.f32 %v2282, 1e-05
        %v2291 = vadd.f32 %v2283, 1e-05
        %v2292 = vadd.f32 %v2284, 1e-05
        %v2293 = vrsqrt.pop %v2289
        %v2294 = vrsqrt.pop %v2290
        %v2295 = vrsqrt.pop %v2291
        %v2296 = vrsqrt.pop %v2292
        %v2297 = vmul.f32 %v2285, %v2293
        %v2298 = vmul.f32 %v2286, %v2294
        %v2299 = vmul.f32 %v2287, %v2295
        %v2300 = vmul.f32 %v2288, %v2296
        %v2302 = vlaneseq
        %v2303 = vshrl.u32 %v2302, 7
        %v2304 = vsub.s32 0, %v2303
        %v2305 = vrot.slane %v2243, %v2304
        %v2307 = vmul.f32 %v2297, %v2305
        %v2308 = vmul.f32 %v2298, %v2305
        %v2309 = vmul.f32 %v2299, %v2305
        %v2310 = vmul.f32 %v2300, %v2305
        %v2312 = vlaneseq
        %v2313 = vshrl.u32 %v2312, 7
        %v2314 = vsub.s32 0, %v2313
        %v2315 = vrot.slane %v2244, %v2314
        %v2317 = vadd.f32 %v2307, %v2315
        %v2318 = vadd.f32 %v2308, %v2315
        %v2319 = vadd.f32 %v2309, %v2315
        %v2320 = vadd.f32 %v2310, %v2315
        %2321 = vst [vmem:[%s1061] sm:$0xff] %v2317
        %2322 = vst [vmem:[%s1061 + $0x8] sm:$0xff] %v2318
        %2323 = vst [vmem:[%s1061 + $0x10] sm:$0xff] %v2319
        %2324 = vst [vmem:[%s1061 + $0x18] sm:$0xff] %v2320
        %p2325 = scmp.eq.s32.totalorder %s50, 1
        // Predicated region
        $region121: #{nl_encoder_all_forward.1} parent=91 // pred_check
          %p2326 = pneg %p2325
        $region122: #{nl_encoder_all_forward.1} parent=91 // pred_check_branch
          %2328 = sbr.rel (%p2326) target = $region124
        $region123: #{nl_encoder_all_forward.1} parent=91 // pred_region
          %v2329 = vld [vmem:[#allocation11] sm:$0x1]
          %v2330 = vld [vmem:[#allocation2] sm:$0x1]
          %s2331 = vtos %v2330
          %v2333 = vlaneseq
          %v2334 = vshrl.u32 %v2333, 7
          %v2335 = vsub.s32 0, %v2334
          %v2336 = vrot.slane %v2329, %v2335
          %v2338 = vmul.f32 %v2317, %v2336
          %v2339 = vmul.f32 %v2318, %v2336
          %v2340 = vmul.f32 %v2319, %v2336
          %v2341 = vmul.f32 %v2320, %v2336
          %2342 = vadd.xlane.f32.xlu0 %v2338
          %v2343 = vpop.xlane.xlu0 %2342
          %2344 = vadd.xlane.f32.xlu0 %v2339
          %v2345 = vpop.xlane.xlu0 %2344
          %2346 = vadd.xlane.f32.xlu0 %v2340
          %v2347 = vpop.xlane.xlu0 %2346
          %2348 = vadd.xlane.f32.xlu0 %v2341
          %v2349 = vpop.xlane.xlu0 %2348
          %v2350 = vstv %s2331
          %v2351 = vadd.f32 %v2343, %v2350
          %v2352 = vadd.f32 %v2345, %v2350
          %v2353 = vadd.f32 %v2347, %v2350
          %v2354 = vadd.f32 %v2349, %v2350
          %v2355 = vld [vmem:[%s1025] sm:$0x3]
          %vm2356 = vcmp.gt.f32.partialorder %v2355, 0.0
          %v2361 = vlaneseq
          %v2362 = vand.u32 %v2361, 127
          %v2363 = vlaneseq
          %v2364 = vshrl.u32 %v2363, 7
          %v2365 = vsub.s32 %v2362, %v2364
          %v2366 = vrot.slane %v2351, %v2365
          %v2367 = vadd.s32 %v2362, 4294967288
          %v2368 = vlaneseq
          %v2369 = vshrl.u32 %v2368, 7
          %v2370 = vsub.s32 %v2367, %v2369
          %v2371 = vrot.slane %v2352, %v2370
          %vm2372 = vcmask 130112
          %v2373 = vsel %vm2372, %v2371, %v2366
          %v2374 = vlaneseq
          %v2375 = vshrl.u32 %v2374, 7
          %v2376 = vsub.s32 %v2362, %v2375
          %v2377 = vrot.slane %v2353, %v2376
          %v2378 = vlaneseq
          %v2379 = vshrl.u32 %v2378, 7
          %v2380 = vsub.s32 %v2367, %v2379
          %v2381 = vrot.slane %v2354, %v2380
          %v2382 = vsel %vm2372, %v2381, %v2377
          %vm2383 = vcmask 1041409
          %v2384 = vsel %vm2383, %v2382, %v2373
          %v2386 = vsel %vm2356, %v2384, -1e+09
          %vm2387 = vcmp.lt.s32.totalorder %v2362, 8
          %v2388 = vsel %vm2387, %v2386, -1e+09
          %vm2389 = vcmask 123904
          %v2390 = vsel %vm2389, %v2388, -inf
          %2391 = vmax.xlane.f32.xlu0 %v2390
          %v2392 = vpop.xlane.xlu0 %2391
          %v2393 = vsub.f32 %v2388, %v2392
          %v2394 = vmul.f32 %v2393, 1.442695
          %v2395 = vpow.pop %v2394
          %v2396 = vsel %vm2387, %v2395, 0.0
          %v2397 = vsel %vm2389, %v2396, 0.0
          %2398 = vadd.xlane.f32.xlu0 %v2397
          %v2399 = vpop.xlane.xlu0 %2398
          %v2400 = vrcp.pop %v2399
          %v2401 = vmul.f32 %v2396, %v2400
          %vm2402 = vmxor %vm2387, 1
          %v2403 = vsel %vm2402, %v2386, -1e+09
          %v2404 = vsel %vm2389, %v2403, -inf
          %2405 = vmax.xlane.f32.xlu0 %v2404
          %v2406 = vpop.xlane.xlu0 %2405
          %v2407 = vsub.f32 %v2403, %v2406
          %v2408 = vmul.f32 %v2407, 1.442695
          %v2409 = vpow.pop %v2408
          %v2410 = vsel %vm2402, %v2409, 0.0
          %v2411 = vsel %vm2389, %v2410, 0.0
          %2412 = vadd.xlane.f32.xlu0 %v2411
          %v2413 = vpop.xlane.xlu0 %2412
          %v2414 = vrcp.pop %v2413
          %v2415 = vmul.f32 %v2410, %v2414
          %v2416 = vadd.f32 %v2401, %v2415
          %2417 = vst.msk [vmem:[%s1066] sm:$0x3] %vm2389, %v2416
          %v2418 = vmax.f32 %v2416, 1e-10
          %v2419 = vmin.f32 %v2418, 1.0
          %v2420 = vlog2.pop %v2419
          %v2421 = vmul.f32 %v2420, 0.6931472
          %v2422 = vsub.f32 0.0, %v2421
          %v2423 = vld [vmem:[%s1029] sm:$0x3]
          %v2424 = vmul.f32 %v2422, %v2423
          %v2425 = vsel %vm2387, %v2424, 0.0
          %v2426 = vsel %vm2389, %v2425, 0.0
          %2427 = vadd.xlane.f32.xlu0 %v2426
          %v2428 = vpop.xlane.xlu0 %2427
          %vm2429 = vcmask 1024
          %2430 = vst.msk [vmem:[%s1070] sm:$0x3] %vm2429, %v2428
          %v2431 = vsel %vm2387, 0.0, %v2424
          %v2432 = vsel %vm2389, %v2431, 0.0
          %2433 = vadd.xlane.f32.xlu0 %v2432
          %v2434 = vpop.xlane.xlu0 %2433
          %2435 = vst.msk [vmem:[%s1074] sm:$0x3] %vm2429, %v2434
        $region124: #{nl_encoder_all_forward.1} parent=91 // pred_fallthru
          _
        %s2436 = smul.u32 2, %s49
        %p2437 = scmp.lt.s32.totalorder %s2436, 1
        %s2438 = scalar_select %p2437, %s2436, 1
        %s2439 = smul.addr %s2438, 2
        %s2440 = smul.addr %s2439, 8
        %s2441 = scalar_lea.vmem %s18, %s2440
        %p2442 = scmp.lt.s32.totalorder %s49, 0
        %s2443 = scalar_select %p2442, %s49, 0
        %s2444 = smul.addr %s2443, 2
        %s2445 = scalar_lea.vmem %s19, %s2444
        %p2446 = scmp.lt.s32.totalorder %s49, 0
        %s2447 = scalar_select %p2446, %s49, 0
        %s2448 = smul.addr %s2447, 2
        %s2449 = scalar_lea.vmem %s20, %s2448
        %p2450 = scmp.lt.s32.totalorder %s49, 0
        %s2451 = scalar_select %p2450, %s49, 0
        %s2452 = smul.addr %s2451, 2
        %s2453 = scalar_lea.vmem %s21, %s2452
        // Predicated region
        $region125: #{nl_encoder_all_forward.1} parent=91 // pred_check
          %p2454 = pneg %p533
        $region126: #{nl_encoder_all_forward.1} parent=91 // pred_check_branch
          %2456 = sbr.rel (%p2454) target = $region128
        $region127: #{nl_encoder_all_forward.1} parent=91 // pred_region
          %s2457 = smul.u32 2, %s49
        $region128: #{nl_encoder_all_forward.1} parent=91 // pred_fallthru
          _
        // Predicated region
        $region129: #{nl_encoder_all_forward.1} parent=91 // pred_check
          %p2458 = pneg %p559
        $region130: #{nl_encoder_all_forward.1} parent=91 // pred_check_branch
          %2460 = sbr.rel (%p2458) target = $region132
        $region131: #{nl_encoder_all_forward.1} parent=91 // pred_region
          _
        $region132: #{nl_encoder_all_forward.1} parent=91 // pred_fallthru
          _
        // Predicated region
        $region133: #{nl_encoder_all_forward.1} parent=91 // pred_check
          %p2461 = pneg %p585
        $region134: #{nl_encoder_all_forward.1} parent=91 // pred_check_branch
          %2463 = sbr.rel (%p2461) target = $region136
        $region135: #{nl_encoder_all_forward.1} parent=91 // pred_region
          _
        $region136: #{nl_encoder_all_forward.1} parent=91 // pred_fallthru
          _
        // Predicated region
        $region137: #{nl_encoder_all_forward.1} parent=91 // pred_check
          %p2464 = pneg %p611
        $region138: #{nl_encoder_all_forward.1} parent=91 // pred_check_branch
          %2466 = sbr.rel (%p2464) target = $region140
        $region139: #{nl_encoder_all_forward.1} parent=91 // pred_region
          _
        $region140: #{nl_encoder_all_forward.1} parent=91 // pred_fallthru
          _
        // Predicated region
        $region141: #{nl_encoder_all_forward.1} parent=91 // pred_check
          %p2467 = pneg %p533
        $region142: #{nl_encoder_all_forward.1} parent=91 // pred_check_branch
          %2469 = sbr.rel (%p2467) target = $region144
        $region143: #{nl_encoder_all_forward.1} parent=91 // pred_region
          %s2470 = smul.u32 2, %s49
          %p2471 = scmp.lt.s32.totalorder %s2470, 1
          %s2472 = scalar_select %p2471, %s2470, 1
          %s2473 = smul.addr %s2472, 2
          %s2474 = smul.addr %s2473, 8
          %s2475 = scalar_lea.vmem %s18, %s2474
        $region144: #{nl_encoder_all_forward.1} parent=91 // pred_fallthru
          _
        // Predicated region
        $region145: #{nl_encoder_all_forward.1} parent=91 // pred_check
          %p2476 = pneg %p559
        $region146: #{nl_encoder_all_forward.1} parent=91 // pred_check_branch
          %2478 = sbr.rel (%p2476) target = $region148
        $region147: #{nl_encoder_all_forward.1} parent=91 // pred_region
          %p2479 = scmp.lt.s32.totalorder %s49, 0
          %s2480 = scalar_select %p2479, %s49, 0
          %s2481 = smul.addr %s2480, 2
          %s2482 = scalar_lea.vmem %s19, %s2481
        $region148: #{nl_encoder_all_forward.1} parent=91 // pred_fallthru
          _
        // Predicated region
        $region149: #{nl_encoder_all_forward.1} parent=91 // pred_check
          %p2483 = pneg %p585
        $region150: #{nl_encoder_all_forward.1} parent=91 // pred_check_branch
          %2485 = sbr.rel (%p2483) target = $region152
        $region151: #{nl_encoder_all_forward.1} parent=91 // pred_region
          %p2486 = scmp.lt.s32.totalorder %s49, 0
          %s2487 = scalar_select %p2486, %s49, 0
          %s2488 = smul.addr %s2487, 2
          %s2489 = scalar_lea.vmem %s20, %s2488
        $region152: #{nl_encoder_all_forward.1} parent=91 // pred_fallthru
          _
        // Predicated region
        $region153: #{nl_encoder_all_forward.1} parent=91 // pred_check
          %p2490 = pneg %p611
        $region154: #{nl_encoder_all_forward.1} parent=91 // pred_check_branch
          %2492 = sbr.rel (%p2490) target = $region156
        $region155: #{nl_encoder_all_forward.1} parent=91 // pred_region
          %p2493 = scmp.lt.s32.totalorder %s49, 0
          %s2494 = scalar_select %p2493, %s49, 0
          %s2495 = smul.addr %s2494, 2
          %s2496 = scalar_lea.vmem %s21, %s2495
        $region156: #{nl_encoder_all_forward.1} parent=91 // pred_fallthru
          _
      $region92: #{nl_encoder_all_forward.1} parent=5 // pred_fallthru
        _
      %p2497 = scmp.le.s32.totalorder 2, %s40
      // Predicated region
      $region157: #{nl_encoder_all_forward.1} parent=5 // pred_check
        %p2498 = pneg %p2497
      $region158: #{nl_encoder_all_forward.1} parent=5 // pred_check_branch
        %2500 = sbr.rel (%p2498) target = $region160
      $region159: #{nl_encoder_all_forward.1} parent=5 // pred_region
        %s2501 = ssub.s32 %s40, 2
      $region160: #{nl_encoder_all_forward.1} parent=5 // pred_fallthru
        _
    $region6: #{nl_encoder_all_forward.1} parent=1 // loop_footer
      %s44 = sadd.s32 1, %s40
    $region7: #{nl_encoder_all_forward.1} parent=1 // loop_footer_branch
      %39 = sbr.rel target = $region3
    $region8: #{nl_encoder_all_forward.1} parent=1 // loop_exit
      _
    %2502 = vsyncpa [#allocation4], 1
    %s2503 = scalar_lea.sflag [#allocation4], 1
    %2504 = vsyncpa %s2503, 1
    %2505 = vsyncpa [#allocation6], 1
    %s2506 = scalar_lea.sflag [#allocation6], 1
    %2507 = vsyncpa %s2506, 1
    %2508 = vsyncpa [#allocation9], 1
    %s2509 = scalar_lea.sflag [#allocation9], 1
    %2510 = vsyncpa %s2509, 1
    %2511 = vsyncpa [#allocation12], 1

</llo_original>
